<compile_context>
chip_gen: v6e
topology: v6e:2x2x1
jax: 0.10.0
libtpu: 0.0.40
codegen_flags: <defaults>
</compile_context>

<pallas_src>
from functools import partial
import math

import numpy as np
import jax
import jax.numpy as jnp
from jax.experimental import pallas as pl
from jax.experimental.pallas import tpu as pltpu


# ----------------------------------------------------------------------------- helpers
def _erf_f32(z):
    # Abramowitz & Stegun 7.1.26 rational approximation (|err| < 1.5e-7), built
    # only from primitives that lower cleanly on TPU (exp / mul / add / select).
    a1, a2, a3, a4, a5 = (0.254829592, -0.284496736, 1.421413741,
                          -1.453152027, 1.061405429)
    p = 0.3275911
    sgn = jnp.where(z >= 0.0, 1.0, -1.0)
    za = jnp.abs(z)
    t = 1.0 / (1.0 + p * za)
    poly = ((((a5 * t + a4) * t + a3) * t + a2) * t + a1) * t
    return sgn * (1.0 - poly * jnp.exp(-za * za))


def _gelu_exact(x):
    # nn.GELU() default (exact erf form).
    return 0.5 * x * (1.0 + _erf_f32(x * (1.0 / math.sqrt(2.0))))


# ----------------------------------------------------------------------------- kernel
def _linear_transformer_layer_kernel(
        x_ref, g1_ref, wqkv_ref, wout_ref, bout_ref, g2_ref,
        gff_ref, wff1_ref, bff1_ref, wff2_ref, bff2_ref,
        o_ref, *, heads, dim_head, eps):
    """One batch element per grid step.

    x_ref   : (C, N)            N = H*W on the lane axis (lane-dense)
    weights : full 2-D blocks, constant index maps (DMA'd once)
    o_ref   : (C, N)
    """
    C, N = x_ref.shape
    hidden = heads * dim_head
    sqrt_c = math.sqrt(C)
    scale = 1.0 / math.sqrt(dim_head)

    def rmsnorm(v, g_ref):
        # F.normalize(v, dim=channel) * g * sqrt(C); channel axis is axis 0.
        ssq = jnp.sum(v * v, axis=0, keepdims=True)                   # (1, N)
        denom = jnp.maximum(jnp.sqrt(ssq), eps)
        return (v / denom) * (g_ref[...].astype(jnp.float32) * sqrt_c)

    def mxu(a, b):
        # bf16 MXU matmul with f32 accumulation.
        return jnp.dot(a.astype(jnp.bfloat16), b.astype(jnp.bfloat16),
                       preferred_element_type=jnp.float32)

    x = x_ref[...].astype(jnp.float32)                                # (C, N)

    # --------------------------- LinearAttention ---------------------------
    xn = rmsnorm(x, g1_ref)
    qkv = mxu(wqkv_ref[...], xn)                                      # (3*hidden, N)
    q = qkv[0 * hidden:1 * hidden].reshape(heads, dim_head, N)
    k = qkv[1 * hidden:2 * hidden].reshape(heads, dim_head, N)
    v = qkv[2 * hidden:3 * hidden].reshape(heads, dim_head, N)

    # q: softmax over dim_head (sublane axis), then * dim_head**-0.5
    q = q - jnp.max(q, axis=1, keepdims=True)
    q = jnp.exp(q)
    q = q * (scale / jnp.sum(q, axis=1, keepdims=True))

    # k: softmax over N (lane axis)
    k = k - jnp.max(k, axis=-1, keepdims=True)
    k = jnp.exp(k)
    k = k / jnp.sum(k, axis=-1, keepdims=True)

    # context^T[h, e, d] = sum_n v[h, e, n] * k[h, d, n]   (A·B^T, minor-dim contraction)
    ctx_t = jnp.einsum('hen,hdn->hed',
                       v.astype(jnp.bfloat16), k.astype(jnp.bfloat16),
                       preferred_element_type=jnp.float32)            # (h, e, d)
    # out[h, e, n] = sum_d context[h, d, e] * q[h, d, n]   (plain matmul per head)
    attn = jnp.einsum('hed,hdn->hen',
                      ctx_t.astype(jnp.bfloat16), q.astype(jnp.bfloat16),
                      preferred_element_type=jnp.float32)             # (h, e, N)
    attn = attn.reshape(hidden, N)

    y = mxu(wout_ref[...], attn) + bout_ref[...].astype(jnp.float32)  # (C, N)
    y = rmsnorm(y, g2_ref)
    h = x + y                                                         # residual 1

    # ----------------------------- FeedForward -----------------------------
    hn = rmsnorm(h, gff_ref)
    u = mxu(wff1_ref[...], hn) + bff1_ref[...].astype(jnp.float32)    # (C*mult, N)
    u = _gelu_exact(u)
    y2 = mxu(wff2_ref[...], u) + bff2_ref[...].astype(jnp.float32)    # (C, N)

    o_ref[...] = (h + y2).astype(o_ref.dtype)                         # residual 2


# ----------------------------------------------------------------------------- wrapper
def _layer_pallas(xr, params, *, heads, dim_head):
    """xr: (B, C, N) -> (B, C, N), one fused transformer layer."""
    B, C, N = xr.shape
    g1, wqkv, wout, bout, g2, gff, wff1, bff1, wff2, bff2 = params
    hidden = heads * dim_head
    dmult = wff1.shape[0]
    assert wqkv.shape == (3 * hidden, C) and wout.shape == (C, hidden)
    assert wff1.shape == (dmult, C) and wff2.shape == (C, dmult)

    col = lambda a: a.reshape(-1, 1)          # per-channel vectors as (C, 1) columns

    def const2d(shape):
        return pl.BlockSpec(shape, lambda b: (0, 0))

    kern = partial(_linear_transformer_layer_kernel,
                   heads=heads, dim_head=dim_head, eps=1e-12)

    # TODO(synk): for very large H*W, add a second grid axis over N-blocks with a
    # two-pass k-softmax / context accumulation; at these sizes one lane-dense
    # block per batch element fits VMEM comfortably.
    return pl.pallas_call(
        kern,
        out_shape=jax.ShapeDtypeStruct((B, C, N), xr.dtype),
        grid_spec=pltpu.PrefetchScalarGridSpec(
            num_scalar_prefetch=0,
            grid=(B,),
            in_specs=[
                pl.BlockSpec((None, C, N), lambda b: (b, 0, 0)),      # x
                const2d((C, 1)),                                      # g  (attn RMSNorm)
                const2d((3 * hidden, C)),                             # W_qkv
                const2d((C, hidden)),                                 # W_out
                const2d((C, 1)),                                      # b_out
                const2d((C, 1)),                                      # g  (to_out RMSNorm)
                const2d((C, 1)),                                      # g  (ff RMSNorm)
                const2d((dmult, C)),                                  # W_ff1
                const2d((dmult, 1)),                                  # b_ff1
                const2d((C, dmult)),                                  # W_ff2
                const2d((C, 1)),                                      # b_ff2
            ],
            out_specs=pl.BlockSpec((None, C, N), lambda b: (b, 0, 0)),
        ),
        compiler_params=pltpu.CompilerParams(
            dimension_semantics=("parallel",),
            vmem_limit_bytes=48 * 1024 * 1024,
        ),
    )(xr, col(g1), wqkv, wout, col(bout), col(g2),
      col(gff), wff1, col(bff1), wff2, col(bff2))


def linear_transformer(x, layers, *, heads, dim_head):
    """x: (B, C, H, W) NCHW; layers: list of per-layer parameter tuples."""
    B, C, H, W = x.shape
    xr = x.reshape(B, C, H * W)               # pure reshape — no transpose / pad
    for params in layers:
        xr = _layer_pallas(xr, params, heads=heads, dim_head=dim_head)
    return xr.reshape(B, C, H, W)


# ----------------------------------------------------------------------------- reference
def reference_np(x, layers, *, heads, dim_head):
    """Pure-numpy float64 reference mirroring the PyTorch forward."""
    erf = np.vectorize(math.erf)
    x = np.asarray(x, np.float64)
    B, C, H, W = x.shape
    N = H * W
    xr = x.reshape(B, C, N)
    hidden = heads * dim_head
    sqrt_c = math.sqrt(C)

    def rmsnorm(v, g):
        nrm = np.sqrt((v * v).sum(axis=1, keepdims=True))
        return v / np.maximum(nrm, 1e-12) * g.reshape(1, C, 1) * sqrt_c

    def softmax(a, axis):
        a = a - a.max(axis=axis, keepdims=True)
        e = np.exp(a)
        return e / e.sum(axis=axis, keepdims=True)

    for params in layers:
        (g1, wqkv, wout, bout, g2, gff,
         wff1, bff1, wff2, bff2) = [np.asarray(p, np.float64) for p in params]

        # LinearAttention
        xn = rmsnorm(xr, g1)
        qkv = np.einsum('oc,bcn->bon', wqkv, xn)
        q = qkv[:, 0:hidden].reshape(B, heads, dim_head, N)
        k = qkv[:, hidden:2 * hidden].reshape(B, heads, dim_head, N)
        v = qkv[:, 2 * hidden:3 * hidden].reshape(B, heads, dim_head, N)
        q = softmax(q, axis=2) * (dim_head ** -0.5)
        k = softmax(k, axis=3)
        ctx = np.einsum('bhdn,bhen->bhde', k, v)
        att = np.einsum('bhde,bhdn->bhen', ctx, q).reshape(B, hidden, N)
        y = np.einsum('oc,bcn->bon', wout, att) + bout.reshape(1, C, 1)
        xr = xr + rmsnorm(y, g2)

        # FeedForward
        hn = rmsnorm(xr, gff)
        u = np.einsum('oc,bcn->bon', wff1, hn) + bff1.reshape(1, -1, 1)
        u = 0.5 * u * (1.0 + erf(u / math.sqrt(2.0)))                 # exact GELU
        y2 = np.einsum('oc,bcn->bon', wff2, u) + bff2.reshape(1, C, 1)
        xr = xr + y2

    return xr.reshape(B, C, H, W)


# ----------------------------------------------------------------------------- demo
if __name__ == "__main__":
    B, dim, H, W = 2, 32, 16, 16
    heads, dim_head, ff_mult, depth = 4, 16, 4, 1
    hidden = heads * dim_head
    dmult = dim * ff_mult

    key = jax.random.PRNGKey(0)
    ks = jax.random.split(key, 1 + depth)

    def w_init(k, o, i):
        return (jax.random.normal(k, (o, i), jnp.float32) / np.sqrt(i)).astype(jnp.float32)

    def layer_params(kk):
        k = jax.random.split(kk, 10)
        g1 = 1.0 + 0.1 * jax.random.normal(k[0], (dim,), jnp.float32)
        wqkv = w_init(k[1], 3 * hidden, dim)
        wout = w_init(k[2], dim, hidden)
        bout = 0.1 * jax.random.normal(k[3], (dim,), jnp.float32)
        g2 = 1.0 + 0.1 * jax.random.normal(k[4], (dim,), jnp.float32)
        gff = 1.0 + 0.1 * jax.random.normal(k[5], (dim,), jnp.float32)
        wff1 = w_init(k[6], dmult, dim)
        bff1 = 0.1 * jax.random.normal(k[7], (dmult,), jnp.float32)
        wff2 = w_init(k[8], dim, dmult)
        bff2 = 0.1 * jax.random.normal(k[9], (dim,), jnp.float32)
        return (g1, wqkv, wout, bout, g2, gff, wff1, bff1, wff2, bff2)

    layers = [layer_params(ks[1 + i]) for i in range(depth)]
    x = jax.random.normal(ks[0], (B, dim, H, W), jnp.float32)

    out = linear_transformer(x, layers, heads=heads, dim_head=dim_head)
    out = jax.block_until_ready(out)
    assert out.shape == (B, dim, H, W), out.shape

    ref = reference_np(x, layers, heads=heads, dim_head=dim_head)
    err = float(np.max(np.abs(np.asarray(out, np.float64) - ref)))
    # bf16 MXU operands + f32 accumulation -> small numerical drift vs f64 ref.
    assert np.allclose(np.asarray(out, np.float64), ref,
                       atol=7.5e-2, rtol=7.5e-2), f"max_err={err}"

    print("KERNEL_OK")
</pallas_src>

<mosaic_0001>
module attributes {stable_mosaic.version = 11 : i64} {
  func.func @_linear_transformer_layer_kernel(%arg0: i32, %arg1: memref<1x32x256xf32, #tpu.memory_space<vmem>>, %arg2: memref<32x1xf32, #tpu.memory_space<vmem>>, %arg3: memref<192x32xf32, #tpu.memory_space<vmem>>, %arg4: memref<32x64xf32, #tpu.memory_space<vmem>>, %arg5: memref<32x1xf32, #tpu.memory_space<vmem>>, %arg6: memref<32x1xf32, #tpu.memory_space<vmem>>, %arg7: memref<32x1xf32, #tpu.memory_space<vmem>>, %arg8: memref<128x32xf32, #tpu.memory_space<vmem>>, %arg9: memref<128x1xf32, #tpu.memory_space<vmem>>, %arg10: memref<32x128xf32, #tpu.memory_space<vmem>>, %arg11: memref<32x1xf32, #tpu.memory_space<vmem>>, %arg12: memref<1x32x256xf32, #tpu.memory_space<vmem>>) attributes {dimension_semantics = [#tpu.dimension_semantics<parallel>], iteration_bounds = array<i64: 2>, scalar_prefetch = 0 : i64, scratch_operands = 0 : i64, tpu.core_type = #tpu.core_type<tc>, window_params = [{transform_indices = @transform_0, window_bounds = array<i64: 1, 32, 256>}, {pipeline_mode = #tpu.pipeline_mode<synchronous>, transform_indices = @transform_1, window_bounds = array<i64: 32, 1>}, {pipeline_mode = #tpu.pipeline_mode<synchronous>, transform_indices = @transform_2, window_bounds = array<i64: 192, 32>}, {pipeline_mode = #tpu.pipeline_mode<synchronous>, transform_indices = @transform_3, window_bounds = array<i64: 32, 64>}, {pipeline_mode = #tpu.pipeline_mode<synchronous>, transform_indices = @transform_4, window_bounds = array<i64: 32, 1>}, {pipeline_mode = #tpu.pipeline_mode<synchronous>, transform_indices = @transform_5, window_bounds = array<i64: 32, 1>}, {pipeline_mode = #tpu.pipeline_mode<synchronous>, transform_indices = @transform_6, window_bounds = array<i64: 32, 1>}, {pipeline_mode = #tpu.pipeline_mode<synchronous>, transform_indices = @transform_7, window_bounds = array<i64: 128, 32>}, {pipeline_mode = #tpu.pipeline_mode<synchronous>, transform_indices = @transform_8, window_bounds = array<i64: 128, 1>}, {pipeline_mode = #tpu.pipeline_mode<synchronous>, transform_indices = @transform_9, window_bounds = array<i64: 32, 128>}, {pipeline_mode = #tpu.pipeline_mode<synchronous>, transform_indices = @transform_10, window_bounds = array<i64: 32, 1>}, {transform_indices = @transform_11, window_bounds = array<i64: 1, 32, 256>}]} {
    %c0 = arith.constant 0 : index
    %c0_0 = arith.constant 0 : index
    %c0_1 = arith.constant 0 : index
    %0 = vector.load %arg1[%c0, %c0_0, %c0_1] : memref<1x32x256xf32, #tpu.memory_space<vmem>>, vector<1x32x256xf32>
    %1 = vector.shape_cast %0 : vector<1x32x256xf32> to vector<32x256xf32>
    %2 = arith.mulf %1, %1 : vector<32x256xf32>
    %cst = arith.constant dense<0.000000e+00> : vector<256xf32>
    %3 = vector.multi_reduction <add>, %2, %cst [0] : vector<32x256xf32> to vector<256xf32>
    %4 = vector.shape_cast %3 : vector<256xf32> to vector<1x256xf32>
    %5 = math.sqrt %4 : vector<1x256xf32>
    %cst_2 = arith.constant 9.99999996E-13 : f32
    %6 = vector.broadcast %cst_2 : f32 to vector<1x256xf32>
    %7 = arith.maximumf %5, %6 : vector<1x256xf32>
    %8 = vector.broadcast %7 : vector<1x256xf32> to vector<32x256xf32>
    %9 = arith.divf %1, %8 : vector<32x256xf32>
    %c0_3 = arith.constant 0 : index
    %c0_4 = arith.constant 0 : index
    %10 = vector.load %arg2[%c0_3, %c0_4] : memref<32x1xf32, #tpu.memory_space<vmem>>, vector<32x1xf32>
    %cst_5 = arith.constant 5.65685415 : f32
    %11 = vector.broadcast %cst_5 : f32 to vector<32x1xf32>
    %12 = arith.mulf %10, %11 : vector<32x1xf32>
    %13 = vector.broadcast %12 : vector<32x1xf32> to vector<32x256xf32>
    %14 = arith.mulf %9, %13 : vector<32x256xf32>
    %c0_6 = arith.constant 0 : index
    %c0_7 = arith.constant 0 : index
    %15 = vector.load %arg3[%c0_6, %c0_7] : memref<192x32xf32, #tpu.memory_space<vmem>>, vector<192x32xf32>
    %16 = arith.truncf %15 : vector<192x32xf32> to vector<192x32xbf16>
    %17 = arith.truncf %14 : vector<32x256xf32> to vector<32x256xbf16>
    %cst_8 = arith.constant dense<0.000000e+00> : vector<192x256xf32>
    %18 = tpu.matmul %16, %17, %cst_8 {dimension_numbers = #tpu.dot_dimension_numbers<[1], [0], [0], [1], [0, 0, 1, 1], [], []>} : vector<192x32xbf16>, vector<32x256xbf16>, vector<192x256xf32> -> vector<192x256xf32>
    %19 = vector.extract_strided_slice %18 {offsets = [0, 0], sizes = [64, 256], strides = [1, 1]} : vector<192x256xf32> to vector<64x256xf32>
    %20 = vector.shape_cast %19 : vector<64x256xf32> to vector<4x16x256xf32>
    %21 = vector.extract_strided_slice %18 {offsets = [64, 0], sizes = [64, 256], strides = [1, 1]} : vector<192x256xf32> to vector<64x256xf32>
    %22 = vector.shape_cast %21 : vector<64x256xf32> to vector<4x16x256xf32>
    %23 = vector.extract_strided_slice %18 {offsets = [128, 0], sizes = [64, 256], strides = [1, 1]} : vector<192x256xf32> to vector<64x256xf32>
    %24 = vector.shape_cast %23 : vector<64x256xf32> to vector<4x16x256xf32>
    %cst_9 = arith.constant dense<0xFF800000> : vector<4x256xf32>
    %25 = vector.multi_reduction <maximumf>, %20, %cst_9 [1] : vector<4x16x256xf32> to vector<4x256xf32>
    %26 = vector.shape_cast %25 : vector<4x256xf32> to vector<4x1x256xf32>
    %27 = vector.broadcast %26 : vector<4x1x256xf32> to vector<4x16x256xf32>
    %28 = arith.subf %20, %27 : vector<4x16x256xf32>
    %29 = math.exp %28 : vector<4x16x256xf32>
    %cst_10 = arith.constant dense<0.000000e+00> : vector<4x256xf32>
    %30 = vector.multi_reduction <add>, %29, %cst_10 [1] : vector<4x16x256xf32> to vector<4x256xf32>
    %31 = vector.shape_cast %30 : vector<4x256xf32> to vector<4x1x256xf32>
    %cst_11 = arith.constant 2.500000e-01 : f32
    %32 = vector.broadcast %cst_11 : f32 to vector<4x1x256xf32>
    %33 = arith.divf %32, %31 : vector<4x1x256xf32>
    %34 = vector.broadcast %33 : vector<4x1x256xf32> to vector<4x16x256xf32>
    %35 = arith.mulf %29, %34 : vector<4x16x256xf32>
    %cst_12 = arith.constant dense<0xFF800000> : vector<4x16xf32>
    %36 = vector.multi_reduction <maximumf>, %22, %cst_12 [2] : vector<4x16x256xf32> to vector<4x16xf32>
    %37 = vector.shape_cast %36 : vector<4x16xf32> to vector<4x16x1xf32>
    %38 = vector.broadcast %37 : vector<4x16x1xf32> to vector<4x16x256xf32>
    %39 = arith.subf %22, %38 : vector<4x16x256xf32>
    %40 = math.exp %39 : vector<4x16x256xf32>
    %cst_13 = arith.constant dense<0.000000e+00> : vector<4x16xf32>
    %41 = vector.multi_reduction <add>, %40, %cst_13 [2] : vector<4x16x256xf32> to vector<4x16xf32>
    %42 = vector.shape_cast %41 : vector<4x16xf32> to vector<4x16x1xf32>
    %43 = vector.broadcast %42 : vector<4x16x1xf32> to vector<4x16x256xf32>
    %44 = arith.divf %40, %43 : vector<4x16x256xf32>
    %45 = arith.truncf %24 : vector<4x16x256xf32> to vector<4x16x256xbf16>
    %46 = arith.truncf %44 : vector<4x16x256xf32> to vector<4x16x256xbf16>
    "tpu.trace_start"() <{level = 10 : i32, message = "hen,hdn->hed"}> : () -> ()
    %cst_14 = arith.constant dense<0.000000e+00> : vector<4x16x16xf32>
    %47 = tpu.matmul %45, %46, %cst_14 {dimension_numbers = #tpu.dot_dimension_numbers<[2], [2], [1], [1], [0, 0, 0, 1, 1, 1], [0], [0]>} : vector<4x16x256xbf16>, vector<4x16x256xbf16>, vector<4x16x16xf32> -> vector<4x16x16xf32>
    "tpu.trace_stop"() : () -> ()
    %48 = arith.truncf %47 : vector<4x16x16xf32> to vector<4x16x16xbf16>
    %49 = arith.truncf %35 : vector<4x16x256xf32> to vector<4x16x256xbf16>
    "tpu.trace_start"() <{level = 10 : i32, message = "hed,hdn->hen"}> : () -> ()
    %cst_15 = arith.constant dense<0.000000e+00> : vector<4x16x256xf32>
    %50 = tpu.matmul %48, %49, %cst_15 {dimension_numbers = #tpu.dot_dimension_numbers<[2], [1], [1], [2], [0, 0, 0, 1, 1, 2], [0], [0]>} : vector<4x16x16xbf16>, vector<4x16x256xbf16>, vector<4x16x256xf32> -> vector<4x16x256xf32>
    "tpu.trace_stop"() : () -> ()
    %51 = vector.shape_cast %50 : vector<4x16x256xf32> to vector<64x256xf32>
    %c0_16 = arith.constant 0 : index
    %c0_17 = arith.constant 0 : index
    %52 = vector.load %arg4[%c0_16, %c0_17] : memref<32x64xf32, #tpu.memory_space<vmem>>, vector<32x64xf32>
    %53 = arith.truncf %52 : vector<32x64xf32> to vector<32x64xbf16>
    %54 = arith.truncf %51 : vector<64x256xf32> to vector<64x256xbf16>
    %cst_18 = arith.constant dense<0.000000e+00> : vector<32x256xf32>
    %55 = tpu.matmul %53, %54, %cst_18 {dimension_numbers = #tpu.dot_dimension_numbers<[1], [0], [0], [1], [0, 0, 1, 1], [], []>} : vector<32x64xbf16>, vector<64x256xbf16>, vector<32x256xf32> -> vector<32x256xf32>
    %c0_19 = arith.constant 0 : index
    %c0_20 = arith.constant 0 : index
    %56 = vector.load %arg5[%c0_19, %c0_20] : memref<32x1xf32, #tpu.memory_space<vmem>>, vector<32x1xf32>
    %57 = vector.broadcast %56 : vector<32x1xf32> to vector<32x256xf32>
    %58 = arith.addf %55, %57 : vector<32x256xf32>
    %59 = arith.mulf %58, %58 : vector<32x256xf32>
    %cst_21 = arith.constant dense<0.000000e+00> : vector<256xf32>
    %60 = vector.multi_reduction <add>, %59, %cst_21 [0] : vector<32x256xf32> to vector<256xf32>
    %61 = vector.shape_cast %60 : vector<256xf32> to vector<1x256xf32>
    %62 = math.sqrt %61 : vector<1x256xf32>
    %cst_22 = arith.constant 9.99999996E-13 : f32
    %63 = vector.broadcast %cst_22 : f32 to vector<1x256xf32>
    %64 = arith.maximumf %62, %63 : vector<1x256xf32>
    %65 = vector.broadcast %64 : vector<1x256xf32> to vector<32x256xf32>
    %66 = arith.divf %58, %65 : vector<32x256xf32>
    %c0_23 = arith.constant 0 : index
    %c0_24 = arith.constant 0 : index
    %67 = vector.load %arg6[%c0_23, %c0_24] : memref<32x1xf32, #tpu.memory_space<vmem>>, vector<32x1xf32>
    %cst_25 = arith.constant 5.65685415 : f32
    %68 = vector.broadcast %cst_25 : f32 to vector<32x1xf32>
    %69 = arith.mulf %67, %68 : vector<32x1xf32>
    %70 = vector.broadcast %69 : vector<32x1xf32> to vector<32x256xf32>
    %71 = arith.mulf %66, %70 : vector<32x256xf32>
    %72 = arith.addf %1, %71 : vector<32x256xf32>
    %73 = arith.mulf %72, %72 : vector<32x256xf32>
    %cst_26 = arith.constant dense<0.000000e+00> : vector<256xf32>
    %74 = vector.multi_reduction <add>, %73, %cst_26 [0] : vector<32x256xf32> to vector<256xf32>
    %75 = vector.shape_cast %74 : vector<256xf32> to vector<1x256xf32>
    %76 = math.sqrt %75 : vector<1x256xf32>
    %cst_27 = arith.constant 9.99999996E-13 : f32
    %77 = vector.broadcast %cst_27 : f32 to vector<1x256xf32>
    %78 = arith.maximumf %76, %77 : vector<1x256xf32>
    %79 = vector.broadcast %78 : vector<1x256xf32> to vector<32x256xf32>
    %80 = arith.divf %72, %79 : vector<32x256xf32>
    %c0_28 = arith.constant 0 : index
    %c0_29 = arith.constant 0 : index
    %81 = vector.load %arg7[%c0_28, %c0_29] : memref<32x1xf32, #tpu.memory_space<vmem>>, vector<32x1xf32>
    %cst_30 = arith.constant 5.65685415 : f32
    %82 = vector.broadcast %cst_30 : f32 to vector<32x1xf32>
    %83 = arith.mulf %81, %82 : vector<32x1xf32>
    %84 = vector.broadcast %83 : vector<32x1xf32> to vector<32x256xf32>
    %85 = arith.mulf %80, %84 : vector<32x256xf32>
    %c0_31 = arith.constant 0 : index
    %c0_32 = arith.constant 0 : index
    %86 = vector.load %arg8[%c0_31, %c0_32] : memref<128x32xf32, #tpu.memory_space<vmem>>, vector<128x32xf32>
    %87 = arith.truncf %86 : vector<128x32xf32> to vector<128x32xbf16>
    %88 = arith.truncf %85 : vector<32x256xf32> to vector<32x256xbf16>
    %cst_33 = arith.constant dense<0.000000e+00> : vector<128x256xf32>
    %89 = tpu.matmul %87, %88, %cst_33 {dimension_numbers = #tpu.dot_dimension_numbers<[1], [0], [0], [1], [0, 0, 1, 1], [], []>} : vector<128x32xbf16>, vector<32x256xbf16>, vector<128x256xf32> -> vector<128x256xf32>
    %c0_34 = arith.constant 0 : index
    %c0_35 = arith.constant 0 : index
    %90 = vector.load %arg9[%c0_34, %c0_35] : memref<128x1xf32, #tpu.memory_space<vmem>>, vector<128x1xf32>
    %91 = vector.broadcast %90 : vector<128x1xf32> to vector<128x256xf32>
    %92 = arith.addf %89, %91 : vector<128x256xf32>
    %cst_36 = arith.constant 5.000000e-01 : f32
    %93 = vector.broadcast %cst_36 : f32 to vector<128x256xf32>
    %94 = arith.mulf %93, %92 : vector<128x256xf32>
    %cst_37 = arith.constant 0.707106769 : f32
    %95 = vector.broadcast %cst_37 : f32 to vector<128x256xf32>
    %96 = arith.mulf %92, %95 : vector<128x256xf32>
    %cst_38 = arith.constant 0.000000e+00 : f32
    %97 = vector.broadcast %cst_38 : f32 to vector<128x256xf32>
    %98 = arith.cmpf oge, %96, %97 : vector<128x256xf32>
    %cst_39 = arith.constant 1.000000e+00 : f32
    %cst_40 = arith.constant -1.000000e+00 : f32
    %99 = vector.broadcast %cst_39 : f32 to vector<128x256xf32>
    %100 = vector.broadcast %cst_40 : f32 to vector<128x256xf32>
    %101 = arith.select %98, %99, %100 : vector<128x256xi1>, vector<128x256xf32>
    %102 = math.absf %96 : vector<128x256xf32>
    %cst_41 = arith.constant 0.327591091 : f32
    %103 = vector.broadcast %cst_41 : f32 to vector<128x256xf32>
    %104 = arith.mulf %103, %102 : vector<128x256xf32>
    %cst_42 = arith.constant 1.000000e+00 : f32
    %105 = vector.broadcast %cst_42 : f32 to vector<128x256xf32>
    %106 = arith.addf %105, %104 : vector<128x256xf32>
    %cst_43 = arith.constant 1.000000e+00 : f32
    %107 = vector.broadcast %cst_43 : f32 to vector<128x256xf32>
    %108 = arith.divf %107, %106 : vector<128x256xf32>
    %cst_44 = arith.constant 1.06140542 : f32
    %109 = vector.broadcast %cst_44 : f32 to vector<128x256xf32>
    %110 = arith.mulf %109, %108 : vector<128x256xf32>
    %cst_45 = arith.constant -1.45315206 : f32
    %111 = vector.broadcast %cst_45 : f32 to vector<128x256xf32>
    %112 = arith.addf %110, %111 : vector<128x256xf32>
    %113 = arith.mulf %112, %108 : vector<128x256xf32>
    %cst_46 = arith.constant 1.42141378 : f32
    %114 = vector.broadcast %cst_46 : f32 to vector<128x256xf32>
    %115 = arith.addf %113, %114 : vector<128x256xf32>
    %116 = arith.mulf %115, %108 : vector<128x256xf32>
    %cst_47 = arith.constant -0.284496725 : f32
    %117 = vector.broadcast %cst_47 : f32 to vector<128x256xf32>
    %118 = arith.addf %116, %117 : vector<128x256xf32>
    %119 = arith.mulf %118, %108 : vector<128x256xf32>
    %cst_48 = arith.constant 0.254829586 : f32
    %120 = vector.broadcast %cst_48 : f32 to vector<128x256xf32>
    %121 = arith.addf %119, %120 : vector<128x256xf32>
    %122 = arith.mulf %121, %108 : vector<128x256xf32>
    %cst_49 = arith.constant 0.000000e+00 : f32
    %123 = vector.broadcast %cst_49 : f32 to vector<128x256xf32>
    %124 = arith.subf %123, %102 : vector<128x256xf32>
    %125 = arith.mulf %124, %102 : vector<128x256xf32>
    %126 = math.exp %125 : vector<128x256xf32>
    %127 = arith.mulf %122, %126 : vector<128x256xf32>
    %cst_50 = arith.constant 1.000000e+00 : f32
    %128 = vector.broadcast %cst_50 : f32 to vector<128x256xf32>
    %129 = arith.subf %128, %127 : vector<128x256xf32>
    %130 = arith.mulf %101, %129 : vector<128x256xf32>
    %cst_51 = arith.constant 1.000000e+00 : f32
    %131 = vector.broadcast %cst_51 : f32 to vector<128x256xf32>
    %132 = arith.addf %131, %130 : vector<128x256xf32>
    %133 = arith.mulf %94, %132 : vector<128x256xf32>
    %c0_52 = arith.constant 0 : index
    %c0_53 = arith.constant 0 : index
    %134 = vector.load %arg10[%c0_52, %c0_53] : memref<32x128xf32, #tpu.memory_space<vmem>>, vector<32x128xf32>
    %135 = arith.truncf %134 : vector<32x128xf32> to vector<32x128xbf16>
    %136 = arith.truncf %133 : vector<128x256xf32> to vector<128x256xbf16>
    %cst_54 = arith.constant dense<0.000000e+00> : vector<32x256xf32>
    %137 = tpu.matmul %135, %136, %cst_54 {dimension_numbers = #tpu.dot_dimension_numbers<[1], [0], [0], [1], [0, 0, 1, 1], [], []>} : vector<32x128xbf16>, vector<128x256xbf16>, vector<32x256xf32> -> vector<32x256xf32>
    %c0_55 = arith.constant 0 : index
    %c0_56 = arith.constant 0 : index
    %138 = vector.load %arg11[%c0_55, %c0_56] : memref<32x1xf32, #tpu.memory_space<vmem>>, vector<32x1xf32>
    %139 = vector.broadcast %138 : vector<32x1xf32> to vector<32x256xf32>
    %140 = arith.addf %137, %139 : vector<32x256xf32>
    %141 = arith.addf %72, %140 : vector<32x256xf32>
    %c0_57 = arith.constant 0 : index
    %c0_58 = arith.constant 0 : index
    %c0_59 = arith.constant 0 : index
    %142 = vector.load %arg12[%c0_57, %c0_58, %c0_59] : memref<1x32x256xf32, #tpu.memory_space<vmem>>, vector<1x32x256xf32>
    %143 = vector.shape_cast %142 : vector<1x32x256xf32> to vector<32x256xf32>
    %144 = vector.shape_cast %141 : vector<32x256xf32> to vector<1x32x256xf32>
    tpu.vector_store %arg12[%c0_57, %c0_58, %c0_59], %144 {strides = array<i32>} : memref<1x32x256xf32, #tpu.memory_space<vmem>>, vector<1x32x256xf32>,
    return
  }
  func.func @transform_0(%arg0: i32) -> (i32, i32, i32) {
    %c0_i32 = arith.constant 0 : i32
    %c0_i32_0 = arith.constant 0 : i32
    %c0_i32_1 = arith.constant 0 : i32
    return %arg0, %c0_i32, %c0_i32_0 : i32, i32, i32
  }
  func.func @transform_1(%arg0: i32) -> (i32, i32) {
    %c0_i32 = arith.constant 0 : i32
    %c0_i32_0 = arith.constant 0 : i32
    %c0_i32_1 = arith.constant 0 : i32
    return %c0_i32, %c0_i32_0 : i32, i32
  }
  func.func @transform_2(%arg0: i32) -> (i32, i32) {
    %c0_i32 = arith.constant 0 : i32
    %c0_i32_0 = arith.constant 0 : i32
    %c0_i32_1 = arith.constant 0 : i32
    return %c0_i32, %c0_i32_0 : i32, i32
  }
  func.func @transform_3(%arg0: i32) -> (i32, i32) {
    %c0_i32 = arith.constant 0 : i32
    %c0_i32_0 = arith.constant 0 : i32
    %c0_i32_1 = arith.constant 0 : i32
    return %c0_i32, %c0_i32_0 : i32, i32
  }
  func.func @transform_4(%arg0: i32) -> (i32, i32) {
    %c0_i32 = arith.constant 0 : i32
    %c0_i32_0 = arith.constant 0 : i32
    %c0_i32_1 = arith.constant 0 : i32
    return %c0_i32, %c0_i32_0 : i32, i32
  }
  func.func @transform_5(%arg0: i32) -> (i32, i32) {
    %c0_i32 = arith.constant 0 : i32
    %c0_i32_0 = arith.constant 0 : i32
    %c0_i32_1 = arith.constant 0 : i32
    return %c0_i32, %c0_i32_0 : i32, i32
  }
  func.func @transform_6(%arg0: i32) -> (i32, i32) {
    %c0_i32 = arith.constant 0 : i32
    %c0_i32_0 = arith.constant 0 : i32
    %c0_i32_1 = arith.constant 0 : i32
    return %c0_i32, %c0_i32_0 : i32, i32
  }
  func.func @transform_7(%arg0: i32) -> (i32, i32) {
    %c0_i32 = arith.constant 0 : i32
    %c0_i32_0 = arith.constant 0 : i32
    %c0_i32_1 = arith.constant 0 : i32
    return %c0_i32, %c0_i32_0 : i32, i32
  }
  func.func @transform_8(%arg0: i32) -> (i32, i32) {
    %c0_i32 = arith.constant 0 : i32
    %c0_i32_0 = arith.constant 0 : i32
    %c0_i32_1 = arith.constant 0 : i32
    return %c0_i32, %c0_i32_0 : i32, i32
  }
  func.func @transform_9(%arg0: i32) -> (i32, i32) {
    %c0_i32 = arith.constant 0 : i32
    %c0_i32_0 = arith.constant 0 : i32
    %c0_i32_1 = arith.constant 0 : i32
    return %c0_i32, %c0_i32_0 : i32, i32
  }
  func.func @transform_10(%arg0: i32) -> (i32, i32) {
    %c0_i32 = arith.constant 0 : i32
    %c0_i32_0 = arith.constant 0 : i32
    %c0_i32_1 = arith.constant 0 : i32
    return %c0_i32, %c0_i32_0 : i32, i32
  }
  func.func @transform_11(%arg0: i32) -> (i32, i32, i32) {
    %c0_i32 = arith.constant 0 : i32
    %c0_i32_0 = arith.constant 0 : i32
    %c0_i32_1 = arith.constant 0 : i32
    return %arg0, %c0_i32, %c0_i32_0 : i32, i32, i32
  }
}

</mosaic_0001>

<llo_original>
// kernel: tpu_custom_call.1
$region0: #{tpu_custom_call.1}
  #allocation0 [shape = 'u32[]', space=smem, size = 0x4, offset = 0x4, fixed_abs, tag = 'smem constant byte address 0x4 - core index']
  #allocation1 [shape = 'u32[144,128]{1,0:T(1,128)}', space=vmem, size = 0x12000, scoped, tag = 'internal scratch']
  %s0 = inlined_call_operand.vmem [shape: f32[2,32,256], index: 0, kind: input, shape index: {}]
  %s1 = inlined_call_operand.vmem [shape: f32[32,1], index: 1, kind: input, shape index: {}]
  %s2 = inlined_call_operand.vmem [shape: f32[192,32], index: 2, kind: input, shape index: {}]
  %s3 = inlined_call_operand.vmem [shape: f32[32,64], index: 3, kind: input, shape index: {}]
  %s4 = inlined_call_operand.vmem [shape: f32[32,1], index: 4, kind: input, shape index: {}]
  %s5 = inlined_call_operand.vmem [shape: f32[32,1], index: 5, kind: input, shape index: {}]
  %s6 = inlined_call_operand.vmem [shape: f32[32,1], index: 6, kind: input, shape index: {}]
  %s7 = inlined_call_operand.vmem [shape: f32[128,32], index: 7, kind: input, shape index: {}]
  %s8 = inlined_call_operand.vmem [shape: f32[128,1], index: 8, kind: input, shape index: {}]
  %s9 = inlined_call_operand.vmem [shape: f32[32,128], index: 9, kind: input, shape index: {}]
  %s10 = inlined_call_operand.vmem [shape: f32[32,1], index: 10, kind: input, shape index: {}]
  %s11 = inlined_call_operand.hbm [shape: f32[2,32,256], index: 11, kind: output, shape index: {}]
  %s12 = sld [smem:[#allocation0]]
  $region77: #{tpu_custom_call.1} parent=0
    _
  %s14 = ssub.s32 1, %s12
  %s15 = scalar_select 0, %s14, %s12
  $region1: #{tpu_custom_call.1} parent=0
    #allocation2 [shape = 'u8[65536]{0}', space=vmem, size = 0x10000, scoped, tag = 'output window, operand 0']
    #allocation3 [shape = 's32[2]{0}', space=sflag, size = 0x8, scoped, tag = 'scoped memory for tpu_custom_call.1']
    %16 = vsyncpa [#allocation3], 0
    %s17 = scalar_lea.sflag [#allocation3], 1
    %18 = vsyncpa %s17, 0
    loop: start=0, step=1, limit=4
    $region2: #{tpu_custom_call.1} parent=1 // loop_pre_header
      _
    $region3: #{tpu_custom_call.1} parent=1 // loop_header
      %s20 = sphi 0, %s24
      %p21 = scmp.ge.s32.totalorder %s20, 4
      %s30 = sphi 0, %s32
      %s33 = sphi 0, %s30
      %s34 = sphi 0, %s33
      %s50 = sphi 0, %s34
      %s54 = sphi 0, %s54
      %s56 = sphi 0, %s54
      %s57 = sphi 0, %s56
      %s71 = sphi 0, %s57
      %s75 = sphi 0, %s75
      %s77 = sphi 0, %s75
      %s78 = sphi 0, %s77
      %s92 = sphi 0, %s78
      %s96 = sphi 0, %s96
      %s98 = sphi 0, %s96
      %s99 = sphi 0, %s98
      %s113 = sphi 0, %s99
      %s117 = sphi 0, %s117
      %s119 = sphi 0, %s117
      %s120 = sphi 0, %s119
      %s134 = sphi 0, %s120
      %s138 = sphi 0, %s138
      %s140 = sphi 0, %s138
      %s141 = sphi 0, %s140
      %s155 = sphi 0, %s141
      %s159 = sphi 0, %s159
      %s161 = sphi 0, %s159
      %s162 = sphi 0, %s161
      %s176 = sphi 0, %s162
      %s180 = sphi 0, %s180
      %s182 = sphi 0, %s180
      %s183 = sphi 0, %s182
      %s197 = sphi 0, %s183
      %s201 = sphi 0, %s201
      %s203 = sphi 0, %s201
      %s204 = sphi 0, %s203
      %s218 = sphi 0, %s204
      %s222 = sphi 0, %s222
      %s224 = sphi 0, %s222
      %s225 = sphi 0, %s224
      %s239 = sphi 0, %s225
      %s243 = sphi 0, %s243
      %s245 = sphi 0, %s243
      %s246 = sphi 0, %s245
      %s260 = sphi 0, %s246
      %s266 = sphi 0, %s268
      %s269 = sphi 0, %s266
      %s270 = sphi 0, %s269
      %s286 = sphi 0, %s270
    $region4: #{tpu_custom_call.1} parent=1 // loop_header_branch
      %23 = sbr.rel (%p21) target = $region8
    $region5: #{tpu_custom_call.1} parent=1 // loop_body
      %s25 = ssub.s32 %s20, 1
      %s26 = ssub.s32 %s20, 2
      %s27 = sadd.s32 %s20, 1
      %s28 = ssub.s32 %s20, %s27
      %p29 = scmp.eq.s32.totalorder %s28, 0
      %s31 = sadd.s32 %s30, 1
      %s32 = scalar_select %p29, %s30, %s31
      %p35 = pneg %p29
      %p36 = scmp.eq.s32.totalorder %s20, 1
      %p37 = por %p35, %p36
      %p38 = scmp.ne.s32.totalorder %s30, %s33
      %p39 = scmp.eq.s32.totalorder %s20, 0
      %p40 = por %p38, %p39
      %p41 = scmp.ne.s32.totalorder %s30, %s33
      %p42 = scmp.eq.s32.totalorder %s25, 1
      %p43 = por %p41, %p42
      %p44 = scmp.ne.s32.totalorder %s33, %s34
      %p45 = scmp.eq.s32.totalorder %s25, 0
      %p46 = por %p44, %p45
      %p47 = scmp.ne.s32.totalorder %s33, %s34
      %p48 = scmp.eq.s32.totalorder %s26, 1
      %p49 = por %p47, %p48
      %p51 = scmp.ne.s32.totalorder %s34, %s50
      %p52 = scmp.eq.s32.totalorder %s26, 0
      %p53 = por %p51, %p52
      %s55 = sadd.s32 %s54, 1
      %p58 = scmp.eq.s32.totalorder %s20, 1
      %p59 = scmp.ne.s32.totalorder %s54, %s56
      %p60 = scmp.eq.s32.totalorder %s20, 0
      %p61 = por %p59, %p60
      %p62 = scmp.ne.s32.totalorder %s54, %s56
      %p63 = scmp.eq.s32.totalorder %s25, 1
      %p64 = por %p62, %p63
      %p65 = scmp.ne.s32.totalorder %s56, %s57
      %p66 = scmp.eq.s32.totalorder %s25, 0
      %p67 = por %p65, %p66
      %p68 = scmp.ne.s32.totalorder %s56, %s57
      %p69 = scmp.eq.s32.totalorder %s26, 1
      %p70 = por %p68, %p69
      %p72 = scmp.ne.s32.totalorder %s57, %s71
      %p73 = scmp.eq.s32.totalorder %s26, 0
      %p74 = por %p72, %p73
      %s76 = sadd.s32 %s75, 1
      %p79 = scmp.eq.s32.totalorder %s20, 1
      %p80 = scmp.ne.s32.totalorder %s75, %s77
      %p81 = scmp.eq.s32.totalorder %s20, 0
      %p82 = por %p80, %p81
      %p83 = scmp.ne.s32.totalorder %s75, %s77
      %p84 = scmp.eq.s32.totalorder %s25, 1
      %p85 = por %p83, %p84
      %p86 = scmp.ne.s32.totalorder %s77, %s78
      %p87 = scmp.eq.s32.totalorder %s25, 0
      %p88 = por %p86, %p87
      %p89 = scmp.ne.s32.totalorder %s77, %s78
      %p90 = scmp.eq.s32.totalorder %s26, 1
      %p91 = por %p89, %p90
      %p93 = scmp.ne.s32.totalorder %s78, %s92
      %p94 = scmp.eq.s32.totalorder %s26, 0
      %p95 = por %p93, %p94
      %s97 = sadd.s32 %s96, 1
      %p100 = scmp.eq.s32.totalorder %s20, 1
      %p101 = scmp.ne.s32.totalorder %s96, %s98
      %p102 = scmp.eq.s32.totalorder %s20, 0
      %p103 = por %p101, %p102
      %p104 = scmp.ne.s32.totalorder %s96, %s98
      %p105 = scmp.eq.s32.totalorder %s25, 1
      %p106 = por %p104, %p105
      %p107 = scmp.ne.s32.totalorder %s98, %s99
      %p108 = scmp.eq.s32.totalorder %s25, 0
      %p109 = por %p107, %p108
      %p110 = scmp.ne.s32.totalorder %s98, %s99
      %p111 = scmp.eq.s32.totalorder %s26, 1
      %p112 = por %p110, %p111
      %p114 = scmp.ne.s32.totalorder %s99, %s113
      %p115 = scmp.eq.s32.totalorder %s26, 0
      %p116 = por %p114, %p115
      %s118 = sadd.s32 %s117, 1
      %p121 = scmp.eq.s32.totalorder %s20, 1
      %p122 = scmp.ne.s32.totalorder %s117, %s119
      %p123 = scmp.eq.s32.totalorder %s20, 0
      %p124 = por %p122, %p123
      %p125 = scmp.ne.s32.totalorder %s117, %s119
      %p126 = scmp.eq.s32.totalorder %s25, 1
      %p127 = por %p125, %p126
      %p128 = scmp.ne.s32.totalorder %s119, %s120
      %p129 = scmp.eq.s32.totalorder %s25, 0
      %p130 = por %p128, %p129
      %p131 = scmp.ne.s32.totalorder %s119, %s120
      %p132 = scmp.eq.s32.totalorder %s26, 1
      %p133 = por %p131, %p132
      %p135 = scmp.ne.s32.totalorder %s120, %s134
      %p136 = scmp.eq.s32.totalorder %s26, 0
      %p137 = por %p135, %p136
      %s139 = sadd.s32 %s138, 1
      %p142 = scmp.eq.s32.totalorder %s20, 1
      %p143 = scmp.ne.s32.totalorder %s138, %s140
      %p144 = scmp.eq.s32.totalorder %s20, 0
      %p145 = por %p143, %p144
      %p146 = scmp.ne.s32.totalorder %s138, %s140
      %p147 = scmp.eq.s32.totalorder %s25, 1
      %p148 = por %p146, %p147
      %p149 = scmp.ne.s32.totalorder %s140, %s141
      %p150 = scmp.eq.s32.totalorder %s25, 0
      %p151 = por %p149, %p150
      %p152 = scmp.ne.s32.totalorder %s140, %s141
      %p153 = scmp.eq.s32.totalorder %s26, 1
      %p154 = por %p152, %p153
      %p156 = scmp.ne.s32.totalorder %s141, %s155
      %p157 = scmp.eq.s32.totalorder %s26, 0
      %p158 = por %p156, %p157
      %s160 = sadd.s32 %s159, 1
      %p163 = scmp.eq.s32.totalorder %s20, 1
      %p164 = scmp.ne.s32.totalorder %s159, %s161
      %p165 = scmp.eq.s32.totalorder %s20, 0
      %p166 = por %p164, %p165
      %p167 = scmp.ne.s32.totalorder %s159, %s161
      %p168 = scmp.eq.s32.totalorder %s25, 1
      %p169 = por %p167, %p168
      %p170 = scmp.ne.s32.totalorder %s161, %s162
      %p171 = scmp.eq.s32.totalorder %s25, 0
      %p172 = por %p170, %p171
      %p173 = scmp.ne.s32.totalorder %s161, %s162
      %p174 = scmp.eq.s32.totalorder %s26, 1
      %p175 = por %p173, %p174
      %p177 = scmp.ne.s32.totalorder %s162, %s176
      %p178 = scmp.eq.s32.totalorder %s26, 0
      %p179 = por %p177, %p178
      %s181 = sadd.s32 %s180, 1
      %p184 = scmp.eq.s32.totalorder %s20, 1
      %p185 = scmp.ne.s32.totalorder %s180, %s182
      %p186 = scmp.eq.s32.totalorder %s20, 0
      %p187 = por %p185, %p186
      %p188 = scmp.ne.s32.totalorder %s180, %s182
      %p189 = scmp.eq.s32.totalorder %s25, 1
      %p190 = por %p188, %p189
      %p191 = scmp.ne.s32.totalorder %s182, %s183
      %p192 = scmp.eq.s32.totalorder %s25, 0
      %p193 = por %p191, %p192
      %p194 = scmp.ne.s32.totalorder %s182, %s183
      %p195 = scmp.eq.s32.totalorder %s26, 1
      %p196 = por %p194, %p195
      %p198 = scmp.ne.s32.totalorder %s183, %s197
      %p199 = scmp.eq.s32.totalorder %s26, 0
      %p200 = por %p198, %p199
      %s202 = sadd.s32 %s201, 1
      %p205 = scmp.eq.s32.totalorder %s20, 1
      %p206 = scmp.ne.s32.totalorder %s201, %s203
      %p207 = scmp.eq.s32.totalorder %s20, 0
      %p208 = por %p206, %p207
      %p209 = scmp.ne.s32.totalorder %s201, %s203
      %p210 = scmp.eq.s32.totalorder %s25, 1
      %p211 = por %p209, %p210
      %p212 = scmp.ne.s32.totalorder %s203, %s204
      %p213 = scmp.eq.s32.totalorder %s25, 0
      %p214 = por %p212, %p213
      %p215 = scmp.ne.s32.totalorder %s203, %s204
      %p216 = scmp.eq.s32.totalorder %s26, 1
      %p217 = por %p215, %p216
      %p219 = scmp.ne.s32.totalorder %s204, %s218
      %p220 = scmp.eq.s32.totalorder %s26, 0
      %p221 = por %p219, %p220
      %s223 = sadd.s32 %s222, 1
      %p226 = scmp.eq.s32.totalorder %s20, 1
      %p227 = scmp.ne.s32.totalorder %s222, %s224
      %p228 = scmp.eq.s32.totalorder %s20, 0
      %p229 = por %p227, %p228
      %p230 = scmp.ne.s32.totalorder %s222, %s224
      %p231 = scmp.eq.s32.totalorder %s25, 1
      %p232 = por %p230, %p231
      %p233 = scmp.ne.s32.totalorder %s224, %s225
      %p234 = scmp.eq.s32.totalorder %s25, 0
      %p235 = por %p233, %p234
      %p236 = scmp.ne.s32.totalorder %s224, %s225
      %p237 = scmp.eq.s32.totalorder %s26, 1
      %p238 = por %p236, %p237
      %p240 = scmp.ne.s32.totalorder %s225, %s239
      %p241 = scmp.eq.s32.totalorder %s26, 0
      %p242 = por %p240, %p241
      %s244 = sadd.s32 %s243, 1
      %p247 = scmp.eq.s32.totalorder %s20, 1
      %p248 = scmp.ne.s32.totalorder %s243, %s245
      %p249 = scmp.eq.s32.totalorder %s20, 0
      %p250 = por %p248, %p249
      %p251 = scmp.ne.s32.totalorder %s243, %s245
      %p252 = scmp.eq.s32.totalorder %s25, 1
      %p253 = por %p251, %p252
      %p254 = scmp.ne.s32.totalorder %s245, %s246
      %p255 = scmp.eq.s32.totalorder %s25, 0
      %p256 = por %p254, %p255
      %p257 = scmp.ne.s32.totalorder %s245, %s246
      %p258 = scmp.eq.s32.totalorder %s26, 1
      %p259 = por %p257, %p258
      %p261 = scmp.ne.s32.totalorder %s246, %s260
      %p262 = scmp.eq.s32.totalorder %s26, 0
      %p263 = por %p261, %p262
      %s264 = ssub.s32 %s20, %s27
      %p265 = scmp.eq.s32.totalorder %s264, 0
      %s267 = sadd.s32 %s266, 1
      %s268 = scalar_select %p265, %s266, %s267
      %p271 = pneg %p265
      %p272 = scmp.eq.s32.totalorder %s20, 1
      %p273 = por %p271, %p272
      %p274 = scmp.ne.s32.totalorder %s266, %s269
      %p275 = scmp.eq.s32.totalorder %s20, 0
      %p276 = por %p274, %p275
      %p277 = scmp.ne.s32.totalorder %s266, %s269
      %p278 = scmp.eq.s32.totalorder %s25, 1
      %p279 = por %p277, %p278
      %p280 = scmp.ne.s32.totalorder %s269, %s270
      %p281 = scmp.eq.s32.totalorder %s25, 0
      %p282 = por %p280, %p281
      %p283 = scmp.ne.s32.totalorder %s269, %s270
      %p284 = scmp.eq.s32.totalorder %s26, 1
      %p285 = por %p283, %p284
      %p287 = scmp.ne.s32.totalorder %s270, %s286
      %p288 = scmp.eq.s32.totalorder %s26, 0
      %p289 = por %p287, %p288
      %p290 = scmp.le.s32.totalorder 1, %s20
      %p291 = scmp.lt.s32.totalorder %s20, 3
      %p292 = pnand %p290, %p291
      %p293 = pneg %p292
      // Predicated region
      $region9: #{tpu_custom_call.1} parent=5 // pred_check
        _
      $region10: #{tpu_custom_call.1} parent=5 // pred_check_branch
        %295 = sbr.rel (%p292) target = $region12
      $region11: #{tpu_custom_call.1} parent=5 // pred_region
        %s296 = ssub.s32 %s20, 1
        // Predicated region
        $region13: #{tpu_custom_call.1} parent=11 // pred_check
          %p297 = pneg %p67
        $region14: #{tpu_custom_call.1} parent=11 // pred_check_branch
          %299 = sbr.rel (%p297) target = $region16
        $region15: #{tpu_custom_call.1} parent=11 // pred_region
          _
        $region16: #{tpu_custom_call.1} parent=11 // pred_fallthru
          _
        // Predicated region
        $region17: #{tpu_custom_call.1} parent=11 // pred_check
          %p300 = pneg %p88
        $region18: #{tpu_custom_call.1} parent=11 // pred_check_branch
          %302 = sbr.rel (%p300) target = $region20
        $region19: #{tpu_custom_call.1} parent=11 // pred_region
          _
        $region20: #{tpu_custom_call.1} parent=11 // pred_fallthru
          _
        // Predicated region
        $region21: #{tpu_custom_call.1} parent=11 // pred_check
          %p303 = pneg %p109
        $region22: #{tpu_custom_call.1} parent=11 // pred_check_branch
          %305 = sbr.rel (%p303) target = $region24
        $region23: #{tpu_custom_call.1} parent=11 // pred_region
          _
        $region24: #{tpu_custom_call.1} parent=11 // pred_fallthru
          _
        // Predicated region
        $region25: #{tpu_custom_call.1} parent=11 // pred_check
          %p306 = pneg %p130
        $region26: #{tpu_custom_call.1} parent=11 // pred_check_branch
          %308 = sbr.rel (%p306) target = $region28
        $region27: #{tpu_custom_call.1} parent=11 // pred_region
          _
        $region28: #{tpu_custom_call.1} parent=11 // pred_fallthru
          _
        // Predicated region
        $region29: #{tpu_custom_call.1} parent=11 // pred_check
          %p309 = pneg %p151
        $region30: #{tpu_custom_call.1} parent=11 // pred_check_branch
          %311 = sbr.rel (%p309) target = $region32
        $region31: #{tpu_custom_call.1} parent=11 // pred_region
          _
        $region32: #{tpu_custom_call.1} parent=11 // pred_fallthru
          _
        // Predicated region
        $region33: #{tpu_custom_call.1} parent=11 // pred_check
          %p312 = pneg %p172
        $region34: #{tpu_custom_call.1} parent=11 // pred_check_branch
          %314 = sbr.rel (%p312) target = $region36
        $region35: #{tpu_custom_call.1} parent=11 // pred_region
          _
        $region36: #{tpu_custom_call.1} parent=11 // pred_fallthru
          _
        // Predicated region
        $region37: #{tpu_custom_call.1} parent=11 // pred_check
          %p315 = pneg %p193
        $region38: #{tpu_custom_call.1} parent=11 // pred_check_branch
          %317 = sbr.rel (%p315) target = $region40
        $region39: #{tpu_custom_call.1} parent=11 // pred_region
          _
        $region40: #{tpu_custom_call.1} parent=11 // pred_fallthru
          _
        // Predicated region
        $region41: #{tpu_custom_call.1} parent=11 // pred_check
          %p318 = pneg %p214
        $region42: #{tpu_custom_call.1} parent=11 // pred_check_branch
          %320 = sbr.rel (%p318) target = $region44
        $region43: #{tpu_custom_call.1} parent=11 // pred_region
          _
        $region44: #{tpu_custom_call.1} parent=11 // pred_fallthru
          _
        // Predicated region
        $region45: #{tpu_custom_call.1} parent=11 // pred_check
          %p321 = pneg %p235
        $region46: #{tpu_custom_call.1} parent=11 // pred_check_branch
          %323 = sbr.rel (%p321) target = $region48
        $region47: #{tpu_custom_call.1} parent=11 // pred_region
          _
        $region48: #{tpu_custom_call.1} parent=11 // pred_fallthru
          _
        // Predicated region
        $region49: #{tpu_custom_call.1} parent=11 // pred_check
          %p324 = pneg %p256
        $region50: #{tpu_custom_call.1} parent=11 // pred_check_branch
          %326 = sbr.rel (%p324) target = $region52
        $region51: #{tpu_custom_call.1} parent=11 // pred_region
          _
        $region52: #{tpu_custom_call.1} parent=11 // pred_fallthru
          _
      $region12: #{tpu_custom_call.1} parent=5 // pred_fallthru
        _
      %p327 = scmp.lt.s32.totalorder %s20, 2
      // Predicated region
      $region53: #{tpu_custom_call.1} parent=5 // pred_check
        %p328 = pneg %p327
      $region54: #{tpu_custom_call.1} parent=5 // pred_check_branch
        %330 = sbr.rel (%p328) target = $region56
      $region55: #{tpu_custom_call.1} parent=5 // pred_region
        // Predicated region
        $region57: #{tpu_custom_call.1} parent=55 // pred_check
          %p331 = pneg %p40
        $region58: #{tpu_custom_call.1} parent=55 // pred_check_branch
          %333 = sbr.rel (%p331) target = $region60
        $region59: #{tpu_custom_call.1} parent=55 // pred_region
          %p334 = scmp.lt.s32.totalorder %s20, 1
          %s335 = scalar_select %p334, %s20, 1
          %s336 = smul.addr %s335, 8
          %s337 = smul.addr %s336, 8
          %s338 = scalar_lea.vmem %s0, %s337
        $region60: #{tpu_custom_call.1} parent=55 // pred_fallthru
          _
      $region56: #{tpu_custom_call.1} parent=5 // pred_fallthru
        _
      %p339 = scmp.le.s32.totalorder 1, %s20
      %p340 = scmp.lt.s32.totalorder %s20, 3
      %p341 = pnand %p339, %p340
      %p342 = pneg %p341
      // Predicated region
      $region61: #{tpu_custom_call.1} parent=5 // pred_check
        _
      $region62: #{tpu_custom_call.1} parent=5 // pred_check_branch
        %344 = sbr.rel (%p341) target = $region64
      $region63: #{tpu_custom_call.1} parent=5 // pred_region
        %s345 = ssub.s32 %s20, 1
        %p346 = scmp.lt.s32.totalorder %s25, 1
        %s347 = scalar_select %p346, %s25, 1
        %s348 = smul.addr %s347, 8
        %s349 = smul.addr %s348, 8
        %s350 = scalar_lea.vmem %s0, %s349
        %p351 = pneg %p46
        %p352 = pneg %p43
        %p353 = pneg %p67
        %p354 = pneg %p64
        %p355 = pneg %p88
        %p356 = pneg %p85
        %p357 = pneg %p109
        %p358 = pneg %p106
        %p359 = pneg %p130
        %p360 = pneg %p127
        %p361 = pneg %p151
        %p362 = pneg %p148
        %p363 = pneg %p172
        %p364 = pneg %p169
        %p365 = pneg %p193
        %p366 = pneg %p190
        %p367 = pneg %p214
        %p368 = pneg %p211
        %p369 = pneg %p235
        %p370 = pneg %p232
        %p371 = pneg %p256
        %p372 = pneg %p253
        %p373 = pneg %p282
        %p374 = pneg %p279
        %s375 = sand.u32 %s269, 1
        %s376 = scalar_lea.sflag [#allocation3], %s375
        %s377 = sand.u32 %s269, 1
        %s378 = smul.addr %s377, 64
        %s379 = scalar_lea.vmem [#allocation2], %s378
        %p380 = scmp.lt.s32.totalorder %s25, 1
        %s381 = scalar_select %p380, %s25, 1
        %s382 = smul.addr %s381, 8
        %s383 = smul.addr %s382, 8
        %s384 = scalar_lea.vmem %s0, %s383
        %v386 = vld [vmem:[%s384] sm:$0xff]
        %v387 = vld [vmem:[%s384 + $0x8] sm:$0xff]
        %v388 = vld [vmem:[%s384 + $0x10] sm:$0xff]
        %v389 = vld [vmem:[%s384 + $0x18] sm:$0xff]
        %v390 = vld [vmem:[%s384 + $0x20] sm:$0xff]
        %v391 = vld [vmem:[%s384 + $0x28] sm:$0xff]
        %v392 = vld [vmem:[%s384 + $0x30] sm:$0xff]
        %v393 = vld [vmem:[%s384 + $0x38] sm:$0xff]
        %v394 = vmul.f32 %v386, %v386
        %v395 = vmul.f32 %v387, %v387
        %v396 = vmul.f32 %v388, %v388
        %v397 = vmul.f32 %v389, %v389
        %v398 = vmul.f32 %v390, %v390
        %v399 = vmul.f32 %v391, %v391
        %v400 = vmul.f32 %v392, %v392
        %v401 = vmul.f32 %v393, %v393
        %v402 = vadd.f32 %v394, %v396
        %v403 = vadd.f32 %v402, %v398
        %v404 = vadd.f32 %v403, %v400
        %v405 = vrot.slane %v404, 4
        %v406 = vadd.f32 %v404, %v405
        %v407 = vrot.slane %v406, 2
        %v408 = vadd.f32 %v406, %v407
        %v409 = vrot.slane %v408, 1
        %v410 = vadd.f32 %v408, %v409
        %v411 = vadd.f32 %v395, %v397
        %v412 = vadd.f32 %v411, %v399
        %v413 = vadd.f32 %v412, %v401
        %v414 = vrot.slane %v413, 4
        %v415 = vadd.f32 %v413, %v414
        %v416 = vrot.slane %v415, 2
        %v417 = vadd.f32 %v415, %v416
        %v418 = vrot.slane %v417, 1
        %v419 = vadd.f32 %v417, %v418
        %v420 = vrsqrt.pop %v410
        %v421 = vmul.f32 %v410, %v420
        %vm422 = vcmp.eq.f32.partialorder %v410, inf
        %v423 = vsel %vm422, %v410, %v421
        %vm424 = vcmp.eq.f32.partialorder %v410, 0.0
        %v425 = vand.u32 %v410, 2147483648
        %v426 = vsel %vm424, %v425, %v423
        %v427 = vrsqrt.pop %v419
        %v428 = vmul.f32 %v419, %v427
        %vm429 = vcmp.eq.f32.partialorder %v419, inf
        %v430 = vsel %vm429, %v419, %v428
        %vm431 = vcmp.eq.f32.partialorder %v419, 0.0
        %v432 = vand.u32 %v419, 2147483648
        %v433 = vsel %vm431, %v432, %v430
        %v434 = vmax.f32 %v426, 1e-12
        %v435 = vmax.f32 %v433, 1e-12
        %v436 = vrcp.pop %v434
        %v437 = vmul.f32 %v386, %v436
        %v438 = vrcp.pop %v435
        %v439 = vmul.f32 %v387, %v438
        %v440 = vmul.f32 %v388, %v436
        %v441 = vmul.f32 %v389, %v438
        %v442 = vmul.f32 %v390, %v436
        %v443 = vmul.f32 %v391, %v438
        %v444 = vmul.f32 %v392, %v436
        %v445 = vmul.f32 %v393, %v438
        %v446 = vld [vmem:[%s1] sm:$0xff]
        %v447 = vld [vmem:[%s1 + $0x8] sm:$0xff]
        %v448 = vld [vmem:[%s1 + $0x10] sm:$0xff]
        %v449 = vld [vmem:[%s1 + $0x18] sm:$0xff]
        %v450 = vmul.f32 %v446, 5.656854
        %v451 = vmul.f32 %v447, 5.656854
        %v452 = vmul.f32 %v448, 5.656854
        %v453 = vmul.f32 %v449, 5.656854
        %455 = vset.pattern.permute.xlu0 0
        %456 = vperm.xlu0 %455, %v450
        %v457 = vpop.permute.xlu0 %456
        %460 = vset.pattern.permute.xlu0 0
        %461 = vperm.xlu0 %460, %v451
        %v462 = vpop.permute.xlu0 %461
        %465 = vset.pattern.permute.xlu0 0
        %466 = vperm.xlu0 %465, %v452
        %v467 = vpop.permute.xlu0 %466
        %470 = vset.pattern.permute.xlu0 0
        %471 = vperm.xlu0 %470, %v453
        %v472 = vpop.permute.xlu0 %471
        %v474 = vmul.f32 %v437, %v457
        %v475 = vmul.f32 %v439, %v457
        %v476 = vmul.f32 %v440, %v462
        %v477 = vmul.f32 %v441, %v462
        %v478 = vmul.f32 %v442, %v467
        %v479 = vmul.f32 %v443, %v467
        %v480 = vmul.f32 %v444, %v472
        %v481 = vmul.f32 %v445, %v472
        %v482 = vld [vmem:[%s2] sm:$0xff]
        %v483 = vld [vmem:[%s2 + $0x8] sm:$0xff]
        %v484 = vld [vmem:[%s2 + $0x10] sm:$0xff]
        %v485 = vld [vmem:[%s2 + $0x18] sm:$0xff]
        %v486 = vld [vmem:[%s2 + $0x20] sm:$0xff]
        %v487 = vld [vmem:[%s2 + $0x28] sm:$0xff]
        %v488 = vld [vmem:[%s2 + $0x30] sm:$0xff]
        %v489 = vld [vmem:[%s2 + $0x38] sm:$0xff]
        %v490 = vld [vmem:[%s2 + $0x40] sm:$0xff]
        %v491 = vld [vmem:[%s2 + $0x48] sm:$0xff]
        %v492 = vld [vmem:[%s2 + $0x50] sm:$0xff]
        %v493 = vld [vmem:[%s2 + $0x58] sm:$0xff]
        %v494 = vld [vmem:[%s2 + $0x60] sm:$0xff]
        %v495 = vld [vmem:[%s2 + $0x68] sm:$0xff]
        %v496 = vld [vmem:[%s2 + $0x70] sm:$0xff]
        %v497 = vld [vmem:[%s2 + $0x78] sm:$0xff]
        %v498 = vld [vmem:[%s2 + $0x80] sm:$0xff]
        %v499 = vld [vmem:[%s2 + $0x88] sm:$0xff]
        %v500 = vld [vmem:[%s2 + $0x90] sm:$0xff]
        %v501 = vld [vmem:[%s2 + $0x98] sm:$0xff]
        %v502 = vld [vmem:[%s2 + $0xa0] sm:$0xff]
        %v503 = vld [vmem:[%s2 + $0xa8] sm:$0xff]
        %v504 = vld [vmem:[%s2 + $0xb0] sm:$0xff]
        %v505 = vld [vmem:[%s2 + $0xb8] sm:$0xff]
        %v506 = vpack.c.bf16 %v483, %v482
        %v507 = vpack.c.bf16 %v485, %v484
        %v508 = vpack.c.bf16 %v487, %v486
        %v509 = vpack.c.bf16 %v489, %v488
        %v510 = vpack.c.bf16 %v491, %v490
        %v511 = vpack.c.bf16 %v493, %v492
        %v512 = vpack.c.bf16 %v495, %v494
        %v513 = vpack.c.bf16 %v497, %v496
        %v514 = vpack.c.bf16 %v499, %v498
        %v515 = vpack.c.bf16 %v501, %v500
        %v516 = vpack.c.bf16 %v503, %v502
        %v517 = vpack.c.bf16 %v505, %v504
        %v518 = vpack.c.bf16 %v476, %v474
        %v519 = vpack.c.bf16 %v477, %v475
        %v520 = vpack.c.bf16 %v480, %v478
        %v521 = vpack.c.bf16 %v481, %v479
        %vm522 = vcmask 261120
        %v524 = vsel %vm522, %v506, 0
        %v527 = vsel %vm522, %v507, 0
        %v530 = vsel %vm522, %v508, 0
        %v533 = vsel %vm522, %v509, 0
        %v536 = vsel %vm522, %v510, 0
        %v539 = vsel %vm522, %v511, 0
        %v542 = vsel %vm522, %v512, 0
        %v545 = vsel %vm522, %v513, 0
        %v548 = vsel %vm522, %v514, 0
        %v551 = vsel %vm522, %v515, 0
        %v554 = vsel %vm522, %v516, 0
        %v557 = vsel %vm522, %v517, 0
        %559 = vmatprep.subr.bf16.mxu0 0
        %560 = vmatpush1.bf16.msra.mxu0 0
        %561 = vmatprep.subr.bf16.mxu0 0
        %562 = vmatpush1.bf16.msra.mxu0 0
        %563 = vmatprep.subr.bf16.mxu0 0
        %564 = vmatpush1.bf16.msra.mxu0 0
        %565 = vmatprep.subr.bf16.mxu0 0
        %566 = vmatpush1.bf16.msra.mxu0 0
        %567 = vmatprep.subr.bf16.mxu0 0
        %568 = vmatpush1.bf16.msra.mxu0 0
        %569 = vmatprep.subr.bf16.mxu0 0
        %570 = vmatpush1.bf16.msra.mxu0 0
        %571 = vmatprep.subr.bf16.mxu0 %v521
        %572 = vmatpush1.bf16.msra.mxu0 %v520
        %573 = vmatprep.subr.bf16.mxu0 %v519
        %574 = vmatpush1.bf16.msra.mxu0 %v518
        %575 = vmatprep.subr.bf16.mxu0 0
        %576 = vmatpush2.bf16.msra.mxu0 0
        %577 = vmatprep.subr.bf16.mxu0 0
        %578 = vmatpush2.bf16.msra.mxu0 0
        %579 = vmatprep.subr.bf16.mxu0 0
        %580 = vmatpush2.bf16.msra.mxu0 0
        %581 = vmatprep.subr.bf16.mxu0 0
        %582 = vmatpush2.bf16.msra.mxu0 0
        %583 = vmatprep.subr.bf16.mxu0 0
        %584 = vmatpush2.bf16.msra.mxu0 0
        %585 = vmatprep.subr.bf16.mxu0 0
        %586 = vmatpush2.bf16.msra.mxu0 0
        %587 = vmatprep.subr.bf16.mxu0 0
        %588 = vmatpush2.bf16.msra.mxu0 0
        %589 = vmatprep.subr.bf16.mxu0 0
        %590 = vmatpush2.bf16.msra.mxu0 0
        %591 = vmatprep.mubr.bf16.mxu0 0
        %592 = vmatmul.mubr.bf16.gmra.mxu0 %v524
        %v593 = vpop.f32.mrf.mxu0
        %v594 = vadd.f32 0.0, %v593
        %v595 = vpop.f32.mrf.mxu0
        %v596 = vadd.f32 0.0, %v595
        %v597 = vpop.f32.mrf.mxu0
        %v598 = vadd.f32 0.0, %v597
        %v599 = vpop.f32.mrf.mxu0
        %v600 = vadd.f32 0.0, %v599
        %601 = vmatprep.mubr.bf16.mxu0 0
        %602 = vmatmul.mubr.bf16.gmra.mxu0 %v527
        %v603 = vpop.f32.mrf.mxu0
        %v604 = vadd.f32 0.0, %v603
        %v605 = vpop.f32.mrf.mxu0
        %v606 = vadd.f32 0.0, %v605
        %v607 = vpop.f32.mrf.mxu0
        %v608 = vadd.f32 0.0, %v607
        %v609 = vpop.f32.mrf.mxu0
        %v610 = vadd.f32 0.0, %v609
        %611 = vmatprep.mubr.bf16.mxu0 0
        %612 = vmatmul.mubr.bf16.gmra.mxu0 %v530
        %v613 = vpop.f32.mrf.mxu0
        %v614 = vadd.f32 0.0, %v613
        %v615 = vpop.f32.mrf.mxu0
        %v616 = vadd.f32 0.0, %v615
        %v617 = vpop.f32.mrf.mxu0
        %v618 = vadd.f32 0.0, %v617
        %v619 = vpop.f32.mrf.mxu0
        %v620 = vadd.f32 0.0, %v619
        %621 = vmatprep.mubr.bf16.mxu0 0
        %622 = vmatmul.mubr.bf16.gmra.mxu0 %v533
        %v623 = vpop.f32.mrf.mxu0
        %v624 = vadd.f32 0.0, %v623
        %v625 = vpop.f32.mrf.mxu0
        %v626 = vadd.f32 0.0, %v625
        %v627 = vpop.f32.mrf.mxu0
        %v628 = vadd.f32 0.0, %v627
        %v629 = vpop.f32.mrf.mxu0
        %v630 = vadd.f32 0.0, %v629
        %631 = vmatprep.mubr.bf16.mxu0 0
        %632 = vmatmul.mubr.bf16.gmra.mxu0 %v536
        %v633 = vpop.f32.mrf.mxu0
        %v634 = vadd.f32 0.0, %v633
        %v635 = vpop.f32.mrf.mxu0
        %v636 = vadd.f32 0.0, %v635
        %v637 = vpop.f32.mrf.mxu0
        %v638 = vadd.f32 0.0, %v637
        %v639 = vpop.f32.mrf.mxu0
        %v640 = vadd.f32 0.0, %v639
        %641 = vmatprep.mubr.bf16.mxu0 0
        %642 = vmatmul.mubr.bf16.gmra.mxu0 %v539
        %v643 = vpop.f32.mrf.mxu0
        %v644 = vadd.f32 0.0, %v643
        %v645 = vpop.f32.mrf.mxu0
        %v646 = vadd.f32 0.0, %v645
        %v647 = vpop.f32.mrf.mxu0
        %v648 = vadd.f32 0.0, %v647
        %v649 = vpop.f32.mrf.mxu0
        %v650 = vadd.f32 0.0, %v649
        %651 = vmatprep.mubr.bf16.mxu0 0
        %652 = vmatmul.mubr.bf16.gmra.mxu0 %v542
        %v653 = vpop.f32.mrf.mxu0
        %v654 = vadd.f32 0.0, %v653
        %v655 = vpop.f32.mrf.mxu0
        %v656 = vadd.f32 0.0, %v655
        %v657 = vpop.f32.mrf.mxu0
        %v658 = vadd.f32 0.0, %v657
        %v659 = vpop.f32.mrf.mxu0
        %v660 = vadd.f32 0.0, %v659
        %661 = vmatprep.mubr.bf16.mxu0 0
        %662 = vmatmul.mubr.bf16.gmra.mxu0 %v545
        %v663 = vpop.f32.mrf.mxu0
        %v664 = vadd.f32 0.0, %v663
        %v665 = vpop.f32.mrf.mxu0
        %v666 = vadd.f32 0.0, %v665
        %v667 = vpop.f32.mrf.mxu0
        %v668 = vadd.f32 0.0, %v667
        %v669 = vpop.f32.mrf.mxu0
        %v670 = vadd.f32 0.0, %v669
        %671 = vmatprep.mubr.bf16.mxu0 0
        %672 = vmatmul.mubr.bf16.gmra.mxu0 %v548
        %v673 = vpop.f32.mrf.mxu0
        %v674 = vadd.f32 0.0, %v673
        %v675 = vpop.f32.mrf.mxu0
        %v676 = vadd.f32 0.0, %v675
        %v677 = vpop.f32.mrf.mxu0
        %v678 = vadd.f32 0.0, %v677
        %v679 = vpop.f32.mrf.mxu0
        %v680 = vadd.f32 0.0, %v679
        %681 = vmatprep.mubr.bf16.mxu0 0
        %682 = vmatmul.mubr.bf16.gmra.mxu0 %v551
        %v683 = vpop.f32.mrf.mxu0
        %v684 = vadd.f32 0.0, %v683
        %v685 = vpop.f32.mrf.mxu0
        %v686 = vadd.f32 0.0, %v685
        %v687 = vpop.f32.mrf.mxu0
        %v688 = vadd.f32 0.0, %v687
        %v689 = vpop.f32.mrf.mxu0
        %v690 = vadd.f32 0.0, %v689
        %691 = vmatprep.mubr.bf16.mxu0 0
        %692 = vmatmul.mubr.bf16.gmra.mxu0 %v554
        %v693 = vpop.f32.mrf.mxu0
        %v694 = vadd.f32 0.0, %v693
        %v695 = vpop.f32.mrf.mxu0
        %v696 = vadd.f32 0.0, %v695
        %v697 = vpop.f32.mrf.mxu0
        %v698 = vadd.f32 0.0, %v697
        %v699 = vpop.f32.mrf.mxu0
        %v700 = vadd.f32 0.0, %v699
        %701 = vmatprep.mubr.bf16.mxu0 0
        %702 = vmatmul.mubr.bf16.gmra.mxu0 %v557
        %v703 = vpop.f32.mrf.mxu0
        %v704 = vadd.f32 0.0, %v703
        %v705 = vpop.f32.mrf.mxu0
        %v706 = vadd.f32 0.0, %v705
        %v707 = vpop.f32.mrf.mxu0
        %v708 = vadd.f32 0.0, %v707
        %v709 = vpop.f32.mrf.mxu0
        %v710 = vadd.f32 0.0, %v709
        %711 = vdwg.mxu0
        %v712 = vmax.f32 %v594, %v598
        %v713 = vrot.slane %v712, 4
        %v714 = vmax.f32 %v712, %v713
        %v715 = vrot.slane %v714, 2
        %v716 = vmax.f32 %v714, %v715
        %v717 = vrot.slane %v716, 1
        %v718 = vmax.f32 %v716, %v717
        %v719 = vmax.f32 %v596, %v600
        %v720 = vrot.slane %v719, 4
        %v721 = vmax.f32 %v719, %v720
        %v722 = vrot.slane %v721, 2
        %v723 = vmax.f32 %v721, %v722
        %v724 = vrot.slane %v723, 1
        %v725 = vmax.f32 %v723, %v724
        %v726 = vmax.f32 %v604, %v608
        %v727 = vrot.slane %v726, 4
        %v728 = vmax.f32 %v726, %v727
        %v729 = vrot.slane %v728, 2
        %v730 = vmax.f32 %v728, %v729
        %v731 = vrot.slane %v730, 1
        %v732 = vmax.f32 %v730, %v731
        %v733 = vmax.f32 %v606, %v610
        %v734 = vrot.slane %v733, 4
        %v735 = vmax.f32 %v733, %v734
        %v736 = vrot.slane %v735, 2
        %v737 = vmax.f32 %v735, %v736
        %v738 = vrot.slane %v737, 1
        %v739 = vmax.f32 %v737, %v738
        %v740 = vmax.f32 %v614, %v618
        %v741 = vrot.slane %v740, 4
        %v742 = vmax.f32 %v740, %v741
        %v743 = vrot.slane %v742, 2
        %v744 = vmax.f32 %v742, %v743
        %v745 = vrot.slane %v744, 1
        %v746 = vmax.f32 %v744, %v745
        %v747 = vmax.f32 %v616, %v620
        %v748 = vrot.slane %v747, 4
        %v749 = vmax.f32 %v747, %v748
        %v750 = vrot.slane %v749, 2
        %v751 = vmax.f32 %v749, %v750
        %v752 = vrot.slane %v751, 1
        %v753 = vmax.f32 %v751, %v752
        %v754 = vmax.f32 %v624, %v628
        %v755 = vrot.slane %v754, 4
        %v756 = vmax.f32 %v754, %v755
        %v757 = vrot.slane %v756, 2
        %v758 = vmax.f32 %v756, %v757
        %v759 = vrot.slane %v758, 1
        %v760 = vmax.f32 %v758, %v759
        %v761 = vmax.f32 %v626, %v630
        %v762 = vrot.slane %v761, 4
        %v763 = vmax.f32 %v761, %v762
        %v764 = vrot.slane %v763, 2
        %v765 = vmax.f32 %v763, %v764
        %v766 = vrot.slane %v765, 1
        %v767 = vmax.f32 %v765, %v766
        %v768 = vsub.f32 %v594, %v718
        %v769 = vsub.f32 %v596, %v725
        %v770 = vsub.f32 %v598, %v718
        %v771 = vsub.f32 %v600, %v725
        %v772 = vsub.f32 %v604, %v732
        %v773 = vsub.f32 %v606, %v739
        %v774 = vsub.f32 %v608, %v732
        %v775 = vsub.f32 %v610, %v739
        %v776 = vsub.f32 %v614, %v746
        %v777 = vsub.f32 %v616, %v753
        %v778 = vsub.f32 %v618, %v746
        %v779 = vsub.f32 %v620, %v753
        %v780 = vsub.f32 %v624, %v760
        %v781 = vsub.f32 %v626, %v767
        %v782 = vsub.f32 %v628, %v760
        %v783 = vsub.f32 %v630, %v767
        %v784 = vmul.f32 %v768, 1.442695
        %v785 = vpow.pop %v784
        %v786 = vmul.f32 %v769, 1.442695
        %v787 = vpow.pop %v786
        %v788 = vmul.f32 %v770, 1.442695
        %v789 = vpow.pop %v788
        %v790 = vmul.f32 %v771, 1.442695
        %v791 = vpow.pop %v790
        %v792 = vmul.f32 %v772, 1.442695
        %v793 = vpow.pop %v792
        %v794 = vmul.f32 %v773, 1.442695
        %v795 = vpow.pop %v794
        %v796 = vmul.f32 %v774, 1.442695
        %v797 = vpow.pop %v796
        %v798 = vmul.f32 %v775, 1.442695
        %v799 = vpow.pop %v798
        %v800 = vmul.f32 %v776, 1.442695
        %v801 = vpow.pop %v800
        %v802 = vmul.f32 %v777, 1.442695
        %v803 = vpow.pop %v802
        %v804 = vmul.f32 %v778, 1.442695
        %v805 = vpow.pop %v804
        %v806 = vmul.f32 %v779, 1.442695
        %v807 = vpow.pop %v806
        %v808 = vmul.f32 %v780, 1.442695
        %v809 = vpow.pop %v808
        %v810 = vmul.f32 %v781, 1.442695
        %v811 = vpow.pop %v810
        %v812 = vmul.f32 %v782, 1.442695
        %v813 = vpow.pop %v812
        %v814 = vmul.f32 %v783, 1.442695
        %v815 = vpow.pop %v814
        %v816 = vadd.f32 %v785, %v789
        %v817 = vrot.slane %v816, 4
        %v818 = vadd.f32 %v816, %v817
        %v819 = vrot.slane %v818, 2
        %v820 = vadd.f32 %v818, %v819
        %v821 = vrot.slane %v820, 1
        %v822 = vadd.f32 %v820, %v821
        %v823 = vadd.f32 %v787, %v791
        %v824 = vrot.slane %v823, 4
        %v825 = vadd.f32 %v823, %v824
        %v826 = vrot.slane %v825, 2
        %v827 = vadd.f32 %v825, %v826
        %v828 = vrot.slane %v827, 1
        %v829 = vadd.f32 %v827, %v828
        %v830 = vadd.f32 %v793, %v797
        %v831 = vrot.slane %v830, 4
        %v832 = vadd.f32 %v830, %v831
        %v833 = vrot.slane %v832, 2
        %v834 = vadd.f32 %v832, %v833
        %v835 = vrot.slane %v834, 1
        %v836 = vadd.f32 %v834, %v835
        %v837 = vadd.f32 %v795, %v799
        %v838 = vrot.slane %v837, 4
        %v839 = vadd.f32 %v837, %v838
        %v840 = vrot.slane %v839, 2
        %v841 = vadd.f32 %v839, %v840
        %v842 = vrot.slane %v841, 1
        %v843 = vadd.f32 %v841, %v842
        %v844 = vadd.f32 %v801, %v805
        %v845 = vrot.slane %v844, 4
        %v846 = vadd.f32 %v844, %v845
        %v847 = vrot.slane %v846, 2
        %v848 = vadd.f32 %v846, %v847
        %v849 = vrot.slane %v848, 1
        %v850 = vadd.f32 %v848, %v849
        %v851 = vadd.f32 %v803, %v807
        %v852 = vrot.slane %v851, 4
        %v853 = vadd.f32 %v851, %v852
        %v854 = vrot.slane %v853, 2
        %v855 = vadd.f32 %v853, %v854
        %v856 = vrot.slane %v855, 1
        %v857 = vadd.f32 %v855, %v856
        %v858 = vadd.f32 %v809, %v813
        %v859 = vrot.slane %v858, 4
        %v860 = vadd.f32 %v858, %v859
        %v861 = vrot.slane %v860, 2
        %v862 = vadd.f32 %v860, %v861
        %v863 = vrot.slane %v862, 1
        %v864 = vadd.f32 %v862, %v863
        %v865 = vadd.f32 %v811, %v815
        %v866 = vrot.slane %v865, 4
        %v867 = vadd.f32 %v865, %v866
        %v868 = vrot.slane %v867, 2
        %v869 = vadd.f32 %v867, %v868
        %v870 = vrot.slane %v869, 1
        %v871 = vadd.f32 %v869, %v870
        %v872 = vrcp.pop %v822
        %v873 = vmul.f32 0.25, %v872
        %v874 = vrcp.pop %v829
        %v875 = vmul.f32 0.25, %v874
        %v876 = vrcp.pop %v836
        %v877 = vmul.f32 0.25, %v876
        %v878 = vrcp.pop %v843
        %v879 = vmul.f32 0.25, %v878
        %v880 = vrcp.pop %v850
        %v881 = vmul.f32 0.25, %v880
        %v882 = vrcp.pop %v857
        %v883 = vmul.f32 0.25, %v882
        %v884 = vrcp.pop %v864
        %v885 = vmul.f32 0.25, %v884
        %v886 = vrcp.pop %v871
        %v887 = vmul.f32 0.25, %v886
        %v888 = vmul.f32 %v785, %v873
        %v889 = vmul.f32 %v787, %v875
        %v890 = vmul.f32 %v789, %v873
        %v891 = vmul.f32 %v791, %v875
        %v892 = vmul.f32 %v793, %v877
        %v893 = vmul.f32 %v795, %v879
        %v894 = vmul.f32 %v797, %v877
        %v895 = vmul.f32 %v799, %v879
        %v896 = vmul.f32 %v801, %v881
        %v897 = vmul.f32 %v803, %v883
        %v898 = vmul.f32 %v805, %v881
        %v899 = vmul.f32 %v807, %v883
        %v900 = vmul.f32 %v809, %v885
        %v901 = vmul.f32 %v811, %v887
        %v902 = vmul.f32 %v813, %v885
        %v903 = vmul.f32 %v815, %v887
        %v904 = vmax.f32 %v634, %v636
        %905 = vmax.xlane.f32.xlu0 %v904
        %v906 = vpop.xlane.xlu0 %905
        %v907 = vmax.f32 %v638, %v640
        %908 = vmax.xlane.f32.xlu0 %v907
        %v909 = vpop.xlane.xlu0 %908
        %v910 = vmax.f32 %v644, %v646
        %911 = vmax.xlane.f32.xlu0 %v910
        %v912 = vpop.xlane.xlu0 %911
        %v913 = vmax.f32 %v648, %v650
        %914 = vmax.xlane.f32.xlu0 %v913
        %v915 = vpop.xlane.xlu0 %914
        %v916 = vmax.f32 %v654, %v656
        %917 = vmax.xlane.f32.xlu0 %v916
        %v918 = vpop.xlane.xlu0 %917
        %v919 = vmax.f32 %v658, %v660
        %920 = vmax.xlane.f32.xlu0 %v919
        %v921 = vpop.xlane.xlu0 %920
        %v922 = vmax.f32 %v664, %v666
        %923 = vmax.xlane.f32.xlu0 %v922
        %v924 = vpop.xlane.xlu0 %923
        %v925 = vmax.f32 %v668, %v670
        %926 = vmax.xlane.f32.xlu0 %v925
        %v927 = vpop.xlane.xlu0 %926
        %v928 = vsub.f32 %v634, %v906
        %v929 = vsub.f32 %v636, %v906
        %v930 = vsub.f32 %v638, %v909
        %v931 = vsub.f32 %v640, %v909
        %v932 = vsub.f32 %v644, %v912
        %v933 = vsub.f32 %v646, %v912
        %v934 = vsub.f32 %v648, %v915
        %v935 = vsub.f32 %v650, %v915
        %v936 = vsub.f32 %v654, %v918
        %v937 = vsub.f32 %v656, %v918
        %v938 = vsub.f32 %v658, %v921
        %v939 = vsub.f32 %v660, %v921
        %v940 = vsub.f32 %v664, %v924
        %v941 = vsub.f32 %v666, %v924
        %v942 = vsub.f32 %v668, %v927
        %v943 = vsub.f32 %v670, %v927
        %v944 = vmul.f32 %v928, 1.442695
        %v945 = vpow.pop %v944
        %v946 = vmul.f32 %v929, 1.442695
        %v947 = vpow.pop %v946
        %v948 = vmul.f32 %v930, 1.442695
        %v949 = vpow.pop %v948
        %v950 = vmul.f32 %v931, 1.442695
        %v951 = vpow.pop %v950
        %v952 = vmul.f32 %v932, 1.442695
        %v953 = vpow.pop %v952
        %v954 = vmul.f32 %v933, 1.442695
        %v955 = vpow.pop %v954
        %v956 = vmul.f32 %v934, 1.442695
        %v957 = vpow.pop %v956
        %v958 = vmul.f32 %v935, 1.442695
        %v959 = vpow.pop %v958
        %v960 = vmul.f32 %v936, 1.442695
        %v961 = vpow.pop %v960
        %v962 = vmul.f32 %v937, 1.442695
        %v963 = vpow.pop %v962
        %v964 = vmul.f32 %v938, 1.442695
        %v965 = vpow.pop %v964
        %v966 = vmul.f32 %v939, 1.442695
        %v967 = vpow.pop %v966
        %v968 = vmul.f32 %v940, 1.442695
        %v969 = vpow.pop %v968
        %v970 = vmul.f32 %v941, 1.442695
        %v971 = vpow.pop %v970
        %v972 = vmul.f32 %v942, 1.442695
        %v973 = vpow.pop %v972
        %v974 = vmul.f32 %v943, 1.442695
        %v975 = vpow.pop %v974
        %v976 = vadd.f32 %v945, %v947
        %977 = vadd.xlane.f32.xlu0 %v976
        %v978 = vpop.xlane.xlu0 %977
        %v979 = vadd.f32 %v949, %v951
        %980 = vadd.xlane.f32.xlu0 %v979
        %v981 = vpop.xlane.xlu0 %980
        %v982 = vadd.f32 %v953, %v955
        %983 = vadd.xlane.f32.xlu0 %v982
        %v984 = vpop.xlane.xlu0 %983
        %v985 = vadd.f32 %v957, %v959
        %986 = vadd.xlane.f32.xlu0 %v985
        %v987 = vpop.xlane.xlu0 %986
        %v988 = vadd.f32 %v961, %v963
        %989 = vadd.xlane.f32.xlu0 %v988
        %v990 = vpop.xlane.xlu0 %989
        %v991 = vadd.f32 %v965, %v967
        %992 = vadd.xlane.f32.xlu0 %v991
        %v993 = vpop.xlane.xlu0 %992
        %v994 = vadd.f32 %v969, %v971
        %995 = vadd.xlane.f32.xlu0 %v994
        %v996 = vpop.xlane.xlu0 %995
        %v997 = vadd.f32 %v973, %v975
        %998 = vadd.xlane.f32.xlu0 %v997
        %v999 = vpop.xlane.xlu0 %998
        %v1000 = vrcp.pop %v978
        %v1001 = vmul.f32 %v945, %v1000
        %v1002 = vmul.f32 %v947, %v1000
        %v1003 = vrcp.pop %v981
        %v1004 = vmul.f32 %v949, %v1003
        %v1005 = vmul.f32 %v951, %v1003
        %v1006 = vrcp.pop %v984
        %v1007 = vmul.f32 %v953, %v1006
        %v1008 = vmul.f32 %v955, %v1006
        %v1009 = vrcp.pop %v987
        %v1010 = vmul.f32 %v957, %v1009
        %v1011 = vmul.f32 %v959, %v1009
        %v1012 = vrcp.pop %v990
        %v1013 = vmul.f32 %v961, %v1012
        %v1014 = vmul.f32 %v963, %v1012
        %v1015 = vrcp.pop %v993
        %v1016 = vmul.f32 %v965, %v1015
        %v1017 = vmul.f32 %v967, %v1015
        %v1018 = vrcp.pop %v996
        %v1019 = vmul.f32 %v969, %v1018
        %v1020 = vmul.f32 %v971, %v1018
        %v1021 = vrcp.pop %v999
        %v1022 = vmul.f32 %v973, %v1021
        %v1023 = vmul.f32 %v975, %v1021
        %v1024 = vpack.c.bf16 %v678, %v674
        %v1025 = vpack.c.bf16 %v680, %v676
        %v1026 = vpack.c.bf16 %v688, %v684
        %v1027 = vpack.c.bf16 %v690, %v686
        %v1028 = vpack.c.bf16 %v698, %v694
        %v1029 = vpack.c.bf16 %v700, %v696
        %v1030 = vpack.c.bf16 %v708, %v704
        %v1031 = vpack.c.bf16 %v710, %v706
        %v1032 = vpack.c.bf16 %v1004, %v1001
        %v1033 = vpack.c.bf16 %v1005, %v1002
        %v1034 = vpack.c.bf16 %v1010, %v1007
        %v1035 = vpack.c.bf16 %v1011, %v1008
        %v1036 = vpack.c.bf16 %v1016, %v1013
        %v1037 = vpack.c.bf16 %v1017, %v1014
        %v1038 = vpack.c.bf16 %v1022, %v1019
        %v1039 = vpack.c.bf16 %v1023, %v1020
        %1040 = vmatprep.subr.bf16.mxu0 0
        %1041 = vmatpush1.bf16.xpose.msra.mxu0 0
        %1042 = vmatprep.subr.bf16.mxu0 0
        %1043 = vmatpush1.bf16.xpose.msra.mxu0 0
        %1044 = vmatprep.subr.bf16.mxu0 0
        %1045 = vmatpush1.bf16.xpose.msra.mxu0 0
        %1046 = vmatprep.subr.bf16.mxu0 0
        %1047 = vmatpush1.bf16.xpose.msra.mxu0 0
        %1048 = vmatprep.subr.bf16.mxu0 0
        %1049 = vmatpush1.bf16.xpose.msra.mxu0 0
        %1050 = vmatprep.subr.bf16.mxu0 0
        %1051 = vmatpush1.bf16.xpose.msra.mxu0 0
        %1052 = vmatprep.subr.bf16.mxu0 0
        %1053 = vmatpush1.bf16.xpose.msra.mxu0 0
        %1054 = vmatprep.subr.bf16.mxu0 %v1033
        %1055 = vmatpush1.bf16.xpose.msra.mxu0 %v1032
        %1056 = vmatprep.subr.bf16.mxu0 0
        %1057 = vmatpush2.bf16.xpose.msra.mxu0 0
        %1058 = vmatprep.subr.bf16.mxu0 0
        %1059 = vmatpush2.bf16.xpose.msra.mxu0 0
        %1060 = vmatprep.subr.bf16.mxu0 0
        %1061 = vmatpush2.bf16.xpose.msra.mxu0 0
        %1062 = vmatprep.subr.bf16.mxu0 0
        %1063 = vmatpush2.bf16.xpose.msra.mxu0 0
        %1064 = vmatprep.subr.bf16.mxu0 0
        %1065 = vmatpush2.bf16.xpose.msra.mxu0 0
        %1066 = vmatprep.subr.bf16.mxu0 0
        %1067 = vmatpush2.bf16.xpose.msra.mxu0 0
        %1068 = vmatprep.subr.bf16.mxu0 0
        %1069 = vmatpush2.bf16.xpose.msra.mxu0 0
        %1070 = vmatprep.subr.bf16.mxu0 0
        %1071 = vmatpush2.bf16.xpose.msra.mxu0 0
        %1072 = vmatprep.mubr.bf16.mxu0 %v1025
        %1073 = vmatmul.mubr.bf16.gmra.mxu0 %v1024
        %v1074 = vpop.f32.mrf.mxu0
        %v1075 = vadd.f32 0.0, %v1074
        %v1076 = vpop.f32.mrf.mxu0
        %v1077 = vpop.f32.mrf.mxu0
        %v1078 = vadd.f32 0.0, %v1077
        %v1079 = vpop.f32.mrf.mxu0
        %1080 = vdwg.mxu0
        %1081 = vmatprep.subr.bf16.mxu0 0
        %1082 = vmatpush1.bf16.xpose.msra.mxu0 0
        %1083 = vmatprep.subr.bf16.mxu0 0
        %1084 = vmatpush1.bf16.xpose.msra.mxu0 0
        %1085 = vmatprep.subr.bf16.mxu0 0
        %1086 = vmatpush1.bf16.xpose.msra.mxu0 0
        %1087 = vmatprep.subr.bf16.mxu0 0
        %1088 = vmatpush1.bf16.xpose.msra.mxu0 0
        %1089 = vmatprep.subr.bf16.mxu0 0
        %1090 = vmatpush1.bf16.xpose.msra.mxu0 0
        %1091 = vmatprep.subr.bf16.mxu0 0
        %1092 = vmatpush1.bf16.xpose.msra.mxu0 0
        %1093 = vmatprep.subr.bf16.mxu0 0
        %1094 = vmatpush1.bf16.xpose.msra.mxu0 0
        %1095 = vmatprep.subr.bf16.mxu0 %v1035
        %1096 = vmatpush1.bf16.xpose.msra.mxu0 %v1034
        %1097 = vmatprep.subr.bf16.mxu0 0
        %1098 = vmatpush2.bf16.xpose.msra.mxu0 0
        %1099 = vmatprep.subr.bf16.mxu0 0
        %1100 = vmatpush2.bf16.xpose.msra.mxu0 0
        %1101 = vmatprep.subr.bf16.mxu0 0
        %1102 = vmatpush2.bf16.xpose.msra.mxu0 0
        %1103 = vmatprep.subr.bf16.mxu0 0
        %1104 = vmatpush2.bf16.xpose.msra.mxu0 0
        %1105 = vmatprep.subr.bf16.mxu0 0
        %1106 = vmatpush2.bf16.xpose.msra.mxu0 0
        %1107 = vmatprep.subr.bf16.mxu0 0
        %1108 = vmatpush2.bf16.xpose.msra.mxu0 0
        %1109 = vmatprep.subr.bf16.mxu0 0
        %1110 = vmatpush2.bf16.xpose.msra.mxu0 0
        %1111 = vmatprep.subr.bf16.mxu0 0
        %1112 = vmatpush2.bf16.xpose.msra.mxu0 0
        %1113 = vmatprep.mubr.bf16.mxu0 %v1027
        %1114 = vmatmul.mubr.bf16.gmra.mxu0 %v1026
        %v1115 = vpop.f32.mrf.mxu0
        %v1116 = vadd.f32 0.0, %v1115
        %v1117 = vpop.f32.mrf.mxu0
        %v1118 = vpop.f32.mrf.mxu0
        %v1119 = vadd.f32 0.0, %v1118
        %v1120 = vpop.f32.mrf.mxu0
        %1121 = vdwg.mxu0
        %1122 = vmatprep.subr.bf16.mxu0 0
        %1123 = vmatpush1.bf16.xpose.msra.mxu0 0
        %1124 = vmatprep.subr.bf16.mxu0 0
        %1125 = vmatpush1.bf16.xpose.msra.mxu0 0
        %1126 = vmatprep.subr.bf16.mxu0 0
        %1127 = vmatpush1.bf16.xpose.msra.mxu0 0
        %1128 = vmatprep.subr.bf16.mxu0 0
        %1129 = vmatpush1.bf16.xpose.msra.mxu0 0
        %1130 = vmatprep.subr.bf16.mxu0 0
        %1131 = vmatpush1.bf16.xpose.msra.mxu0 0
        %1132 = vmatprep.subr.bf16.mxu0 0
        %1133 = vmatpush1.bf16.xpose.msra.mxu0 0
        %1134 = vmatprep.subr.bf16.mxu0 0
        %1135 = vmatpush1.bf16.xpose.msra.mxu0 0
        %1136 = vmatprep.subr.bf16.mxu0 %v1037
        %1137 = vmatpush1.bf16.xpose.msra.mxu0 %v1036
        %1138 = vmatprep.subr.bf16.mxu0 0
        %1139 = vmatpush2.bf16.xpose.msra.mxu0 0
        %1140 = vmatprep.subr.bf16.mxu0 0
        %1141 = vmatpush2.bf16.xpose.msra.mxu0 0
        %1142 = vmatprep.subr.bf16.mxu0 0
        %1143 = vmatpush2.bf16.xpose.msra.mxu0 0
        %1144 = vmatprep.subr.bf16.mxu0 0
        %1145 = vmatpush2.bf16.xpose.msra.mxu0 0
        %1146 = vmatprep.subr.bf16.mxu0 0
        %1147 = vmatpush2.bf16.xpose.msra.mxu0 0
        %1148 = vmatprep.subr.bf16.mxu0 0
        %1149 = vmatpush2.bf16.xpose.msra.mxu0 0
        %1150 = vmatprep.subr.bf16.mxu0 0
        %1151 = vmatpush2.bf16.xpose.msra.mxu0 0
        %1152 = vmatprep.subr.bf16.mxu0 0
        %1153 = vmatpush2.bf16.xpose.msra.mxu0 0
        %1154 = vmatprep.mubr.bf16.mxu0 %v1029
        %1155 = vmatmul.mubr.bf16.gmra.mxu0 %v1028
        %v1156 = vpop.f32.mrf.mxu0
        %v1157 = vadd.f32 0.0, %v1156
        %v1158 = vpop.f32.mrf.mxu0
        %v1159 = vpop.f32.mrf.mxu0
        %v1160 = vadd.f32 0.0, %v1159
        %v1161 = vpop.f32.mrf.mxu0
        %1162 = vdwg.mxu0
        %1163 = vmatprep.subr.bf16.mxu0 0
        %1164 = vmatpush1.bf16.xpose.msra.mxu0 0
        %1165 = vmatprep.subr.bf16.mxu0 0
        %1166 = vmatpush1.bf16.xpose.msra.mxu0 0
        %1167 = vmatprep.subr.bf16.mxu0 0
        %1168 = vmatpush1.bf16.xpose.msra.mxu0 0
        %1169 = vmatprep.subr.bf16.mxu0 0
        %1170 = vmatpush1.bf16.xpose.msra.mxu0 0
        %1171 = vmatprep.subr.bf16.mxu0 0
        %1172 = vmatpush1.bf16.xpose.msra.mxu0 0
        %1173 = vmatprep.subr.bf16.mxu0 0
        %1174 = vmatpush1.bf16.xpose.msra.mxu0 0
        %1175 = vmatprep.subr.bf16.mxu0 0
        %1176 = vmatpush1.bf16.xpose.msra.mxu0 0
        %1177 = vmatprep.subr.bf16.mxu0 %v1039
        %1178 = vmatpush1.bf16.xpose.msra.mxu0 %v1038
        %1179 = vmatprep.subr.bf16.mxu0 0
        %1180 = vmatpush2.bf16.xpose.msra.mxu0 0
        %1181 = vmatprep.subr.bf16.mxu0 0
        %1182 = vmatpush2.bf16.xpose.msra.mxu0 0
        %1183 = vmatprep.subr.bf16.mxu0 0
        %1184 = vmatpush2.bf16.xpose.msra.mxu0 0
        %1185 = vmatprep.subr.bf16.mxu0 0
        %1186 = vmatpush2.bf16.xpose.msra.mxu0 0
        %1187 = vmatprep.subr.bf16.mxu0 0
        %1188 = vmatpush2.bf16.xpose.msra.mxu0 0
        %1189 = vmatprep.subr.bf16.mxu0 0
        %1190 = vmatpush2.bf16.xpose.msra.mxu0 0
        %1191 = vmatprep.subr.bf16.mxu0 0
        %1192 = vmatpush2.bf16.xpose.msra.mxu0 0
        %1193 = vmatprep.subr.bf16.mxu0 0
        %1194 = vmatpush2.bf16.xpose.msra.mxu0 0
        %1195 = vmatprep.mubr.bf16.mxu0 %v1031
        %1196 = vmatmul.mubr.bf16.gmra.mxu0 %v1030
        %v1197 = vpop.f32.mrf.mxu0
        %v1198 = vadd.f32 0.0, %v1197
        %v1199 = vpop.f32.mrf.mxu0
        %v1200 = vpop.f32.mrf.mxu0
        %v1201 = vadd.f32 0.0, %v1200
        %v1202 = vpop.f32.mrf.mxu0
        %1203 = vdwg.mxu0
        %v1204 = vpack.c.bf16 %v1078, %v1075
        %v1205 = vpack.c.bf16 %v1119, %v1116
        %v1206 = vpack.c.bf16 %v1160, %v1157
        %v1207 = vpack.c.bf16 %v1201, %v1198
        %v1208 = vpack.c.bf16 %v890, %v888
        %v1209 = vpack.c.bf16 %v891, %v889
        %v1210 = vpack.c.bf16 %v894, %v892
        %v1211 = vpack.c.bf16 %v895, %v893
        %v1212 = vpack.c.bf16 %v898, %v896
        %v1213 = vpack.c.bf16 %v899, %v897
        %v1214 = vpack.c.bf16 %v902, %v900
        %v1215 = vpack.c.bf16 %v903, %v901
        %vm1216 = vcmask 130048
        %v1218 = vsel %vm1216, %v1204, 0
        %1220 = vmatprep.subr.bf16.mxu0 0
        %1221 = vmatpush1.bf16.msra.mxu0 0
        %1222 = vmatprep.subr.bf16.mxu0 0
        %1223 = vmatpush1.bf16.msra.mxu0 0
        %1224 = vmatprep.subr.bf16.mxu0 0
        %1225 = vmatpush1.bf16.msra.mxu0 0
        %1226 = vmatprep.subr.bf16.mxu0 0
        %1227 = vmatpush1.bf16.msra.mxu0 0
        %1228 = vmatprep.subr.bf16.mxu0 0
        %1229 = vmatpush1.bf16.msra.mxu0 0
        %1230 = vmatprep.subr.bf16.mxu0 0
        %1231 = vmatpush1.bf16.msra.mxu0 0
        %1232 = vmatprep.subr.bf16.mxu0 0
        %1233 = vmatpush1.bf16.msra.mxu0 0
        %1234 = vmatprep.subr.bf16.mxu0 %v1209
        %1235 = vmatpush1.bf16.msra.mxu0 %v1208
        %1236 = vmatprep.subr.bf16.mxu0 0
        %1237 = vmatpush2.bf16.msra.mxu0 0
        %1238 = vmatprep.subr.bf16.mxu0 0
        %1239 = vmatpush2.bf16.msra.mxu0 0
        %1240 = vmatprep.subr.bf16.mxu0 0
        %1241 = vmatpush2.bf16.msra.mxu0 0
        %1242 = vmatprep.subr.bf16.mxu0 0
        %1243 = vmatpush2.bf16.msra.mxu0 0
        %1244 = vmatprep.subr.bf16.mxu0 0
        %1245 = vmatpush2.bf16.msra.mxu0 0
        %1246 = vmatprep.subr.bf16.mxu0 0
        %1247 = vmatpush2.bf16.msra.mxu0 0
        %1248 = vmatprep.subr.bf16.mxu0 0
        %1249 = vmatpush2.bf16.msra.mxu0 0
        %1250 = vmatprep.subr.bf16.mxu0 0
        %1251 = vmatpush2.bf16.msra.mxu0 0
        %1252 = vmatprep.mubr.bf16.mxu0 0
        %1253 = vmatmul.mubr.bf16.gmra.mxu0 %v1218
        %v1254 = vpop.f32.mrf.mxu0
        %v1255 = vadd.f32 0.0, %v1254
        %v1256 = vpop.f32.mrf.mxu0
        %v1257 = vadd.f32 0.0, %v1256
        %v1258 = vpop.f32.mrf.mxu0
        %v1259 = vadd.f32 0.0, %v1258
        %v1260 = vpop.f32.mrf.mxu0
        %v1261 = vadd.f32 0.0, %v1260
        %1262 = vdwg.mxu0
        %v1264 = vsel %vm1216, %v1205, 0
        %1266 = vmatprep.subr.bf16.mxu0 0
        %1267 = vmatpush1.bf16.msra.mxu0 0
        %1268 = vmatprep.subr.bf16.mxu0 0
        %1269 = vmatpush1.bf16.msra.mxu0 0
        %1270 = vmatprep.subr.bf16.mxu0 0
        %1271 = vmatpush1.bf16.msra.mxu0 0
        %1272 = vmatprep.subr.bf16.mxu0 0
        %1273 = vmatpush1.bf16.msra.mxu0 0
        %1274 = vmatprep.subr.bf16.mxu0 0
        %1275 = vmatpush1.bf16.msra.mxu0 0
        %1276 = vmatprep.subr.bf16.mxu0 0
        %1277 = vmatpush1.bf16.msra.mxu0 0
        %1278 = vmatprep.subr.bf16.mxu0 0
        %1279 = vmatpush1.bf16.msra.mxu0 0
        %1280 = vmatprep.subr.bf16.mxu0 %v1211
        %1281 = vmatpush1.bf16.msra.mxu0 %v1210
        %1282 = vmatprep.subr.bf16.mxu0 0
        %1283 = vmatpush2.bf16.msra.mxu0 0
        %1284 = vmatprep.subr.bf16.mxu0 0
        %1285 = vmatpush2.bf16.msra.mxu0 0
        %1286 = vmatprep.subr.bf16.mxu0 0
        %1287 = vmatpush2.bf16.msra.mxu0 0
        %1288 = vmatprep.subr.bf16.mxu0 0
        %1289 = vmatpush2.bf16.msra.mxu0 0
        %1290 = vmatprep.subr.bf16.mxu0 0
        %1291 = vmatpush2.bf16.msra.mxu0 0
        %1292 = vmatprep.subr.bf16.mxu0 0
        %1293 = vmatpush2.bf16.msra.mxu0 0
        %1294 = vmatprep.subr.bf16.mxu0 0
        %1295 = vmatpush2.bf16.msra.mxu0 0
        %1296 = vmatprep.subr.bf16.mxu0 0
        %1297 = vmatpush2.bf16.msra.mxu0 0
        %1298 = vmatprep.mubr.bf16.mxu0 0
        %1299 = vmatmul.mubr.bf16.gmra.mxu0 %v1264
        %v1300 = vpop.f32.mrf.mxu0
        %v1301 = vadd.f32 0.0, %v1300
        %v1302 = vpop.f32.mrf.mxu0
        %v1303 = vadd.f32 0.0, %v1302
        %v1304 = vpop.f32.mrf.mxu0
        %v1305 = vadd.f32 0.0, %v1304
        %v1306 = vpop.f32.mrf.mxu0
        %v1307 = vadd.f32 0.0, %v1306
        %1308 = vdwg.mxu0
        %v1310 = vsel %vm1216, %v1206, 0
        %1312 = vmatprep.subr.bf16.mxu0 0
        %1313 = vmatpush1.bf16.msra.mxu0 0
        %1314 = vmatprep.subr.bf16.mxu0 0
        %1315 = vmatpush1.bf16.msra.mxu0 0
        %1316 = vmatprep.subr.bf16.mxu0 0
        %1317 = vmatpush1.bf16.msra.mxu0 0
        %1318 = vmatprep.subr.bf16.mxu0 0
        %1319 = vmatpush1.bf16.msra.mxu0 0
        %1320 = vmatprep.subr.bf16.mxu0 0
        %1321 = vmatpush1.bf16.msra.mxu0 0
        %1322 = vmatprep.subr.bf16.mxu0 0
        %1323 = vmatpush1.bf16.msra.mxu0 0
        %1324 = vmatprep.subr.bf16.mxu0 0
        %1325 = vmatpush1.bf16.msra.mxu0 0
        %1326 = vmatprep.subr.bf16.mxu0 %v1213
        %1327 = vmatpush1.bf16.msra.mxu0 %v1212
        %1328 = vmatprep.subr.bf16.mxu0 0
        %1329 = vmatpush2.bf16.msra.mxu0 0
        %1330 = vmatprep.subr.bf16.mxu0 0
        %1331 = vmatpush2.bf16.msra.mxu0 0
        %1332 = vmatprep.subr.bf16.mxu0 0
        %1333 = vmatpush2.bf16.msra.mxu0 0
        %1334 = vmatprep.subr.bf16.mxu0 0
        %1335 = vmatpush2.bf16.msra.mxu0 0
        %1336 = vmatprep.subr.bf16.mxu0 0
        %1337 = vmatpush2.bf16.msra.mxu0 0
        %1338 = vmatprep.subr.bf16.mxu0 0
        %1339 = vmatpush2.bf16.msra.mxu0 0
        %1340 = vmatprep.subr.bf16.mxu0 0
        %1341 = vmatpush2.bf16.msra.mxu0 0
        %1342 = vmatprep.subr.bf16.mxu0 0
        %1343 = vmatpush2.bf16.msra.mxu0 0
        %1344 = vmatprep.mubr.bf16.mxu0 0
        %1345 = vmatmul.mubr.bf16.gmra.mxu0 %v1310
        %v1346 = vpop.f32.mrf.mxu0
        %v1347 = vadd.f32 0.0, %v1346
        %v1348 = vpop.f32.mrf.mxu0
        %v1349 = vadd.f32 0.0, %v1348
        %v1350 = vpop.f32.mrf.mxu0
        %v1351 = vadd.f32 0.0, %v1350
        %v1352 = vpop.f32.mrf.mxu0
        %v1353 = vadd.f32 0.0, %v1352
        %1354 = vdwg.mxu0
        %v1356 = vsel %vm1216, %v1207, 0
        %1358 = vmatprep.subr.bf16.mxu0 0
        %1359 = vmatpush1.bf16.msra.mxu0 0
        %1360 = vmatprep.subr.bf16.mxu0 0
        %1361 = vmatpush1.bf16.msra.mxu0 0
        %1362 = vmatprep.subr.bf16.mxu0 0
        %1363 = vmatpush1.bf16.msra.mxu0 0
        %1364 = vmatprep.subr.bf16.mxu0 0
        %1365 = vmatpush1.bf16.msra.mxu0 0
        %1366 = vmatprep.subr.bf16.mxu0 0
        %1367 = vmatpush1.bf16.msra.mxu0 0
        %1368 = vmatprep.subr.bf16.mxu0 0
        %1369 = vmatpush1.bf16.msra.mxu0 0
        %1370 = vmatprep.subr.bf16.mxu0 0
        %1371 = vmatpush1.bf16.msra.mxu0 0
        %1372 = vmatprep.subr.bf16.mxu0 %v1215
        %1373 = vmatpush1.bf16.msra.mxu0 %v1214
        %1374 = vmatprep.subr.bf16.mxu0 0
        %1375 = vmatpush2.bf16.msra.mxu0 0
        %1376 = vmatprep.subr.bf16.mxu0 0
        %1377 = vmatpush2.bf16.msra.mxu0 0
        %1378 = vmatprep.subr.bf16.mxu0 0
        %1379 = vmatpush2.bf16.msra.mxu0 0
        %1380 = vmatprep.subr.bf16.mxu0 0
        %1381 = vmatpush2.bf16.msra.mxu0 0
        %1382 = vmatprep.subr.bf16.mxu0 0
        %1383 = vmatpush2.bf16.msra.mxu0 0
        %1384 = vmatprep.subr.bf16.mxu0 0
        %1385 = vmatpush2.bf16.msra.mxu0 0
        %1386 = vmatprep.subr.bf16.mxu0 0
        %1387 = vmatpush2.bf16.msra.mxu0 0
        %1388 = vmatprep.subr.bf16.mxu0 0
        %1389 = vmatpush2.bf16.msra.mxu0 0
        %1390 = vmatprep.mubr.bf16.mxu0 0
        %1391 = vmatmul.mubr.bf16.gmra.mxu0 %v1356
        %v1392 = vpop.f32.mrf.mxu0
        %v1393 = vadd.f32 0.0, %v1392
        %v1394 = vpop.f32.mrf.mxu0
        %v1395 = vadd.f32 0.0, %v1394
        %v1396 = vpop.f32.mrf.mxu0
        %v1397 = vadd.f32 0.0, %v1396
        %v1398 = vpop.f32.mrf.mxu0
        %v1399 = vadd.f32 0.0, %v1398
        %1400 = vdwg.mxu0
        %v1401 = vld [vmem:[%s3] sm:$0xff]
        %v1402 = vld [vmem:[%s3 + $0x8] sm:$0xff]
        %v1403 = vld [vmem:[%s3 + $0x10] sm:$0xff]
        %v1404 = vld [vmem:[%s3 + $0x18] sm:$0xff]
        %v1405 = vpack.c.bf16 %v1402, %v1401
        %v1406 = vpack.c.bf16 %v1404, %v1403
        %v1407 = vpack.c.bf16 %v1259, %v1255
        %v1408 = vpack.c.bf16 %v1261, %v1257
        %v1409 = vpack.c.bf16 %v1305, %v1301
        %v1410 = vpack.c.bf16 %v1307, %v1303
        %v1411 = vpack.c.bf16 %v1351, %v1347
        %v1412 = vpack.c.bf16 %v1353, %v1349
        %v1413 = vpack.c.bf16 %v1397, %v1393
        %v1414 = vpack.c.bf16 %v1399, %v1395
        %v1415 = vld [vmem:[%s4] sm:$0xff]
        %v1416 = vld [vmem:[%s4 + $0x8] sm:$0xff]
        %v1417 = vld [vmem:[%s4 + $0x10] sm:$0xff]
        %v1418 = vld [vmem:[%s4 + $0x18] sm:$0xff]
        %1420 = vset.pattern.permute.xlu0 0
        %1421 = vperm.xlu0 %1420, %v1415
        %v1422 = vpop.permute.xlu0 %1421
        %1425 = vset.pattern.permute.xlu0 0
        %1426 = vperm.xlu0 %1425, %v1416
        %v1427 = vpop.permute.xlu0 %1426
        %1430 = vset.pattern.permute.xlu0 0
        %1431 = vperm.xlu0 %1430, %v1417
        %v1432 = vpop.permute.xlu0 %1431
        %1435 = vset.pattern.permute.xlu0 0
        %1436 = vperm.xlu0 %1435, %v1418
        %v1437 = vpop.permute.xlu0 %1436
        %vm1439 = vcmask 523264
        %v1441 = vsel %vm1439, %v1405, 0
        %v1444 = vsel %vm1439, %v1406, 0
        %1446 = vmatprep.subr.bf16.mxu0 0
        %1447 = vmatpush1.bf16.msra.mxu0 0
        %1448 = vmatprep.subr.bf16.mxu0 0
        %1449 = vmatpush1.bf16.msra.mxu0 0
        %1450 = vmatprep.subr.bf16.mxu0 0
        %1451 = vmatpush1.bf16.msra.mxu0 0
        %1452 = vmatprep.subr.bf16.mxu0 0
        %1453 = vmatpush1.bf16.msra.mxu0 0
        %1454 = vmatprep.subr.bf16.mxu0 %v1414
        %1455 = vmatpush1.bf16.msra.mxu0 %v1413
        %1456 = vmatprep.subr.bf16.mxu0 %v1412
        %1457 = vmatpush1.bf16.msra.mxu0 %v1411
        %1458 = vmatprep.subr.bf16.mxu0 %v1410
        %1459 = vmatpush1.bf16.msra.mxu0 %v1409
        %1460 = vmatprep.subr.bf16.mxu0 %v1408
        %1461 = vmatpush1.bf16.msra.mxu0 %v1407
        %1462 = vmatprep.subr.bf16.mxu0 0
        %1463 = vmatpush2.bf16.msra.mxu0 0
        %1464 = vmatprep.subr.bf16.mxu0 0
        %1465 = vmatpush2.bf16.msra.mxu0 0
        %1466 = vmatprep.subr.bf16.mxu0 0
        %1467 = vmatpush2.bf16.msra.mxu0 0
        %1468 = vmatprep.subr.bf16.mxu0 0
        %1469 = vmatpush2.bf16.msra.mxu0 0
        %1470 = vmatprep.subr.bf16.mxu0 0
        %1471 = vmatpush2.bf16.msra.mxu0 0
        %1472 = vmatprep.subr.bf16.mxu0 0
        %1473 = vmatpush2.bf16.msra.mxu0 0
        %1474 = vmatprep.subr.bf16.mxu0 0
        %1475 = vmatpush2.bf16.msra.mxu0 0
        %1476 = vmatprep.subr.bf16.mxu0 0
        %1477 = vmatpush2.bf16.msra.mxu0 0
        %1478 = vmatprep.mubr.bf16.mxu0 0
        %1479 = vmatmul.mubr.bf16.gmra.mxu0 %v1441
        %v1480 = vpop.f32.mrf.mxu0
        %v1481 = vadd.f32 %v1422, %v1480
        %v1482 = vpop.f32.mrf.mxu0
        %v1483 = vadd.f32 %v1422, %v1482
        %v1484 = vpop.f32.mrf.mxu0
        %v1485 = vadd.f32 %v1427, %v1484
        %v1486 = vpop.f32.mrf.mxu0
        %v1487 = vadd.f32 %v1427, %v1486
        %1488 = vmatprep.mubr.bf16.mxu0 0
        %1489 = vmatmul.mubr.bf16.gmra.mxu0 %v1444
        %v1490 = vpop.f32.mrf.mxu0
        %v1491 = vadd.f32 %v1432, %v1490
        %v1492 = vpop.f32.mrf.mxu0
        %v1493 = vadd.f32 %v1432, %v1492
        %v1494 = vpop.f32.mrf.mxu0
        %v1495 = vadd.f32 %v1437, %v1494
        %v1496 = vpop.f32.mrf.mxu0
        %v1497 = vadd.f32 %v1437, %v1496
        %1498 = vdwg.mxu0
        %v1499 = vmul.f32 %v1481, %v1481
        %v1500 = vmul.f32 %v1483, %v1483
        %v1501 = vmul.f32 %v1485, %v1485
        %v1502 = vmul.f32 %v1487, %v1487
        %v1503 = vmul.f32 %v1491, %v1491
        %v1504 = vmul.f32 %v1493, %v1493
        %v1505 = vmul.f32 %v1495, %v1495
        %v1506 = vmul.f32 %v1497, %v1497
        %v1507 = vadd.f32 %v1499, %v1501
        %v1508 = vadd.f32 %v1507, %v1503
        %v1509 = vadd.f32 %v1508, %v1505
        %v1510 = vrot.slane %v1509, 4
        %v1511 = vadd.f32 %v1509, %v1510
        %v1512 = vrot.slane %v1511, 2
        %v1513 = vadd.f32 %v1511, %v1512
        %v1514 = vrot.slane %v1513, 1
        %v1515 = vadd.f32 %v1513, %v1514
        %v1516 = vadd.f32 %v1500, %v1502
        %v1517 = vadd.f32 %v1516, %v1504
        %v1518 = vadd.f32 %v1517, %v1506
        %v1519 = vrot.slane %v1518, 4
        %v1520 = vadd.f32 %v1518, %v1519
        %v1521 = vrot.slane %v1520, 2
        %v1522 = vadd.f32 %v1520, %v1521
        %v1523 = vrot.slane %v1522, 1
        %v1524 = vadd.f32 %v1522, %v1523
        %v1525 = vrsqrt.pop %v1515
        %v1526 = vmul.f32 %v1515, %v1525
        %vm1527 = vcmp.eq.f32.partialorder %v1515, inf
        %v1528 = vsel %vm1527, %v1515, %v1526
        %vm1529 = vcmp.eq.f32.partialorder %v1515, 0.0
        %v1530 = vand.u32 %v1515, 2147483648
        %v1531 = vsel %vm1529, %v1530, %v1528
        %v1532 = vrsqrt.pop %v1524
        %v1533 = vmul.f32 %v1524, %v1532
        %vm1534 = vcmp.eq.f32.partialorder %v1524, inf
        %v1535 = vsel %vm1534, %v1524, %v1533
        %vm1536 = vcmp.eq.f32.partialorder %v1524, 0.0
        %v1537 = vand.u32 %v1524, 2147483648
        %v1538 = vsel %vm1536, %v1537, %v1535
        %v1539 = vmax.f32 %v1531, 1e-12
        %v1540 = vmax.f32 %v1538, 1e-12
        %v1541 = vrcp.pop %v1539
        %v1542 = vmul.f32 %v1481, %v1541
        %v1543 = vrcp.pop %v1540
        %v1544 = vmul.f32 %v1483, %v1543
        %v1545 = vmul.f32 %v1485, %v1541
        %v1546 = vmul.f32 %v1487, %v1543
        %v1547 = vmul.f32 %v1491, %v1541
        %v1548 = vmul.f32 %v1493, %v1543
        %v1549 = vmul.f32 %v1495, %v1541
        %v1550 = vmul.f32 %v1497, %v1543
        %v1551 = vld [vmem:[%s5] sm:$0xff]
        %v1552 = vld [vmem:[%s5 + $0x8] sm:$0xff]
        %v1553 = vld [vmem:[%s5 + $0x10] sm:$0xff]
        %v1554 = vld [vmem:[%s5 + $0x18] sm:$0xff]
        %v1555 = vmul.f32 %v1551, 5.656854
        %v1556 = vmul.f32 %v1552, 5.656854
        %v1557 = vmul.f32 %v1553, 5.656854
        %v1558 = vmul.f32 %v1554, 5.656854
        %1560 = vset.pattern.permute.xlu0 0
        %1561 = vperm.xlu0 %1560, %v1555
        %v1562 = vpop.permute.xlu0 %1561
        %1565 = vset.pattern.permute.xlu0 0
        %1566 = vperm.xlu0 %1565, %v1556
        %v1567 = vpop.permute.xlu0 %1566
        %1570 = vset.pattern.permute.xlu0 0
        %1571 = vperm.xlu0 %1570, %v1557
        %v1572 = vpop.permute.xlu0 %1571
        %1575 = vset.pattern.permute.xlu0 0
        %1576 = vperm.xlu0 %1575, %v1558
        %v1577 = vpop.permute.xlu0 %1576
        %v1579 = vmul.f32 %v1542, %v1562
        %v1580 = vmul.f32 %v1544, %v1562
        %v1581 = vmul.f32 %v1545, %v1567
        %v1582 = vmul.f32 %v1546, %v1567
        %v1583 = vmul.f32 %v1547, %v1572
        %v1584 = vmul.f32 %v1548, %v1572
        %v1585 = vmul.f32 %v1549, %v1577
        %v1586 = vmul.f32 %v1550, %v1577
        %v1587 = vadd.f32 %v386, %v1579
        %v1588 = vadd.f32 %v387, %v1580
        %v1589 = vadd.f32 %v388, %v1581
        %v1590 = vadd.f32 %v389, %v1582
        %v1591 = vadd.f32 %v390, %v1583
        %v1592 = vadd.f32 %v391, %v1584
        %v1593 = vadd.f32 %v392, %v1585
        %v1594 = vadd.f32 %v393, %v1586
        %v1595 = vmul.f32 %v1587, %v1587
        %v1596 = vmul.f32 %v1588, %v1588
        %v1597 = vmul.f32 %v1589, %v1589
        %v1598 = vmul.f32 %v1590, %v1590
        %v1599 = vmul.f32 %v1591, %v1591
        %v1600 = vmul.f32 %v1592, %v1592
        %v1601 = vmul.f32 %v1593, %v1593
        %v1602 = vmul.f32 %v1594, %v1594
        %v1603 = vadd.f32 %v1595, %v1597
        %v1604 = vadd.f32 %v1603, %v1599
        %v1605 = vadd.f32 %v1604, %v1601
        %v1606 = vrot.slane %v1605, 4
        %v1607 = vadd.f32 %v1605, %v1606
        %v1608 = vrot.slane %v1607, 2
        %v1609 = vadd.f32 %v1607, %v1608
        %v1610 = vrot.slane %v1609, 1
        %v1611 = vadd.f32 %v1609, %v1610
        %v1612 = vadd.f32 %v1596, %v1598
        %v1613 = vadd.f32 %v1612, %v1600
        %v1614 = vadd.f32 %v1613, %v1602
        %v1615 = vrot.slane %v1614, 4
        %v1616 = vadd.f32 %v1614, %v1615
        %v1617 = vrot.slane %v1616, 2
        %v1618 = vadd.f32 %v1616, %v1617
        %v1619 = vrot.slane %v1618, 1
        %v1620 = vadd.f32 %v1618, %v1619
        %v1621 = vrsqrt.pop %v1611
        %v1622 = vmul.f32 %v1611, %v1621
        %vm1623 = vcmp.eq.f32.partialorder %v1611, inf
        %v1624 = vsel %vm1623, %v1611, %v1622
        %vm1625 = vcmp.eq.f32.partialorder %v1611, 0.0
        %v1626 = vand.u32 %v1611, 2147483648
        %v1627 = vsel %vm1625, %v1626, %v1624
        %v1628 = vrsqrt.pop %v1620
        %v1629 = vmul.f32 %v1620, %v1628
        %vm1630 = vcmp.eq.f32.partialorder %v1620, inf
        %v1631 = vsel %vm1630, %v1620, %v1629
        %vm1632 = vcmp.eq.f32.partialorder %v1620, 0.0
        %v1633 = vand.u32 %v1620, 2147483648
        %v1634 = vsel %vm1632, %v1633, %v1631
        %v1635 = vmax.f32 %v1627, 1e-12
        %v1636 = vmax.f32 %v1634, 1e-12
        %v1637 = vrcp.pop %v1635
        %v1638 = vmul.f32 %v1587, %v1637
        %v1639 = vrcp.pop %v1636
        %v1640 = vmul.f32 %v1588, %v1639
        %v1641 = vmul.f32 %v1589, %v1637
        %v1642 = vmul.f32 %v1590, %v1639
        %v1643 = vmul.f32 %v1591, %v1637
        %v1644 = vmul.f32 %v1592, %v1639
        %v1645 = vmul.f32 %v1593, %v1637
        %v1646 = vmul.f32 %v1594, %v1639
        %v1647 = vld [vmem:[%s6] sm:$0xff]
        %v1648 = vld [vmem:[%s6 + $0x8] sm:$0xff]
        %v1649 = vld [vmem:[%s6 + $0x10] sm:$0xff]
        %v1650 = vld [vmem:[%s6 + $0x18] sm:$0xff]
        %v1651 = vmul.f32 %v1647, 5.656854
        %v1652 = vmul.f32 %v1648, 5.656854
        %v1653 = vmul.f32 %v1649, 5.656854
        %v1654 = vmul.f32 %v1650, 5.656854
        %1656 = vset.pattern.permute.xlu0 0
        %1657 = vperm.xlu0 %1656, %v1651
        %v1658 = vpop.permute.xlu0 %1657
        %1661 = vset.pattern.permute.xlu0 0
        %1662 = vperm.xlu0 %1661, %v1652
        %v1663 = vpop.permute.xlu0 %1662
        %1666 = vset.pattern.permute.xlu0 0
        %1667 = vperm.xlu0 %1666, %v1653
        %v1668 = vpop.permute.xlu0 %1667
        %1671 = vset.pattern.permute.xlu0 0
        %1672 = vperm.xlu0 %1671, %v1654
        %v1673 = vpop.permute.xlu0 %1672
        %v1675 = vmul.f32 %v1638, %v1658
        %v1676 = vmul.f32 %v1640, %v1658
        %v1677 = vmul.f32 %v1641, %v1663
        %v1678 = vmul.f32 %v1642, %v1663
        %v1679 = vmul.f32 %v1643, %v1668
        %v1680 = vmul.f32 %v1644, %v1668
        %v1681 = vmul.f32 %v1645, %v1673
        %v1682 = vmul.f32 %v1646, %v1673
        %v1683 = vld [vmem:[%s7] sm:$0xff]
        %v1684 = vld [vmem:[%s7 + $0x8] sm:$0xff]
        %v1685 = vld [vmem:[%s7 + $0x10] sm:$0xff]
        %v1686 = vld [vmem:[%s7 + $0x18] sm:$0xff]
        %v1687 = vld [vmem:[%s7 + $0x20] sm:$0xff]
        %v1688 = vld [vmem:[%s7 + $0x28] sm:$0xff]
        %v1689 = vld [vmem:[%s7 + $0x30] sm:$0xff]
        %v1690 = vld [vmem:[%s7 + $0x38] sm:$0xff]
        %v1691 = vld [vmem:[%s7 + $0x40] sm:$0xff]
        %v1692 = vld [vmem:[%s7 + $0x48] sm:$0xff]
        %v1693 = vld [vmem:[%s7 + $0x50] sm:$0xff]
        %v1694 = vld [vmem:[%s7 + $0x58] sm:$0xff]
        %v1695 = vld [vmem:[%s7 + $0x60] sm:$0xff]
        %v1696 = vld [vmem:[%s7 + $0x68] sm:$0xff]
        %v1697 = vld [vmem:[%s7 + $0x70] sm:$0xff]
        %v1698 = vld [vmem:[%s7 + $0x78] sm:$0xff]
        %v1699 = vpack.c.bf16 %v1684, %v1683
        %v1700 = vpack.c.bf16 %v1686, %v1685
        %v1701 = vpack.c.bf16 %v1688, %v1687
        %v1702 = vpack.c.bf16 %v1690, %v1689
        %v1703 = vpack.c.bf16 %v1692, %v1691
        %v1704 = vpack.c.bf16 %v1694, %v1693
        %v1705 = vpack.c.bf16 %v1696, %v1695
        %v1706 = vpack.c.bf16 %v1698, %v1697
        %v1707 = vpack.c.bf16 %v1677, %v1675
        %v1708 = vpack.c.bf16 %v1678, %v1676
        %v1709 = vpack.c.bf16 %v1681, %v1679
        %v1710 = vpack.c.bf16 %v1682, %v1680
        %v1711 = vld [vmem:[%s8] sm:$0xff]
        %v1712 = vld [vmem:[%s8 + $0x8] sm:$0xff]
        %v1713 = vld [vmem:[%s8 + $0x10] sm:$0xff]
        %v1714 = vld [vmem:[%s8 + $0x18] sm:$0xff]
        %v1715 = vld [vmem:[%s8 + $0x20] sm:$0xff]
        %v1716 = vld [vmem:[%s8 + $0x28] sm:$0xff]
        %v1717 = vld [vmem:[%s8 + $0x30] sm:$0xff]
        %v1718 = vld [vmem:[%s8 + $0x38] sm:$0xff]
        %v1719 = vld [vmem:[%s8 + $0x40] sm:$0xff]
        %v1720 = vld [vmem:[%s8 + $0x48] sm:$0xff]
        %v1721 = vld [vmem:[%s8 + $0x50] sm:$0xff]
        %v1722 = vld [vmem:[%s8 + $0x58] sm:$0xff]
        %v1723 = vld [vmem:[%s8 + $0x60] sm:$0xff]
        %v1724 = vld [vmem:[%s8 + $0x68] sm:$0xff]
        %v1725 = vld [vmem:[%s8 + $0x70] sm:$0xff]
        %v1726 = vld [vmem:[%s8 + $0x78] sm:$0xff]
        %1728 = vset.pattern.permute.xlu0 0
        %1729 = vperm.xlu0 %1728, %v1711
        %v1730 = vpop.permute.xlu0 %1729
        %1733 = vset.pattern.permute.xlu0 0
        %1734 = vperm.xlu0 %1733, %v1712
        %v1735 = vpop.permute.xlu0 %1734
        %1738 = vset.pattern.permute.xlu0 0
        %1739 = vperm.xlu0 %1738, %v1713
        %v1740 = vpop.permute.xlu0 %1739
        %1743 = vset.pattern.permute.xlu0 0
        %1744 = vperm.xlu0 %1743, %v1714
        %v1745 = vpop.permute.xlu0 %1744
        %1748 = vset.pattern.permute.xlu0 0
        %1749 = vperm.xlu0 %1748, %v1715
        %v1750 = vpop.permute.xlu0 %1749
        %1753 = vset.pattern.permute.xlu0 0
        %1754 = vperm.xlu0 %1753, %v1716
        %v1755 = vpop.permute.xlu0 %1754
        %1758 = vset.pattern.permute.xlu0 0
        %1759 = vperm.xlu0 %1758, %v1717
        %v1760 = vpop.permute.xlu0 %1759
        %1763 = vset.pattern.permute.xlu0 0
        %1764 = vperm.xlu0 %1763, %v1718
        %v1765 = vpop.permute.xlu0 %1764
        %1768 = vset.pattern.permute.xlu0 0
        %1769 = vperm.xlu0 %1768, %v1719
        %v1770 = vpop.permute.xlu0 %1769
        %1773 = vset.pattern.permute.xlu0 0
        %1774 = vperm.xlu0 %1773, %v1720
        %v1775 = vpop.permute.xlu0 %1774
        %1778 = vset.pattern.permute.xlu0 0
        %1779 = vperm.xlu0 %1778, %v1721
        %v1780 = vpop.permute.xlu0 %1779
        %1783 = vset.pattern.permute.xlu0 0
        %1784 = vperm.xlu0 %1783, %v1722
        %v1785 = vpop.permute.xlu0 %1784
        %1788 = vset.pattern.permute.xlu0 0
        %1789 = vperm.xlu0 %1788, %v1723
        %v1790 = vpop.permute.xlu0 %1789
        %1793 = vset.pattern.permute.xlu0 0
        %1794 = vperm.xlu0 %1793, %v1724
        %v1795 = vpop.permute.xlu0 %1794
        %1798 = vset.pattern.permute.xlu0 0
        %1799 = vperm.xlu0 %1798, %v1725
        %v1800 = vpop.permute.xlu0 %1799
        %1803 = vset.pattern.permute.xlu0 0
        %1804 = vperm.xlu0 %1803, %v1726
        %v1805 = vpop.permute.xlu0 %1804
        %v1808 = vsel %vm522, %v1699, 0
        %v1811 = vsel %vm522, %v1700, 0
        %v1814 = vsel %vm522, %v1701, 0
        %v1817 = vsel %vm522, %v1702, 0
        %v1820 = vsel %vm522, %v1703, 0
        %v1823 = vsel %vm522, %v1704, 0
        %v1826 = vsel %vm522, %v1705, 0
        %v1829 = vsel %vm522, %v1706, 0
        %1831 = vmatprep.subr.bf16.mxu0 0
        %1832 = vmatpush1.bf16.msra.mxu0 0
        %1833 = vmatprep.subr.bf16.mxu0 0
        %1834 = vmatpush1.bf16.msra.mxu0 0
        %1835 = vmatprep.subr.bf16.mxu0 0
        %1836 = vmatpush1.bf16.msra.mxu0 0
        %1837 = vmatprep.subr.bf16.mxu0 0
        %1838 = vmatpush1.bf16.msra.mxu0 0
        %1839 = vmatprep.subr.bf16.mxu0 0
        %1840 = vmatpush1.bf16.msra.mxu0 0
        %1841 = vmatprep.subr.bf16.mxu0 0
        %1842 = vmatpush1.bf16.msra.mxu0 0
        %1843 = vmatprep.subr.bf16.mxu0 %v1710
        %1844 = vmatpush1.bf16.msra.mxu0 %v1709
        %1845 = vmatprep.subr.bf16.mxu0 %v1708
        %1846 = vmatpush1.bf16.msra.mxu0 %v1707
        %1847 = vmatprep.subr.bf16.mxu0 0
        %1848 = vmatpush2.bf16.msra.mxu0 0
        %1849 = vmatprep.subr.bf16.mxu0 0
        %1850 = vmatpush2.bf16.msra.mxu0 0
        %1851 = vmatprep.subr.bf16.mxu0 0
        %1852 = vmatpush2.bf16.msra.mxu0 0
        %1853 = vmatprep.subr.bf16.mxu0 0
        %1854 = vmatpush2.bf16.msra.mxu0 0
        %1855 = vmatprep.subr.bf16.mxu0 0
        %1856 = vmatpush2.bf16.msra.mxu0 0
        %1857 = vmatprep.subr.bf16.mxu0 0
        %1858 = vmatpush2.bf16.msra.mxu0 0
        %1859 = vmatprep.subr.bf16.mxu0 0
        %1860 = vmatpush2.bf16.msra.mxu0 0
        %1861 = vmatprep.subr.bf16.mxu0 0
        %1862 = vmatpush2.bf16.msra.mxu0 0
        %1863 = vmatprep.mubr.bf16.mxu0 0
        %1864 = vmatmul.mubr.bf16.gmra.mxu0 %v1808
        %v1865 = vpop.f32.mrf.mxu0
        %v1866 = vadd.f32 %v1730, %v1865
        %v1867 = vpop.f32.mrf.mxu0
        %v1868 = vadd.f32 %v1730, %v1867
        %v1869 = vpop.f32.mrf.mxu0
        %v1870 = vadd.f32 %v1735, %v1869
        %v1871 = vpop.f32.mrf.mxu0
        %v1872 = vadd.f32 %v1735, %v1871
        %1873 = vmatprep.mubr.bf16.mxu0 0
        %1874 = vmatmul.mubr.bf16.gmra.mxu0 %v1811
        %v1875 = vpop.f32.mrf.mxu0
        %v1876 = vadd.f32 %v1740, %v1875
        %v1877 = vpop.f32.mrf.mxu0
        %v1878 = vadd.f32 %v1740, %v1877
        %v1879 = vpop.f32.mrf.mxu0
        %v1880 = vadd.f32 %v1745, %v1879
        %v1881 = vpop.f32.mrf.mxu0
        %v1882 = vadd.f32 %v1745, %v1881
        %1883 = vmatprep.mubr.bf16.mxu0 0
        %1884 = vmatmul.mubr.bf16.gmra.mxu0 %v1814
        %v1885 = vpop.f32.mrf.mxu0
        %v1886 = vadd.f32 %v1750, %v1885
        %v1887 = vpop.f32.mrf.mxu0
        %v1888 = vadd.f32 %v1750, %v1887
        %v1889 = vpop.f32.mrf.mxu0
        %v1890 = vadd.f32 %v1755, %v1889
        %v1891 = vpop.f32.mrf.mxu0
        %v1892 = vadd.f32 %v1755, %v1891
        %1893 = vmatprep.mubr.bf16.mxu0 0
        %1894 = vmatmul.mubr.bf16.gmra.mxu0 %v1817
        %v1895 = vpop.f32.mrf.mxu0
        %v1896 = vadd.f32 %v1760, %v1895
        %v1897 = vpop.f32.mrf.mxu0
        %v1898 = vadd.f32 %v1760, %v1897
        %v1899 = vpop.f32.mrf.mxu0
        %v1900 = vadd.f32 %v1765, %v1899
        %v1901 = vpop.f32.mrf.mxu0
        %v1902 = vadd.f32 %v1765, %v1901
        %1903 = vmatprep.mubr.bf16.mxu0 0
        %1904 = vmatmul.mubr.bf16.gmra.mxu0 %v1820
        %v1905 = vpop.f32.mrf.mxu0
        %v1906 = vadd.f32 %v1770, %v1905
        %v1907 = vpop.f32.mrf.mxu0
        %v1908 = vadd.f32 %v1770, %v1907
        %v1909 = vpop.f32.mrf.mxu0
        %v1910 = vadd.f32 %v1775, %v1909
        %v1911 = vpop.f32.mrf.mxu0
        %v1912 = vadd.f32 %v1775, %v1911
        %1913 = vmatprep.mubr.bf16.mxu0 0
        %1914 = vmatmul.mubr.bf16.gmra.mxu0 %v1823
        %v1915 = vpop.f32.mrf.mxu0
        %v1916 = vadd.f32 %v1780, %v1915
        %v1917 = vpop.f32.mrf.mxu0
        %v1918 = vadd.f32 %v1780, %v1917
        %v1919 = vpop.f32.mrf.mxu0
        %v1920 = vadd.f32 %v1785, %v1919
        %v1921 = vpop.f32.mrf.mxu0
        %v1922 = vadd.f32 %v1785, %v1921
        %1923 = vmatprep.mubr.bf16.mxu0 0
        %1924 = vmatmul.mubr.bf16.gmra.mxu0 %v1826
        %v1925 = vpop.f32.mrf.mxu0
        %v1926 = vadd.f32 %v1790, %v1925
        %v1927 = vpop.f32.mrf.mxu0
        %v1928 = vadd.f32 %v1790, %v1927
        %v1929 = vpop.f32.mrf.mxu0
        %v1930 = vadd.f32 %v1795, %v1929
        %v1931 = vpop.f32.mrf.mxu0
        %v1932 = vadd.f32 %v1795, %v1931
        %1933 = vmatprep.mubr.bf16.mxu0 0
        %1934 = vmatmul.mubr.bf16.gmra.mxu0 %v1829
        %v1935 = vpop.f32.mrf.mxu0
        %v1936 = vadd.f32 %v1800, %v1935
        %v1937 = vpop.f32.mrf.mxu0
        %v1938 = vadd.f32 %v1800, %v1937
        %v1939 = vpop.f32.mrf.mxu0
        %v1940 = vadd.f32 %v1805, %v1939
        %v1941 = vpop.f32.mrf.mxu0
        %v1942 = vadd.f32 %v1805, %v1941
        %1943 = vdwg.mxu0
        %v1944 = vmul.f32 %v1866, 0.5
        %v1945 = vmul.f32 %v1868, 0.5
        %v1946 = vmul.f32 %v1870, 0.5
        %v1947 = vmul.f32 %v1872, 0.5
        %v1948 = vmul.f32 %v1876, 0.5
        %v1949 = vmul.f32 %v1878, 0.5
        %v1950 = vmul.f32 %v1880, 0.5
        %v1951 = vmul.f32 %v1882, 0.5
        %v1952 = vmul.f32 %v1886, 0.5
        %v1953 = vmul.f32 %v1888, 0.5
        %v1954 = vmul.f32 %v1890, 0.5
        %v1955 = vmul.f32 %v1892, 0.5
        %v1956 = vmul.f32 %v1896, 0.5
        %v1957 = vmul.f32 %v1898, 0.5
        %v1958 = vmul.f32 %v1900, 0.5
        %v1959 = vmul.f32 %v1902, 0.5
        %v1960 = vmul.f32 %v1906, 0.5
        %v1961 = vmul.f32 %v1908, 0.5
        %v1962 = vmul.f32 %v1910, 0.5
        %v1963 = vmul.f32 %v1912, 0.5
        %v1964 = vmul.f32 %v1916, 0.5
        %v1965 = vmul.f32 %v1918, 0.5
        %v1966 = vmul.f32 %v1920, 0.5
        %v1967 = vmul.f32 %v1922, 0.5
        %v1968 = vmul.f32 %v1926, 0.5
        %v1969 = vmul.f32 %v1928, 0.5
        %v1970 = vmul.f32 %v1930, 0.5
        %v1971 = vmul.f32 %v1932, 0.5
        %v1972 = vmul.f32 %v1936, 0.5
        %v1973 = vmul.f32 %v1938, 0.5
        %v1974 = vmul.f32 %v1940, 0.5
        %v1975 = vmul.f32 %v1942, 0.5
        %v1976 = vmul.f32 %v1866, 0.70710677
        %v1977 = vmul.f32 %v1868, 0.70710677
        %v1978 = vmul.f32 %v1870, 0.70710677
        %v1979 = vmul.f32 %v1872, 0.70710677
        %v1980 = vmul.f32 %v1876, 0.70710677
        %v1981 = vmul.f32 %v1878, 0.70710677
        %v1982 = vmul.f32 %v1880, 0.70710677
        %v1983 = vmul.f32 %v1882, 0.70710677
        %v1984 = vmul.f32 %v1886, 0.70710677
        %v1985 = vmul.f32 %v1888, 0.70710677
        %v1986 = vmul.f32 %v1890, 0.70710677
        %v1987 = vmul.f32 %v1892, 0.70710677
        %v1988 = vmul.f32 %v1896, 0.70710677
        %v1989 = vmul.f32 %v1898, 0.70710677
        %v1990 = vmul.f32 %v1900, 0.70710677
        %v1991 = vmul.f32 %v1902, 0.70710677
        %v1992 = vmul.f32 %v1906, 0.70710677
        %v1993 = vmul.f32 %v1908, 0.70710677
        %v1994 = vmul.f32 %v1910, 0.70710677
        %v1995 = vmul.f32 %v1912, 0.70710677
        %v1996 = vmul.f32 %v1916, 0.70710677
        %v1997 = vmul.f32 %v1918, 0.70710677
        %v1998 = vmul.f32 %v1920, 0.70710677
        %v1999 = vmul.f32 %v1922, 0.70710677
        %v2000 = vmul.f32 %v1926, 0.70710677
        %v2001 = vmul.f32 %v1928, 0.70710677
        %v2002 = vmul.f32 %v1930, 0.70710677
        %v2003 = vmul.f32 %v1932, 0.70710677
        %v2004 = vmul.f32 %v1936, 0.70710677
        %v2005 = vmul.f32 %v1938, 0.70710677
        %v2006 = vmul.f32 %v1940, 0.70710677
        %v2007 = vmul.f32 %v1942, 0.70710677
        %vm2008 = vcmp.ge.f32.partialorder %v1976, 0.0
        %vm2009 = vcmp.ge.f32.partialorder %v1977, 0.0
        %vm2010 = vcmp.ge.f32.partialorder %v1978, 0.0
        %vm2011 = vcmp.ge.f32.partialorder %v1979, 0.0
        %vm2012 = vcmp.ge.f32.partialorder %v1980, 0.0
        %vm2013 = vcmp.ge.f32.partialorder %v1981, 0.0
        %vm2014 = vcmp.ge.f32.partialorder %v1982, 0.0
        %vm2015 = vcmp.ge.f32.partialorder %v1983, 0.0
        %vm2016 = vcmp.ge.f32.partialorder %v1984, 0.0
        %vm2017 = vcmp.ge.f32.partialorder %v1985, 0.0
        %vm2018 = vcmp.ge.f32.partialorder %v1986, 0.0
        %vm2019 = vcmp.ge.f32.partialorder %v1987, 0.0
        %vm2020 = vcmp.ge.f32.partialorder %v1988, 0.0
        %vm2021 = vcmp.ge.f32.partialorder %v1989, 0.0
        %vm2022 = vcmp.ge.f32.partialorder %v1990, 0.0
        %vm2023 = vcmp.ge.f32.partialorder %v1991, 0.0
        %vm2024 = vcmp.ge.f32.partialorder %v1992, 0.0
        %vm2025 = vcmp.ge.f32.partialorder %v1993, 0.0
        %vm2026 = vcmp.ge.f32.partialorder %v1994, 0.0
        %vm2027 = vcmp.ge.f32.partialorder %v1995, 0.0
        %vm2028 = vcmp.ge.f32.partialorder %v1996, 0.0
        %vm2029 = vcmp.ge.f32.partialorder %v1997, 0.0
        %vm2030 = vcmp.ge.f32.partialorder %v1998, 0.0
        %vm2031 = vcmp.ge.f32.partialorder %v1999, 0.0
        %vm2032 = vcmp.ge.f32.partialorder %v2000, 0.0
        %vm2033 = vcmp.ge.f32.partialorder %v2001, 0.0
        %vm2034 = vcmp.ge.f32.partialorder %v2002, 0.0
        %vm2035 = vcmp.ge.f32.partialorder %v2003, 0.0
        %vm2036 = vcmp.ge.f32.partialorder %v2004, 0.0
        %vm2037 = vcmp.ge.f32.partialorder %v2005, 0.0
        %vm2038 = vcmp.ge.f32.partialorder %v2006, 0.0
        %vm2039 = vcmp.ge.f32.partialorder %v2007, 0.0
        %v2040 = vsel %vm2008, 1.0, -1.0
        %v2041 = vsel %vm2009, 1.0, -1.0
        %v2042 = vsel %vm2010, 1.0, -1.0
        %v2043 = vsel %vm2011, 1.0, -1.0
        %v2044 = vsel %vm2012, 1.0, -1.0
        %v2045 = vsel %vm2013, 1.0, -1.0
        %v2046 = vsel %vm2014, 1.0, -1.0
        %v2047 = vsel %vm2015, 1.0, -1.0
        %v2048 = vsel %vm2016, 1.0, -1.0
        %v2049 = vsel %vm2017, 1.0, -1.0
        %v2050 = vsel %vm2018, 1.0, -1.0
        %v2051 = vsel %vm2019, 1.0, -1.0
        %v2052 = vsel %vm2020, 1.0, -1.0
        %v2053 = vsel %vm2021, 1.0, -1.0
        %v2054 = vsel %vm2022, 1.0, -1.0
        %v2055 = vsel %vm2023, 1.0, -1.0
        %v2056 = vsel %vm2024, 1.0, -1.0
        %v2057 = vsel %vm2025, 1.0, -1.0
        %v2058 = vsel %vm2026, 1.0, -1.0
        %v2059 = vsel %vm2027, 1.0, -1.0
        %v2060 = vsel %vm2028, 1.0, -1.0
        %v2061 = vsel %vm2029, 1.0, -1.0
        %v2062 = vsel %vm2030, 1.0, -1.0
        %v2063 = vsel %vm2031, 1.0, -1.0
        %v2064 = vsel %vm2032, 1.0, -1.0
        %v2065 = vsel %vm2033, 1.0, -1.0
        %v2066 = vsel %vm2034, 1.0, -1.0
        %v2067 = vsel %vm2035, 1.0, -1.0
        %v2068 = vsel %vm2036, 1.0, -1.0
        %v2069 = vsel %vm2037, 1.0, -1.0
        %v2070 = vsel %vm2038, 1.0, -1.0
        %v2071 = vsel %vm2039, 1.0, -1.0
        %v2072 = vand.u32 2147483647, %v1976
        %v2073 = vand.u32 2147483647, %v1977
        %v2074 = vand.u32 2147483647, %v1978
        %v2075 = vand.u32 2147483647, %v1979
        %v2076 = vand.u32 2147483647, %v1980
        %v2077 = vand.u32 2147483647, %v1981
        %v2078 = vand.u32 2147483647, %v1982
        %v2079 = vand.u32 2147483647, %v1983
        %v2080 = vand.u32 2147483647, %v1984
        %v2081 = vand.u32 2147483647, %v1985
        %v2082 = vand.u32 2147483647, %v1986
        %v2083 = vand.u32 2147483647, %v1987
        %v2084 = vand.u32 2147483647, %v1988
        %v2085 = vand.u32 2147483647, %v1989
        %v2086 = vand.u32 2147483647, %v1990
        %v2087 = vand.u32 2147483647, %v1991
        %v2088 = vand.u32 2147483647, %v1992
        %v2089 = vand.u32 2147483647, %v1993
        %v2090 = vand.u32 2147483647, %v1994
        %v2091 = vand.u32 2147483647, %v1995
        %v2092 = vand.u32 2147483647, %v1996
        %v2093 = vand.u32 2147483647, %v1997
        %v2094 = vand.u32 2147483647, %v1998
        %v2095 = vand.u32 2147483647, %v1999
        %v2096 = vand.u32 2147483647, %v2000
        %v2097 = vand.u32 2147483647, %v2001
        %v2098 = vand.u32 2147483647, %v2002
        %v2099 = vand.u32 2147483647, %v2003
        %v2100 = vand.u32 2147483647, %v2004
        %v2101 = vand.u32 2147483647, %v2005
        %v2102 = vand.u32 2147483647, %v2006
        %v2103 = vand.u32 2147483647, %v2007
        %v2104 = vmul.f32 %v2072, 0.3275911
        %v2105 = vmul.f32 %v2073, 0.3275911
        %v2106 = vmul.f32 %v2074, 0.3275911
        %v2107 = vmul.f32 %v2075, 0.3275911
        %v2108 = vmul.f32 %v2076, 0.3275911
        %v2109 = vmul.f32 %v2077, 0.3275911
        %v2110 = vmul.f32 %v2078, 0.3275911
        %v2111 = vmul.f32 %v2079, 0.3275911
        %v2112 = vmul.f32 %v2080, 0.3275911
        %v2113 = vmul.f32 %v2081, 0.3275911
        %v2114 = vmul.f32 %v2082, 0.3275911
        %v2115 = vmul.f32 %v2083, 0.3275911
        %v2116 = vmul.f32 %v2084, 0.3275911
        %v2117 = vmul.f32 %v2085, 0.3275911
        %v2118 = vmul.f32 %v2086, 0.3275911
        %v2119 = vmul.f32 %v2087, 0.3275911
        %v2120 = vmul.f32 %v2088, 0.3275911
        %v2121 = vmul.f32 %v2089, 0.3275911
        %v2122 = vmul.f32 %v2090, 0.3275911
        %v2123 = vmul.f32 %v2091, 0.3275911
        %v2124 = vmul.f32 %v2092, 0.3275911
        %v2125 = vmul.f32 %v2093, 0.3275911
        %v2126 = vmul.f32 %v2094, 0.3275911
        %v2127 = vmul.f32 %v2095, 0.3275911
        %v2128 = vmul.f32 %v2096, 0.3275911
        %v2129 = vmul.f32 %v2097, 0.3275911
        %v2130 = vmul.f32 %v2098, 0.3275911
        %v2131 = vmul.f32 %v2099, 0.3275911
        %v2132 = vmul.f32 %v2100, 0.3275911
        %v2133 = vmul.f32 %v2101, 0.3275911
        %v2134 = vmul.f32 %v2102, 0.3275911
        %v2135 = vmul.f32 %v2103, 0.3275911
        %v2136 = vadd.f32 %v2104, 1.0
        %v2137 = vadd.f32 %v2105, 1.0
        %v2138 = vadd.f32 %v2106, 1.0
        %v2139 = vadd.f32 %v2107, 1.0
        %v2140 = vadd.f32 %v2108, 1.0
        %v2141 = vadd.f32 %v2109, 1.0
        %v2142 = vadd.f32 %v2110, 1.0
        %v2143 = vadd.f32 %v2111, 1.0
        %v2144 = vadd.f32 %v2112, 1.0
        %v2145 = vadd.f32 %v2113, 1.0
        %v2146 = vadd.f32 %v2114, 1.0
        %v2147 = vadd.f32 %v2115, 1.0
        %v2148 = vadd.f32 %v2116, 1.0
        %v2149 = vadd.f32 %v2117, 1.0
        %v2150 = vadd.f32 %v2118, 1.0
        %v2151 = vadd.f32 %v2119, 1.0
        %v2152 = vadd.f32 %v2120, 1.0
        %v2153 = vadd.f32 %v2121, 1.0
        %v2154 = vadd.f32 %v2122, 1.0
        %v2155 = vadd.f32 %v2123, 1.0
        %v2156 = vadd.f32 %v2124, 1.0
        %v2157 = vadd.f32 %v2125, 1.0
        %v2158 = vadd.f32 %v2126, 1.0
        %v2159 = vadd.f32 %v2127, 1.0
        %v2160 = vadd.f32 %v2128, 1.0
        %v2161 = vadd.f32 %v2129, 1.0
        %v2162 = vadd.f32 %v2130, 1.0
        %v2163 = vadd.f32 %v2131, 1.0
        %v2164 = vadd.f32 %v2132, 1.0
        %v2165 = vadd.f32 %v2133, 1.0
        %v2166 = vadd.f32 %v2134, 1.0
        %v2167 = vadd.f32 %v2135, 1.0
        %v2168 = vrcp.pop %v2136
        %v2169 = vmul.f32 1.0, %v2168
        %v2170 = vrcp.pop %v2137
        %v2171 = vmul.f32 1.0, %v2170
        %v2172 = vrcp.pop %v2138
        %v2173 = vmul.f32 1.0, %v2172
        %v2174 = vrcp.pop %v2139
        %v2175 = vmul.f32 1.0, %v2174
        %v2176 = vrcp.pop %v2140
        %v2177 = vmul.f32 1.0, %v2176
        %v2178 = vrcp.pop %v2141
        %v2179 = vmul.f32 1.0, %v2178
        %v2180 = vrcp.pop %v2142
        %v2181 = vmul.f32 1.0, %v2180
        %v2182 = vrcp.pop %v2143
        %v2183 = vmul.f32 1.0, %v2182
        %v2184 = vrcp.pop %v2144
        %v2185 = vmul.f32 1.0, %v2184
        %v2186 = vrcp.pop %v2145
        %v2187 = vmul.f32 1.0, %v2186
        %v2188 = vrcp.pop %v2146
        %v2189 = vmul.f32 1.0, %v2188
        %v2190 = vrcp.pop %v2147
        %v2191 = vmul.f32 1.0, %v2190
        %v2192 = vrcp.pop %v2148
        %v2193 = vmul.f32 1.0, %v2192
        %v2194 = vrcp.pop %v2149
        %v2195 = vmul.f32 1.0, %v2194
        %v2196 = vrcp.pop %v2150
        %v2197 = vmul.f32 1.0, %v2196
        %v2198 = vrcp.pop %v2151
        %v2199 = vmul.f32 1.0, %v2198
        %v2200 = vrcp.pop %v2152
        %v2201 = vmul.f32 1.0, %v2200
        %v2202 = vrcp.pop %v2153
        %v2203 = vmul.f32 1.0, %v2202
        %v2204 = vrcp.pop %v2154
        %v2205 = vmul.f32 1.0, %v2204
        %v2206 = vrcp.pop %v2155
        %v2207 = vmul.f32 1.0, %v2206
        %v2208 = vrcp.pop %v2156
        %v2209 = vmul.f32 1.0, %v2208
        %v2210 = vrcp.pop %v2157
        %v2211 = vmul.f32 1.0, %v2210
        %v2212 = vrcp.pop %v2158
        %v2213 = vmul.f32 1.0, %v2212
        %v2214 = vrcp.pop %v2159
        %v2215 = vmul.f32 1.0, %v2214
        %v2216 = vrcp.pop %v2160
        %v2217 = vmul.f32 1.0, %v2216
        %v2218 = vrcp.pop %v2161
        %v2219 = vmul.f32 1.0, %v2218
        %v2220 = vrcp.pop %v2162
        %v2221 = vmul.f32 1.0, %v2220
        %v2222 = vrcp.pop %v2163
        %v2223 = vmul.f32 1.0, %v2222
        %v2224 = vrcp.pop %v2164
        %v2225 = vmul.f32 1.0, %v2224
        %v2226 = vrcp.pop %v2165
        %v2227 = vmul.f32 1.0, %v2226
        %v2228 = vrcp.pop %v2166
        %v2229 = vmul.f32 1.0, %v2228
        %v2230 = vrcp.pop %v2167
        %v2231 = vmul.f32 1.0, %v2230
        %v2232 = vmul.f32 %v2169, 1.0614054
        %v2233 = vmul.f32 %v2171, 1.0614054
        %v2234 = vmul.f32 %v2173, 1.0614054
        %v2235 = vmul.f32 %v2175, 1.0614054
        %v2236 = vmul.f32 %v2177, 1.0614054
        %v2237 = vmul.f32 %v2179, 1.0614054
        %v2238 = vmul.f32 %v2181, 1.0614054
        %v2239 = vmul.f32 %v2183, 1.0614054
        %v2240 = vmul.f32 %v2185, 1.0614054
        %v2241 = vmul.f32 %v2187, 1.0614054
        %v2242 = vmul.f32 %v2189, 1.0614054
        %v2243 = vmul.f32 %v2191, 1.0614054
        %v2244 = vmul.f32 %v2193, 1.0614054
        %v2245 = vmul.f32 %v2195, 1.0614054
        %v2246 = vmul.f32 %v2197, 1.0614054
        %v2247 = vmul.f32 %v2199, 1.0614054
        %v2248 = vmul.f32 %v2201, 1.0614054
        %v2249 = vmul.f32 %v2203, 1.0614054
        %v2250 = vmul.f32 %v2205, 1.0614054
        %v2251 = vmul.f32 %v2207, 1.0614054
        %v2252 = vmul.f32 %v2209, 1.0614054
        %v2253 = vmul.f32 %v2211, 1.0614054
        %v2254 = vmul.f32 %v2213, 1.0614054
        %v2255 = vmul.f32 %v2215, 1.0614054
        %v2256 = vmul.f32 %v2217, 1.0614054
        %v2257 = vmul.f32 %v2219, 1.0614054
        %v2258 = vmul.f32 %v2221, 1.0614054
        %v2259 = vmul.f32 %v2223, 1.0614054
        %v2260 = vmul.f32 %v2225, 1.0614054
        %v2261 = vmul.f32 %v2227, 1.0614054
        %v2262 = vmul.f32 %v2229, 1.0614054
        %v2263 = vmul.f32 %v2231, 1.0614054
        %v2264 = vadd.f32 %v2232, -1.4531521
        %v2265 = vadd.f32 %v2233, -1.4531521
        %v2266 = vadd.f32 %v2234, -1.4531521
        %v2267 = vadd.f32 %v2235, -1.4531521
        %v2268 = vadd.f32 %v2236, -1.4531521
        %v2269 = vadd.f32 %v2237, -1.4531521
        %v2270 = vadd.f32 %v2238, -1.4531521
        %v2271 = vadd.f32 %v2239, -1.4531521
        %v2272 = vadd.f32 %v2240, -1.4531521
        %v2273 = vadd.f32 %v2241, -1.4531521
        %v2274 = vadd.f32 %v2242, -1.4531521
        %v2275 = vadd.f32 %v2243, -1.4531521
        %v2276 = vadd.f32 %v2244, -1.4531521
        %v2277 = vadd.f32 %v2245, -1.4531521
        %v2278 = vadd.f32 %v2246, -1.4531521
        %v2279 = vadd.f32 %v2247, -1.4531521
        %v2280 = vadd.f32 %v2248, -1.4531521
        %v2281 = vadd.f32 %v2249, -1.4531521
        %v2282 = vadd.f32 %v2250, -1.4531521
        %v2283 = vadd.f32 %v2251, -1.4531521
        %v2284 = vadd.f32 %v2252, -1.4531521
        %v2285 = vadd.f32 %v2253, -1.4531521
        %v2286 = vadd.f32 %v2254, -1.4531521
        %v2287 = vadd.f32 %v2255, -1.4531521
        %v2288 = vadd.f32 %v2256, -1.4531521
        %v2289 = vadd.f32 %v2257, -1.4531521
        %v2290 = vadd.f32 %v2258, -1.4531521
        %v2291 = vadd.f32 %v2259, -1.4531521
        %v2292 = vadd.f32 %v2260, -1.4531521
        %v2293 = vadd.f32 %v2261, -1.4531521
        %v2294 = vadd.f32 %v2262, -1.4531521
        %v2295 = vadd.f32 %v2263, -1.4531521
        %v2296 = vmul.f32 %v2264, %v2169
        %v2297 = vmul.f32 %v2265, %v2171
        %v2298 = vmul.f32 %v2266, %v2173
        %v2299 = vmul.f32 %v2267, %v2175
        %v2300 = vmul.f32 %v2268, %v2177
        %v2301 = vmul.f32 %v2269, %v2179
        %v2302 = vmul.f32 %v2270, %v2181
        %v2303 = vmul.f32 %v2271, %v2183
        %v2304 = vmul.f32 %v2272, %v2185
        %v2305 = vmul.f32 %v2273, %v2187
        %v2306 = vmul.f32 %v2274, %v2189
        %v2307 = vmul.f32 %v2275, %v2191
        %v2308 = vmul.f32 %v2276, %v2193
        %v2309 = vmul.f32 %v2277, %v2195
        %v2310 = vmul.f32 %v2278, %v2197
        %v2311 = vmul.f32 %v2279, %v2199
        %v2312 = vmul.f32 %v2280, %v2201
        %v2313 = vmul.f32 %v2281, %v2203
        %v2314 = vmul.f32 %v2282, %v2205
        %v2315 = vmul.f32 %v2283, %v2207
        %v2316 = vmul.f32 %v2284, %v2209
        %v2317 = vmul.f32 %v2285, %v2211
        %v2318 = vmul.f32 %v2286, %v2213
        %v2319 = vmul.f32 %v2287, %v2215
        %v2320 = vmul.f32 %v2288, %v2217
        %v2321 = vmul.f32 %v2289, %v2219
        %v2322 = vmul.f32 %v2290, %v2221
        %v2323 = vmul.f32 %v2291, %v2223
        %v2324 = vmul.f32 %v2292, %v2225
        %v2325 = vmul.f32 %v2293, %v2227
        %v2326 = vmul.f32 %v2294, %v2229
        %v2327 = vmul.f32 %v2295, %v2231
        %v2328 = vadd.f32 %v2296, 1.4214138
        %v2329 = vadd.f32 %v2297, 1.4214138
        %v2330 = vadd.f32 %v2298, 1.4214138
        %v2331 = vadd.f32 %v2299, 1.4214138
        %v2332 = vadd.f32 %v2300, 1.4214138
        %v2333 = vadd.f32 %v2301, 1.4214138
        %v2334 = vadd.f32 %v2302, 1.4214138
        %v2335 = vadd.f32 %v2303, 1.4214138
        %v2336 = vadd.f32 %v2304, 1.4214138
        %v2337 = vadd.f32 %v2305, 1.4214138
        %v2338 = vadd.f32 %v2306, 1.4214138
        %v2339 = vadd.f32 %v2307, 1.4214138
        %v2340 = vadd.f32 %v2308, 1.4214138
        %v2341 = vadd.f32 %v2309, 1.4214138
        %v2342 = vadd.f32 %v2310, 1.4214138
        %v2343 = vadd.f32 %v2311, 1.4214138
        %v2344 = vadd.f32 %v2312, 1.4214138
        %v2345 = vadd.f32 %v2313, 1.4214138
        %v2346 = vadd.f32 %v2314, 1.4214138
        %v2347 = vadd.f32 %v2315, 1.4214138
        %v2348 = vadd.f32 %v2316, 1.4214138
        %v2349 = vadd.f32 %v2317, 1.4214138
        %v2350 = vadd.f32 %v2318, 1.4214138
        %v2351 = vadd.f32 %v2319, 1.4214138
        %v2352 = vadd.f32 %v2320, 1.4214138
        %v2353 = vadd.f32 %v2321, 1.4214138
        %v2354 = vadd.f32 %v2322, 1.4214138
        %v2355 = vadd.f32 %v2323, 1.4214138
        %v2356 = vadd.f32 %v2324, 1.4214138
        %v2357 = vadd.f32 %v2325, 1.4214138
        %v2358 = vadd.f32 %v2326, 1.4214138
        %v2359 = vadd.f32 %v2327, 1.4214138
        %v2360 = vmul.f32 %v2328, %v2169
        %v2361 = vmul.f32 %v2329, %v2171
        %v2362 = vmul.f32 %v2330, %v2173
        %v2363 = vmul.f32 %v2331, %v2175
        %v2364 = vmul.f32 %v2332, %v2177
        %v2365 = vmul.f32 %v2333, %v2179
        %v2366 = vmul.f32 %v2334, %v2181
        %v2367 = vmul.f32 %v2335, %v2183
        %v2368 = vmul.f32 %v2336, %v2185
        %v2369 = vmul.f32 %v2337, %v2187
        %v2370 = vmul.f32 %v2338, %v2189
        %v2371 = vmul.f32 %v2339, %v2191
        %v2372 = vmul.f32 %v2340, %v2193
        %v2373 = vmul.f32 %v2341, %v2195
        %v2374 = vmul.f32 %v2342, %v2197
        %v2375 = vmul.f32 %v2343, %v2199
        %v2376 = vmul.f32 %v2344, %v2201
        %v2377 = vmul.f32 %v2345, %v2203
        %v2378 = vmul.f32 %v2346, %v2205
        %v2379 = vmul.f32 %v2347, %v2207
        %v2380 = vmul.f32 %v2348, %v2209
        %v2381 = vmul.f32 %v2349, %v2211
        %v2382 = vmul.f32 %v2350, %v2213
        %v2383 = vmul.f32 %v2351, %v2215
        %v2384 = vmul.f32 %v2352, %v2217
        %v2385 = vmul.f32 %v2353, %v2219
        %v2386 = vmul.f32 %v2354, %v2221
        %v2387 = vmul.f32 %v2355, %v2223
        %v2388 = vmul.f32 %v2356, %v2225
        %v2389 = vmul.f32 %v2357, %v2227
        %v2390 = vmul.f32 %v2358, %v2229
        %v2391 = vmul.f32 %v2359, %v2231
        %v2392 = vadd.f32 %v2360, -0.28449672
        %v2393 = vadd.f32 %v2361, -0.28449672
        %v2394 = vadd.f32 %v2362, -0.28449672
        %v2395 = vadd.f32 %v2363, -0.28449672
        %v2396 = vadd.f32 %v2364, -0.28449672
        %v2397 = vadd.f32 %v2365, -0.28449672
        %v2398 = vadd.f32 %v2366, -0.28449672
        %v2399 = vadd.f32 %v2367, -0.28449672
        %v2400 = vadd.f32 %v2368, -0.28449672
        %v2401 = vadd.f32 %v2369, -0.28449672
        %v2402 = vadd.f32 %v2370, -0.28449672
        %v2403 = vadd.f32 %v2371, -0.28449672
        %v2404 = vadd.f32 %v2372, -0.28449672
        %v2405 = vadd.f32 %v2373, -0.28449672
        %v2406 = vadd.f32 %v2374, -0.28449672
        %v2407 = vadd.f32 %v2375, -0.28449672
        %v2408 = vadd.f32 %v2376, -0.28449672
        %v2409 = vadd.f32 %v2377, -0.28449672
        %v2410 = vadd.f32 %v2378, -0.28449672
        %v2411 = vadd.f32 %v2379, -0.28449672
        %v2412 = vadd.f32 %v2380, -0.28449672
        %v2413 = vadd.f32 %v2381, -0.28449672
        %v2414 = vadd.f32 %v2382, -0.28449672
        %v2415 = vadd.f32 %v2383, -0.28449672
        %v2416 = vadd.f32 %v2384, -0.28449672
        %v2417 = vadd.f32 %v2385, -0.28449672
        %v2418 = vadd.f32 %v2386, -0.28449672
        %v2419 = vadd.f32 %v2387, -0.28449672
        %v2420 = vadd.f32 %v2388, -0.28449672
        %v2421 = vadd.f32 %v2389, -0.28449672
        %v2422 = vadd.f32 %v2390, -0.28449672
        %v2423 = vadd.f32 %v2391, -0.28449672
        %v2424 = vmul.f32 %v2392, %v2169
        %v2425 = vmul.f32 %v2393, %v2171
        %v2426 = vmul.f32 %v2394, %v2173
        %v2427 = vmul.f32 %v2395, %v2175
        %v2428 = vmul.f32 %v2396, %v2177
        %v2429 = vmul.f32 %v2397, %v2179
        %v2430 = vmul.f32 %v2398, %v2181
        %v2431 = vmul.f32 %v2399, %v2183
        %v2432 = vmul.f32 %v2400, %v2185
        %v2433 = vmul.f32 %v2401, %v2187
        %v2434 = vmul.f32 %v2402, %v2189
        %v2435 = vmul.f32 %v2403, %v2191
        %v2436 = vmul.f32 %v2404, %v2193
        %v2437 = vmul.f32 %v2405, %v2195
        %v2438 = vmul.f32 %v2406, %v2197
        %v2439 = vmul.f32 %v2407, %v2199
        %v2440 = vmul.f32 %v2408, %v2201
        %v2441 = vmul.f32 %v2409, %v2203
        %v2442 = vmul.f32 %v2410, %v2205
        %v2443 = vmul.f32 %v2411, %v2207
        %v2444 = vmul.f32 %v2412, %v2209
        %v2445 = vmul.f32 %v2413, %v2211
        %v2446 = vmul.f32 %v2414, %v2213
        %v2447 = vmul.f32 %v2415, %v2215
        %v2448 = vmul.f32 %v2416, %v2217
        %v2449 = vmul.f32 %v2417, %v2219
        %v2450 = vmul.f32 %v2418, %v2221
        %v2451 = vmul.f32 %v2419, %v2223
        %v2452 = vmul.f32 %v2420, %v2225
        %v2453 = vmul.f32 %v2421, %v2227
        %v2454 = vmul.f32 %v2422, %v2229
        %v2455 = vmul.f32 %v2423, %v2231
        %v2456 = vadd.f32 %v2424, 0.2548296
        %v2457 = vadd.f32 %v2425, 0.2548296
        %v2458 = vadd.f32 %v2426, 0.2548296
        %v2459 = vadd.f32 %v2427, 0.2548296
        %v2460 = vadd.f32 %v2428, 0.2548296
        %v2461 = vadd.f32 %v2429, 0.2548296
        %v2462 = vadd.f32 %v2430, 0.2548296
        %v2463 = vadd.f32 %v2431, 0.2548296
        %v2464 = vadd.f32 %v2432, 0.2548296
        %v2465 = vadd.f32 %v2433, 0.2548296
        %v2466 = vadd.f32 %v2434, 0.2548296
        %v2467 = vadd.f32 %v2435, 0.2548296
        %v2468 = vadd.f32 %v2436, 0.2548296
        %v2469 = vadd.f32 %v2437, 0.2548296
        %v2470 = vadd.f32 %v2438, 0.2548296
        %v2471 = vadd.f32 %v2439, 0.2548296
        %v2472 = vadd.f32 %v2440, 0.2548296
        %v2473 = vadd.f32 %v2441, 0.2548296
        %v2474 = vadd.f32 %v2442, 0.2548296
        %v2475 = vadd.f32 %v2443, 0.2548296
        %v2476 = vadd.f32 %v2444, 0.2548296
        %v2477 = vadd.f32 %v2445, 0.2548296
        %v2478 = vadd.f32 %v2446, 0.2548296
        %v2479 = vadd.f32 %v2447, 0.2548296
        %v2480 = vadd.f32 %v2448, 0.2548296
        %v2481 = vadd.f32 %v2449, 0.2548296
        %v2482 = vadd.f32 %v2450, 0.2548296
        %v2483 = vadd.f32 %v2451, 0.2548296
        %v2484 = vadd.f32 %v2452, 0.2548296
        %v2485 = vadd.f32 %v2453, 0.2548296
        %v2486 = vadd.f32 %v2454, 0.2548296
        %v2487 = vadd.f32 %v2455, 0.2548296
        %v2488 = vmul.f32 %v2456, %v2169
        %v2489 = vmul.f32 %v2457, %v2171
        %v2490 = vmul.f32 %v2458, %v2173
        %v2491 = vmul.f32 %v2459, %v2175
        %v2492 = vmul.f32 %v2460, %v2177
        %v2493 = vmul.f32 %v2461, %v2179
        %v2494 = vmul.f32 %v2462, %v2181
        %v2495 = vmul.f32 %v2463, %v2183
        %v2496 = vmul.f32 %v2464, %v2185
        %v2497 = vmul.f32 %v2465, %v2187
        %v2498 = vmul.f32 %v2466, %v2189
        %v2499 = vmul.f32 %v2467, %v2191
        %v2500 = vmul.f32 %v2468, %v2193
        %v2501 = vmul.f32 %v2469, %v2195
        %v2502 = vmul.f32 %v2470, %v2197
        %v2503 = vmul.f32 %v2471, %v2199
        %v2504 = vmul.f32 %v2472, %v2201
        %v2505 = vmul.f32 %v2473, %v2203
        %v2506 = vmul.f32 %v2474, %v2205
        %v2507 = vmul.f32 %v2475, %v2207
        %v2508 = vmul.f32 %v2476, %v2209
        %v2509 = vmul.f32 %v2477, %v2211
        %v2510 = vmul.f32 %v2478, %v2213
        %v2511 = vmul.f32 %v2479, %v2215
        %v2512 = vmul.f32 %v2480, %v2217
        %v2513 = vmul.f32 %v2481, %v2219
        %v2514 = vmul.f32 %v2482, %v2221
        %v2515 = vmul.f32 %v2483, %v2223
        %v2516 = vmul.f32 %v2484, %v2225
        %v2517 = vmul.f32 %v2485, %v2227
        %v2518 = vmul.f32 %v2486, %v2229
        %v2519 = vmul.f32 %v2487, %v2231
        %v2520 = vsub.f32 0.0, %v2072
        %v2521 = vsub.f32 0.0, %v2073
        %v2522 = vsub.f32 0.0, %v2074
        %v2523 = vsub.f32 0.0, %v2075
        %v2524 = vsub.f32 0.0, %v2076
        %v2525 = vsub.f32 0.0, %v2077
        %v2526 = vsub.f32 0.0, %v2078
        %v2527 = vsub.f32 0.0, %v2079
        %v2528 = vsub.f32 0.0, %v2080
        %v2529 = vsub.f32 0.0, %v2081
        %v2530 = vsub.f32 0.0, %v2082
        %v2531 = vsub.f32 0.0, %v2083
        %v2532 = vsub.f32 0.0, %v2084
        %v2533 = vsub.f32 0.0, %v2085
        %v2534 = vsub.f32 0.0, %v2086
        %v2535 = vsub.f32 0.0, %v2087
        %v2536 = vsub.f32 0.0, %v2088
        %v2537 = vsub.f32 0.0, %v2089
        %v2538 = vsub.f32 0.0, %v2090
        %v2539 = vsub.f32 0.0, %v2091
        %v2540 = vsub.f32 0.0, %v2092
        %v2541 = vsub.f32 0.0, %v2093
        %v2542 = vsub.f32 0.0, %v2094
        %v2543 = vsub.f32 0.0, %v2095
        %v2544 = vsub.f32 0.0, %v2096
        %v2545 = vsub.f32 0.0, %v2097
        %v2546 = vsub.f32 0.0, %v2098
        %v2547 = vsub.f32 0.0, %v2099
        %v2548 = vsub.f32 0.0, %v2100
        %v2549 = vsub.f32 0.0, %v2101
        %v2550 = vsub.f32 0.0, %v2102
        %v2551 = vsub.f32 0.0, %v2103
        %v2552 = vmul.f32 %v2520, %v2072
        %v2553 = vmul.f32 %v2521, %v2073
        %v2554 = vmul.f32 %v2522, %v2074
        %v2555 = vmul.f32 %v2523, %v2075
        %v2556 = vmul.f32 %v2524, %v2076
        %v2557 = vmul.f32 %v2525, %v2077
        %v2558 = vmul.f32 %v2526, %v2078
        %v2559 = vmul.f32 %v2527, %v2079
        %v2560 = vmul.f32 %v2528, %v2080
        %v2561 = vmul.f32 %v2529, %v2081
        %v2562 = vmul.f32 %v2530, %v2082
        %v2563 = vmul.f32 %v2531, %v2083
        %v2564 = vmul.f32 %v2532, %v2084
        %v2565 = vmul.f32 %v2533, %v2085
        %v2566 = vmul.f32 %v2534, %v2086
        %v2567 = vmul.f32 %v2535, %v2087
        %v2568 = vmul.f32 %v2536, %v2088
        %v2569 = vmul.f32 %v2537, %v2089
        %v2570 = vmul.f32 %v2538, %v2090
        %v2571 = vmul.f32 %v2539, %v2091
        %v2572 = vmul.f32 %v2540, %v2092
        %v2573 = vmul.f32 %v2541, %v2093
        %v2574 = vmul.f32 %v2542, %v2094
        %v2575 = vmul.f32 %v2543, %v2095
        %v2576 = vmul.f32 %v2544, %v2096
        %v2577 = vmul.f32 %v2545, %v2097
        %v2578 = vmul.f32 %v2546, %v2098
        %v2579 = vmul.f32 %v2547, %v2099
        %v2580 = vmul.f32 %v2548, %v2100
        %v2581 = vmul.f32 %v2549, %v2101
        %v2582 = vmul.f32 %v2550, %v2102
        %v2583 = vmul.f32 %v2551, %v2103
        %v2584 = vmul.f32 %v2552, 1.442695
        %v2585 = vpow.pop %v2584
        %v2586 = vmul.f32 %v2553, 1.442695
        %v2587 = vpow.pop %v2586
        %v2588 = vmul.f32 %v2554, 1.442695
        %v2589 = vpow.pop %v2588
        %v2590 = vmul.f32 %v2555, 1.442695
        %v2591 = vpow.pop %v2590
        %v2592 = vmul.f32 %v2556, 1.442695
        %v2593 = vpow.pop %v2592
        %v2594 = vmul.f32 %v2557, 1.442695
        %v2595 = vpow.pop %v2594
        %v2596 = vmul.f32 %v2558, 1.442695
        %v2597 = vpow.pop %v2596
        %v2598 = vmul.f32 %v2559, 1.442695
        %v2599 = vpow.pop %v2598
        %v2600 = vmul.f32 %v2560, 1.442695
        %v2601 = vpow.pop %v2600
        %v2602 = vmul.f32 %v2561, 1.442695
        %v2603 = vpow.pop %v2602
        %v2604 = vmul.f32 %v2562, 1.442695
        %v2605 = vpow.pop %v2604
        %v2606 = vmul.f32 %v2563, 1.442695
        %v2607 = vpow.pop %v2606
        %v2608 = vmul.f32 %v2564, 1.442695
        %v2609 = vpow.pop %v2608
        %v2610 = vmul.f32 %v2565, 1.442695
        %v2611 = vpow.pop %v2610
        %v2612 = vmul.f32 %v2566, 1.442695
        %v2613 = vpow.pop %v2612
        %v2614 = vmul.f32 %v2567, 1.442695
        %v2615 = vpow.pop %v2614
        %v2616 = vmul.f32 %v2568, 1.442695
        %v2617 = vpow.pop %v2616
        %v2618 = vmul.f32 %v2569, 1.442695
        %v2619 = vpow.pop %v2618
        %v2620 = vmul.f32 %v2570, 1.442695
        %v2621 = vpow.pop %v2620
        %v2622 = vmul.f32 %v2571, 1.442695
        %v2623 = vpow.pop %v2622
        %v2624 = vmul.f32 %v2572, 1.442695
        %v2625 = vpow.pop %v2624
        %v2626 = vmul.f32 %v2573, 1.442695
        %v2627 = vpow.pop %v2626
        %v2628 = vmul.f32 %v2574, 1.442695
        %v2629 = vpow.pop %v2628
        %v2630 = vmul.f32 %v2575, 1.442695
        %v2631 = vpow.pop %v2630
        %v2632 = vmul.f32 %v2576, 1.442695
        %v2633 = vpow.pop %v2632
        %v2634 = vmul.f32 %v2577, 1.442695
        %v2635 = vpow.pop %v2634
        %v2636 = vmul.f32 %v2578, 1.442695
        %v2637 = vpow.pop %v2636
        %v2638 = vmul.f32 %v2579, 1.442695
        %v2639 = vpow.pop %v2638
        %v2640 = vmul.f32 %v2580, 1.442695
        %v2641 = vpow.pop %v2640
        %v2642 = vmul.f32 %v2581, 1.442695
        %v2643 = vpow.pop %v2642
        %v2644 = vmul.f32 %v2582, 1.442695
        %v2645 = vpow.pop %v2644
        %v2646 = vmul.f32 %v2583, 1.442695
        %v2647 = vpow.pop %v2646
        %v2648 = vmul.f32 %v2488, %v2585
        %v2649 = vmul.f32 %v2489, %v2587
        %v2650 = vmul.f32 %v2490, %v2589
        %v2651 = vmul.f32 %v2491, %v2591
        %v2652 = vmul.f32 %v2492, %v2593
        %v2653 = vmul.f32 %v2493, %v2595
        %v2654 = vmul.f32 %v2494, %v2597
        %v2655 = vmul.f32 %v2495, %v2599
        %v2656 = vmul.f32 %v2496, %v2601
        %v2657 = vmul.f32 %v2497, %v2603
        %v2658 = vmul.f32 %v2498, %v2605
        %v2659 = vmul.f32 %v2499, %v2607
        %v2660 = vmul.f32 %v2500, %v2609
        %v2661 = vmul.f32 %v2501, %v2611
        %v2662 = vmul.f32 %v2502, %v2613
        %v2663 = vmul.f32 %v2503, %v2615
        %v2664 = vmul.f32 %v2504, %v2617
        %v2665 = vmul.f32 %v2505, %v2619
        %v2666 = vmul.f32 %v2506, %v2621
        %v2667 = vmul.f32 %v2507, %v2623
        %v2668 = vmul.f32 %v2508, %v2625
        %v2669 = vmul.f32 %v2509, %v2627
        %v2670 = vmul.f32 %v2510, %v2629
        %v2671 = vmul.f32 %v2511, %v2631
        %v2672 = vmul.f32 %v2512, %v2633
        %v2673 = vmul.f32 %v2513, %v2635
        %v2674 = vmul.f32 %v2514, %v2637
        %v2675 = vmul.f32 %v2515, %v2639
        %v2676 = vmul.f32 %v2516, %v2641
        %v2677 = vmul.f32 %v2517, %v2643
        %v2678 = vmul.f32 %v2518, %v2645
        %v2679 = vmul.f32 %v2519, %v2647
        %v2680 = vsub.f32 1.0, %v2648
        %v2681 = vsub.f32 1.0, %v2649
        %v2682 = vsub.f32 1.0, %v2650
        %v2683 = vsub.f32 1.0, %v2651
        %v2684 = vsub.f32 1.0, %v2652
        %v2685 = vsub.f32 1.0, %v2653
        %v2686 = vsub.f32 1.0, %v2654
        %v2687 = vsub.f32 1.0, %v2655
        %v2688 = vsub.f32 1.0, %v2656
        %v2689 = vsub.f32 1.0, %v2657
        %v2690 = vsub.f32 1.0, %v2658
        %v2691 = vsub.f32 1.0, %v2659
        %v2692 = vsub.f32 1.0, %v2660
        %v2693 = vsub.f32 1.0, %v2661
        %v2694 = vsub.f32 1.0, %v2662
        %v2695 = vsub.f32 1.0, %v2663
        %v2696 = vsub.f32 1.0, %v2664
        %v2697 = vsub.f32 1.0, %v2665
        %v2698 = vsub.f32 1.0, %v2666
        %v2699 = vsub.f32 1.0, %v2667
        %v2700 = vsub.f32 1.0, %v2668
        %v2701 = vsub.f32 1.0, %v2669
        %v2702 = vsub.f32 1.0, %v2670
        %v2703 = vsub.f32 1.0, %v2671
        %v2704 = vsub.f32 1.0, %v2672
        %v2705 = vsub.f32 1.0, %v2673
        %v2706 = vsub.f32 1.0, %v2674
        %v2707 = vsub.f32 1.0, %v2675
        %v2708 = vsub.f32 1.0, %v2676
        %v2709 = vsub.f32 1.0, %v2677
        %v2710 = vsub.f32 1.0, %v2678
        %v2711 = vsub.f32 1.0, %v2679
        %v2712 = vmul.f32 %v2040, %v2680
        %v2713 = vmul.f32 %v2041, %v2681
        %v2714 = vmul.f32 %v2042, %v2682
        %v2715 = vmul.f32 %v2043, %v2683
        %v2716 = vmul.f32 %v2044, %v2684
        %v2717 = vmul.f32 %v2045, %v2685
        %v2718 = vmul.f32 %v2046, %v2686
        %v2719 = vmul.f32 %v2047, %v2687
        %v2720 = vmul.f32 %v2048, %v2688
        %v2721 = vmul.f32 %v2049, %v2689
        %v2722 = vmul.f32 %v2050, %v2690
        %v2723 = vmul.f32 %v2051, %v2691
        %v2724 = vmul.f32 %v2052, %v2692
        %v2725 = vmul.f32 %v2053, %v2693
        %v2726 = vmul.f32 %v2054, %v2694
        %v2727 = vmul.f32 %v2055, %v2695
        %v2728 = vmul.f32 %v2056, %v2696
        %v2729 = vmul.f32 %v2057, %v2697
        %v2730 = vmul.f32 %v2058, %v2698
        %v2731 = vmul.f32 %v2059, %v2699
        %v2732 = vmul.f32 %v2060, %v2700
        %v2733 = vmul.f32 %v2061, %v2701
        %v2734 = vmul.f32 %v2062, %v2702
        %v2735 = vmul.f32 %v2063, %v2703
        %v2736 = vmul.f32 %v2064, %v2704
        %v2737 = vmul.f32 %v2065, %v2705
        %v2738 = vmul.f32 %v2066, %v2706
        %v2739 = vmul.f32 %v2067, %v2707
        %v2740 = vmul.f32 %v2068, %v2708
        %v2741 = vmul.f32 %v2069, %v2709
        %v2742 = vmul.f32 %v2070, %v2710
        %v2743 = vmul.f32 %v2071, %v2711
        %v2744 = vadd.f32 %v2712, 1.0
        %v2745 = vadd.f32 %v2713, 1.0
        %v2746 = vadd.f32 %v2714, 1.0
        %v2747 = vadd.f32 %v2715, 1.0
        %v2748 = vadd.f32 %v2716, 1.0
        %v2749 = vadd.f32 %v2717, 1.0
        %v2750 = vadd.f32 %v2718, 1.0
        %v2751 = vadd.f32 %v2719, 1.0
        %v2752 = vadd.f32 %v2720, 1.0
        %v2753 = vadd.f32 %v2721, 1.0
        %v2754 = vadd.f32 %v2722, 1.0
        %v2755 = vadd.f32 %v2723, 1.0
        %v2756 = vadd.f32 %v2724, 1.0
        %v2757 = vadd.f32 %v2725, 1.0
        %v2758 = vadd.f32 %v2726, 1.0
        %v2759 = vadd.f32 %v2727, 1.0
        %v2760 = vadd.f32 %v2728, 1.0
        %v2761 = vadd.f32 %v2729, 1.0
        %v2762 = vadd.f32 %v2730, 1.0
        %v2763 = vadd.f32 %v2731, 1.0
        %v2764 = vadd.f32 %v2732, 1.0
        %v2765 = vadd.f32 %v2733, 1.0
        %v2766 = vadd.f32 %v2734, 1.0
        %v2767 = vadd.f32 %v2735, 1.0
        %v2768 = vadd.f32 %v2736, 1.0
        %v2769 = vadd.f32 %v2737, 1.0
        %v2770 = vadd.f32 %v2738, 1.0
        %v2771 = vadd.f32 %v2739, 1.0
        %v2772 = vadd.f32 %v2740, 1.0
        %v2773 = vadd.f32 %v2741, 1.0
        %v2774 = vadd.f32 %v2742, 1.0
        %v2775 = vadd.f32 %v2743, 1.0
        %v2776 = vmul.f32 %v1944, %v2744
        %v2777 = vmul.f32 %v1945, %v2745
        %v2778 = vmul.f32 %v1946, %v2746
        %v2779 = vmul.f32 %v1947, %v2747
        %v2780 = vmul.f32 %v1948, %v2748
        %v2781 = vmul.f32 %v1949, %v2749
        %v2782 = vmul.f32 %v1950, %v2750
        %v2783 = vmul.f32 %v1951, %v2751
        %v2784 = vmul.f32 %v1952, %v2752
        %v2785 = vmul.f32 %v1953, %v2753
        %v2786 = vmul.f32 %v1954, %v2754
        %v2787 = vmul.f32 %v1955, %v2755
        %v2788 = vmul.f32 %v1956, %v2756
        %v2789 = vmul.f32 %v1957, %v2757
        %v2790 = vmul.f32 %v1958, %v2758
        %v2791 = vmul.f32 %v1959, %v2759
        %v2792 = vmul.f32 %v1960, %v2760
        %v2793 = vmul.f32 %v1961, %v2761
        %v2794 = vmul.f32 %v1962, %v2762
        %v2795 = vmul.f32 %v1963, %v2763
        %v2796 = vmul.f32 %v1964, %v2764
        %v2797 = vmul.f32 %v1965, %v2765
        %v2798 = vmul.f32 %v1966, %v2766
        %v2799 = vmul.f32 %v1967, %v2767
        %v2800 = vmul.f32 %v1968, %v2768
        %v2801 = vmul.f32 %v1969, %v2769
        %v2802 = vmul.f32 %v1970, %v2770
        %v2803 = vmul.f32 %v1971, %v2771
        %v2804 = vmul.f32 %v1972, %v2772
        %v2805 = vmul.f32 %v1973, %v2773
        %v2806 = vmul.f32 %v1974, %v2774
        %v2807 = vmul.f32 %v1975, %v2775
        %v2808 = vld [vmem:[%s9] sm:$0xff]
        %v2809 = vld [vmem:[%s9 + $0x8] sm:$0xff]
        %v2810 = vld [vmem:[%s9 + $0x10] sm:$0xff]
        %v2811 = vld [vmem:[%s9 + $0x18] sm:$0xff]
        %v2812 = vpack.c.bf16 %v2809, %v2808
        %v2813 = vpack.c.bf16 %v2811, %v2810
        %v2814 = vpack.c.bf16 %v2778, %v2776
        %v2815 = vpack.c.bf16 %v2779, %v2777
        %v2816 = vpack.c.bf16 %v2782, %v2780
        %v2817 = vpack.c.bf16 %v2783, %v2781
        %v2818 = vpack.c.bf16 %v2786, %v2784
        %v2819 = vpack.c.bf16 %v2787, %v2785
        %v2820 = vpack.c.bf16 %v2790, %v2788
        %v2821 = vpack.c.bf16 %v2791, %v2789
        %v2822 = vpack.c.bf16 %v2794, %v2792
        %v2823 = vpack.c.bf16 %v2795, %v2793
        %v2824 = vpack.c.bf16 %v2798, %v2796
        %v2825 = vpack.c.bf16 %v2799, %v2797
        %v2826 = vpack.c.bf16 %v2802, %v2800
        %v2827 = vpack.c.bf16 %v2803, %v2801
        %v2828 = vpack.c.bf16 %v2806, %v2804
        %v2829 = vpack.c.bf16 %v2807, %v2805
        %v2830 = vld [vmem:[%s10] sm:$0xff]
        %v2831 = vld [vmem:[%s10 + $0x8] sm:$0xff]
        %v2832 = vld [vmem:[%s10 + $0x10] sm:$0xff]
        %v2833 = vld [vmem:[%s10 + $0x18] sm:$0xff]
        %2835 = vset.pattern.permute.xlu0 0
        %2836 = vperm.xlu0 %2835, %v2830
        %v2837 = vpop.permute.xlu0 %2836
        %2840 = vset.pattern.permute.xlu0 0
        %2841 = vperm.xlu0 %2840, %v2831
        %v2842 = vpop.permute.xlu0 %2841
        %2845 = vset.pattern.permute.xlu0 0
        %2846 = vperm.xlu0 %2845, %v2832
        %v2847 = vpop.permute.xlu0 %2846
        %2850 = vset.pattern.permute.xlu0 0
        %2851 = vperm.xlu0 %2850, %v2833
        %v2852 = vpop.permute.xlu0 %2851
        %2854 = vmatprep.subr.bf16.mxu0 %v2829
        %2855 = vmatpush1.bf16.msra.mxu0 %v2828
        %2856 = vmatprep.subr.bf16.mxu0 %v2827
        %2857 = vmatpush1.bf16.msra.mxu0 %v2826
        %2858 = vmatprep.subr.bf16.mxu0 %v2825
        %2859 = vmatpush1.bf16.msra.mxu0 %v2824
        %2860 = vmatprep.subr.bf16.mxu0 %v2823
        %2861 = vmatpush1.bf16.msra.mxu0 %v2822
        %2862 = vmatprep.subr.bf16.mxu0 %v2821
        %2863 = vmatpush1.bf16.msra.mxu0 %v2820
        %2864 = vmatprep.subr.bf16.mxu0 %v2819
        %2865 = vmatpush1.bf16.msra.mxu0 %v2818
        %2866 = vmatprep.subr.bf16.mxu0 %v2817
        %2867 = vmatpush1.bf16.msra.mxu0 %v2816
        %2868 = vmatprep.subr.bf16.mxu0 %v2815
        %2869 = vmatpush1.bf16.msra.mxu0 %v2814
        %2870 = vmatprep.subr.bf16.mxu0 0
        %2871 = vmatpush2.bf16.msra.mxu0 0
        %2872 = vmatprep.subr.bf16.mxu0 0
        %2873 = vmatpush2.bf16.msra.mxu0 0
        %2874 = vmatprep.subr.bf16.mxu0 0
        %2875 = vmatpush2.bf16.msra.mxu0 0
        %2876 = vmatprep.subr.bf16.mxu0 0
        %2877 = vmatpush2.bf16.msra.mxu0 0
        %2878 = vmatprep.subr.bf16.mxu0 0
        %2879 = vmatpush2.bf16.msra.mxu0 0
        %2880 = vmatprep.subr.bf16.mxu0 0
        %2881 = vmatpush2.bf16.msra.mxu0 0
        %2882 = vmatprep.subr.bf16.mxu0 0
        %2883 = vmatpush2.bf16.msra.mxu0 0
        %2884 = vmatprep.subr.bf16.mxu0 0
        %2885 = vmatpush2.bf16.msra.mxu0 0
        %2886 = vmatprep.mubr.bf16.mxu0 0
        %2887 = vmatmul.mubr.bf16.gmra.mxu0 %v2812
        %v2888 = vpop.f32.mrf.mxu0
        %v2889 = vadd.f32 %v2837, %v2888
        %v2890 = vpop.f32.mrf.mxu0
        %v2891 = vadd.f32 %v2837, %v2890
        %v2892 = vpop.f32.mrf.mxu0
        %v2893 = vadd.f32 %v2842, %v2892
        %v2894 = vpop.f32.mrf.mxu0
        %v2895 = vadd.f32 %v2842, %v2894
        %2896 = vmatprep.mubr.bf16.mxu0 0
        %2897 = vmatmul.mubr.bf16.gmra.mxu0 %v2813
        %v2898 = vpop.f32.mrf.mxu0
        %v2899 = vadd.f32 %v2847, %v2898
        %v2900 = vpop.f32.mrf.mxu0
        %v2901 = vadd.f32 %v2847, %v2900
        %v2902 = vpop.f32.mrf.mxu0
        %v2903 = vadd.f32 %v2852, %v2902
        %v2904 = vpop.f32.mrf.mxu0
        %v2905 = vadd.f32 %v2852, %v2904
        %2906 = vdwg.mxu0
        %v2907 = vadd.f32 %v1587, %v2889
        %v2908 = vadd.f32 %v1588, %v2891
        %v2909 = vadd.f32 %v1589, %v2893
        %v2910 = vadd.f32 %v1590, %v2895
        %v2911 = vadd.f32 %v1591, %v2899
        %v2912 = vadd.f32 %v1592, %v2901
        %v2913 = vadd.f32 %v1593, %v2903
        %v2914 = vadd.f32 %v1594, %v2905
        %2915 = vst [vmem:[%s379] sm:$0xff] %v2907
        %2916 = vst [vmem:[%s379 + $0x8] sm:$0xff] %v2908
        %2917 = vst [vmem:[%s379 + $0x10] sm:$0xff] %v2909
        %2918 = vst [vmem:[%s379 + $0x18] sm:$0xff] %v2910
        %2919 = vst [vmem:[%s379 + $0x20] sm:$0xff] %v2911
        %2920 = vst [vmem:[%s379 + $0x28] sm:$0xff] %v2912
        %2921 = vst [vmem:[%s379 + $0x30] sm:$0xff] %v2913
        %2922 = vst [vmem:[%s379 + $0x38] sm:$0xff] %v2914
        %s2923 = sand.u32 %s269, 1
        %s2924 = scalar_lea.sflag [#allocation3], %s2923
        %s2925 = sand.u32 %s269, 1
        %s2926 = smul.addr %s2925, 64
        %s2927 = scalar_lea.vmem [#allocation2], %s2926
        // Predicated region
        $region65: #{tpu_custom_call.1} parent=63 // pred_check
          %p2928 = pneg %p279
        $region66: #{tpu_custom_call.1} parent=63 // pred_check_branch
          %2930 = sbr.rel (%p2928) target = $region68
        $region67: #{tpu_custom_call.1} parent=63 // pred_region
          %s2932 = ssub.s32 1024, 1024
          %2933 = vsyncadd %s2924, %s2932
          %s2934 = smul.addr %s25, 8
          %s2935 = smul.addr %s2934, 128
          %s2936 = scalar_lea.hbm %s11, %s2935
          %s2937 = sshll.u32 %s2927, 4
          %s2938 = int_to_ptr.vmem [resolvable:$true] %s2937
          %2943 = dma.vmem_to_hbm [thread:$0]  %s2938, 1024, %s2936, %s2924, 256, 256, 16
        $region68: #{tpu_custom_call.1} parent=63 // pred_fallthru
          _
      $region64: #{tpu_custom_call.1} parent=5 // pred_fallthru
        _
      %p2944 = scmp.le.s32.totalorder 2, %s20
      // Predicated region
      $region69: #{tpu_custom_call.1} parent=5 // pred_check
        %p2945 = pneg %p2944
      $region70: #{tpu_custom_call.1} parent=5 // pred_check_branch
        %2947 = sbr.rel (%p2945) target = $region72
      $region71: #{tpu_custom_call.1} parent=5 // pred_region
        %s2948 = ssub.s32 %s20, 2
        // Predicated region
        $region73: #{tpu_custom_call.1} parent=71 // pred_check
          %p2949 = pneg %p285
        $region74: #{tpu_custom_call.1} parent=71 // pred_check_branch
          %2951 = sbr.rel (%p2949) target = $region76
        $region75: #{tpu_custom_call.1} parent=71 // pred_region
          %s2952 = sand.u32 %s270, 1
          %s2953 = scalar_lea.sflag [#allocation3], %s2952
          %s2954 = sand.u32 %s270, 1
          %s2955 = smul.addr %s2954, 64
          %s2956 = scalar_lea.vmem [#allocation2], %s2955
          %2957 = dma.done %s2953, 1024
        $region76: #{tpu_custom_call.1} parent=71 // pred_fallthru
          _
      $region72: #{tpu_custom_call.1} parent=5 // pred_fallthru
        _
    $region6: #{tpu_custom_call.1} parent=1 // loop_footer
      %s24 = sadd.s32 1, %s20
    $region7: #{tpu_custom_call.1} parent=1 // loop_footer_branch
      %19 = sbr.rel target = $region3
    $region8: #{tpu_custom_call.1} parent=1 // loop_exit
      _
    %2958 = vsyncpa [#allocation3], 1
    %s2959 = scalar_lea.sflag [#allocation3], 1
    %2960 = vsyncpa %s2959, 1

</llo_original>
